<compile_context>
chip_gen: v7x
topology: tpu7x:2x2x1
jax: 0.10.0
libtpu: 0.0.40
codegen_flags: <defaults>
</compile_context>

<pallas_src>
import functools

import jax
import jax.numpy as jnp
from jax import lax
from jax.experimental import pallas as pl
from jax.experimental.pallas import tpu as pltpu


def _conv_block_kernel(x_ref, w_ref, b_ref, o_ref, conv_ref, *,
                       NB, H, W, KH, KW, Hc, Wc, Cout,
                       pool_k, pool_s, Hp, Wp):
    """ConvBlock for NB images per grid step.

    x_ref:    (NB*H*W, Cin)      flattened NHWC input rows (channels on lanes)
    w_ref:    (KH*KW, Cin, Cout) conv weights, one (Cin, Cout) tile per tap
    b_ref:    (1, Cout)          conv bias
    o_ref:    (NB, Ho, Wo, Cout) output block
    conv_ref: (Mv, Cout) f32     scratch: flat conv output of one image
    """
    n_taps = KH * KW
    Mv = (Hc - 1) * W + Wc          # valid flat conv extent per image

    # --- hoisted loads / broadcasts (done once, not per row / per tap) ------
    w_taps = [w_ref[t] for t in range(n_taps)]              # KH*KW x (Cin, Cout)
    bias = b_ref[...].astype(jnp.float32)                   # (1, Cout)
    if pool_s is None:
        bias_row = jnp.broadcast_to(bias, (Wc, Cout))
    else:
        bias_row = jnp.broadcast_to(bias, (Wp, Cout))

    for m in range(NB):
        base = m * H * W

        # --- conv: KH*KW whole-slab matmuls accumulated in VMEM scratch ----
        # Flat trick: conv_flat[h*W + w] = sum_taps x_flat[h*W + w + kh*W + kw] @ w_tap
        # Positions with w >= Wc are junk (row wrap) and are simply never read.
        for t in range(n_taps):
            kh, kw = divmod(t, KW)
            off = base + kh * W + kw
            xs = x_ref[off:off + Mv, :]                      # (Mv, Cin), static slice
            contrib = jnp.dot(xs, w_taps[t],
                              preferred_element_type=jnp.float32)
            if t == 0:
                conv_ref[...] = contrib
            else:
                conv_ref[...] += contrib

        if pool_s is None:
            # No pooling: bias + ReLU, one lane-dense (Wc, Cout) store per row.
            for h in range(Hc):
                row = conv_ref[h * W:h * W + Wc, :]
                o_ref[m, h, :, :] = jnp.maximum(row + bias_row,
                                                0.0).astype(o_ref.dtype)
            continue

        # --- MaxPool2d(pool_k, pool_s) + bias + ReLU ------------------------
        # bias commutes with max (same per channel), so add it after pooling.
        Ww = Wc - pool_k + 1
        for i in range(Hp):
            r0 = i * pool_s
            # max over the pool_k conv rows covered by pooled row i
            rmax = conv_ref[r0 * W:r0 * W + Wc, :]           # (Wc, Cout)
            for kh in range(1, pool_k):
                r = conv_ref[(r0 + kh) * W:(r0 + kh) * W + Wc, :]
                rmax = jnp.maximum(rmax, r)
            # sliding-window max along W via shifted slices
            wmax = rmax[0:Ww, :]
            for kw in range(1, pool_k):
                wmax = jnp.maximum(wmax, rmax[kw:kw + Ww, :])
            # strided subsample of window maxima -> pooled row
            if pool_s == 1:
                pooled = wmax[0:Wp, :]
            else:
                pooled = jnp.concatenate(
                    [wmax[j * pool_s:j * pool_s + 1, :] for j in range(Wp)],
                    axis=0)                                  # (Wp, Cout)
            # single lane-dense store per pooled row, fused bias + ReLU
            o_ref[m, i, :, :] = jnp.maximum(pooled + bias_row,
                                            0.0).astype(o_ref.dtype)


def conv_block(x_nchw, weight_oihw, bias, kernel_size, stride=None,
               batch_block=None):
    """Pallas ConvBlock forward. x: NCHW, weight: OIHW (PyTorch convention)."""
    N, Cin, H, W = x_nchw.shape
    Cout = weight_oihw.shape[0]
    KH = KW = kernel_size
    Hc, Wc = H - KH + 1, W - KW + 1
    if stride is not None:
        pool_k, pool_s = kernel_size, stride
        Hp = (Hc - pool_k) // pool_s + 1
        Wp = (Wc - pool_k) // pool_s + 1
        Ho, Wo = Hp, Wp
    else:
        pool_k = pool_s = Hp = Wp = None
        Ho, Wo = Hc, Wc

    # TODO(synk): carry NHWC end-to-end in the surrounding model so these
    # NCHW<->NHWC transposes (extra HBM passes) disappear; weight transpose
    # can be done once at init.
    x_flat = jnp.transpose(x_nchw, (0, 2, 3, 1)).reshape(N * H * W, Cin)
    w_flat = jnp.transpose(weight_oihw, (2, 3, 1, 0)).reshape(KH * KW, Cin, Cout)
    b2 = bias.reshape(1, Cout)

    # Images per grid step; each step's work is already substantial, so NB=1
    # keeps >=2 grid steps for megacore sharding on v7x when N >= 2.
    NB = batch_block if batch_block is not None else 1
    if N % NB != 0 or (NB * H * W) % 8 != 0:
        NB = N                      # single full-array block is always legal
    grid = (N // NB,)

    Mv = (Hc - 1) * W + Wc

    kernel = functools.partial(
        _conv_block_kernel, NB=NB, H=H, W=W, KH=KH, KW=KW, Hc=Hc, Wc=Wc,
        Cout=Cout, pool_k=pool_k, pool_s=pool_s, Hp=Hp, Wp=Wp)

    out_nhwc = pl.pallas_call(
        kernel,
        out_shape=jax.ShapeDtypeStruct((N, Ho, Wo, Cout), x_nchw.dtype),
        grid_spec=pltpu.PrefetchScalarGridSpec(
            num_scalar_prefetch=0,
            grid=grid,
            in_specs=[
                pl.BlockSpec((NB * H * W, Cin), lambda b: (b, 0)),
                pl.BlockSpec((KH * KW, Cin, Cout), lambda b: (0, 0, 0)),
                pl.BlockSpec((1, Cout), lambda b: (0, 0)),
            ],
            out_specs=pl.BlockSpec((NB, Ho, Wo, Cout), lambda b: (b, 0, 0, 0)),
            scratch_shapes=[pltpu.VMEM((Mv, Cout), jnp.float32)],
        ),
        compiler_params=pltpu.CompilerParams(
            dimension_semantics=("parallel",)),
    )(x_flat, w_flat, b2)

    return jnp.transpose(out_nhwc, (0, 3, 1, 2))     # back to NCHW


def conv_block_ref(x, weight, bias, kernel_size, stride=None):
    """Pure-JAX reference mirroring the PyTorch module."""
    y = lax.conv_general_dilated(
        x, weight, window_strides=(1, 1), padding='VALID',
        dimension_numbers=('NCHW', 'OIHW', 'NCHW'))
    y = y + bias.reshape(1, -1, 1, 1)
    if stride is not None:
        y = lax.reduce_window(
            y, -jnp.inf, lax.max,
            window_dimensions=(1, 1, kernel_size, kernel_size),
            window_strides=(1, 1, stride, stride), padding='VALID')
    return jnp.maximum(y, 0.0)


if __name__ == "__main__":
    # ConvBlock(in_channels=4, out_channels=8, kernel_size=3, stride=2)
    N, Cin, H, W = 2, 4, 16, 16
    Cout, K, STRIDE = 8, 3, 2

    key = jax.random.PRNGKey(0)
    kx, kw, kb = jax.random.split(key, 3)
    x = jax.random.normal(kx, (N, Cin, H, W), dtype=jnp.float32)
    weight = jax.random.normal(kw, (Cout, Cin, K, K), dtype=jnp.float32) * 0.1
    bias = jax.random.normal(kb, (Cout,), dtype=jnp.float32) * 0.1

    # Pooled path (stride=2)
    out = jax.block_until_ready(conv_block(x, weight, bias, kernel_size=K,
                                           stride=STRIDE))
    ref = jax.block_until_ready(conv_block_ref(x, weight, bias, K, STRIDE))
    assert out.shape == ref.shape == (N, Cout, 6, 6), (out.shape, ref.shape)
    assert jnp.allclose(out, ref, atol=1e-3, rtol=1e-3), \
        float(jnp.max(jnp.abs(out - ref)))

    # No-pool path (stride=None)
    out2 = jax.block_until_ready(conv_block(x, weight, bias, kernel_size=K,
                                            stride=None))
    ref2 = jax.block_until_ready(conv_block_ref(x, weight, bias, K, None))
    assert out2.shape == ref2.shape == (N, Cout, 14, 14), (out2.shape, ref2.shape)
    assert jnp.allclose(out2, ref2, atol=1e-3, rtol=1e-3), \
        float(jnp.max(jnp.abs(out2 - ref2)))

    print("KERNEL_OK")
</pallas_src>

<mosaic_0001>
module attributes {stable_mosaic.version = 11 : i64} {
  func.func @_conv_block_kernel(%arg0: i32, %arg1: memref<256x4xf32, #tpu.memory_space<vmem>>, %arg2: memref<9x4x8xf32, #tpu.memory_space<vmem>>, %arg3: memref<1x8xf32, #tpu.memory_space<vmem>>, %arg4: memref<1x6x6x8xf32, #tpu.memory_space<vmem>>, %arg5: memref<222x8xf32, #tpu.memory_space<vmem>>) attributes {dimension_semantics = [#tpu.dimension_semantics<parallel>], iteration_bounds = array<i64: 2>, scalar_prefetch = 0 : i64, scratch_operands = 1 : i64, tpu.core_type = #tpu.core_type<tc>, window_params = [{transform_indices = @transform_0, window_bounds = array<i64: 256, 4>}, {pipeline_mode = #tpu.pipeline_mode<synchronous>, transform_indices = @transform_1, window_bounds = array<i64: 9, 4, 8>}, {pipeline_mode = #tpu.pipeline_mode<synchronous>, transform_indices = @transform_2, window_bounds = array<i64: 1, 8>}, {transform_indices = @transform_3, window_bounds = array<i64: 1, 6, 6, 8>}]} {
    %c0 = arith.constant 0 : index
    %c0_0 = arith.constant 0 : index
    %c0_1 = arith.constant 0 : index
    %0 = vector.load %arg2[%c0, %c0_0, %c0_1] : memref<9x4x8xf32, #tpu.memory_space<vmem>>, vector<1x4x8xf32>
    %1 = vector.shape_cast %0 : vector<1x4x8xf32> to vector<4x8xf32>
    %c1 = arith.constant 1 : index
    %c0_2 = arith.constant 0 : index
    %c0_3 = arith.constant 0 : index
    %2 = vector.load %arg2[%c1, %c0_2, %c0_3] : memref<9x4x8xf32, #tpu.memory_space<vmem>>, vector<1x4x8xf32>
    %3 = vector.shape_cast %2 : vector<1x4x8xf32> to vector<4x8xf32>
    %c2 = arith.constant 2 : index
    %c0_4 = arith.constant 0 : index
    %c0_5 = arith.constant 0 : index
    %4 = vector.load %arg2[%c2, %c0_4, %c0_5] : memref<9x4x8xf32, #tpu.memory_space<vmem>>, vector<1x4x8xf32>
    %5 = vector.shape_cast %4 : vector<1x4x8xf32> to vector<4x8xf32>
    %c3 = arith.constant 3 : index
    %c0_6 = arith.constant 0 : index
    %c0_7 = arith.constant 0 : index
    %6 = vector.load %arg2[%c3, %c0_6, %c0_7] : memref<9x4x8xf32, #tpu.memory_space<vmem>>, vector<1x4x8xf32>
    %7 = vector.shape_cast %6 : vector<1x4x8xf32> to vector<4x8xf32>
    %c4 = arith.constant 4 : index
    %c0_8 = arith.constant 0 : index
    %c0_9 = arith.constant 0 : index
    %8 = vector.load %arg2[%c4, %c0_8, %c0_9] : memref<9x4x8xf32, #tpu.memory_space<vmem>>, vector<1x4x8xf32>
    %9 = vector.shape_cast %8 : vector<1x4x8xf32> to vector<4x8xf32>
    %c5 = arith.constant 5 : index
    %c0_10 = arith.constant 0 : index
    %c0_11 = arith.constant 0 : index
    %10 = vector.load %arg2[%c5, %c0_10, %c0_11] : memref<9x4x8xf32, #tpu.memory_space<vmem>>, vector<1x4x8xf32>
    %11 = vector.shape_cast %10 : vector<1x4x8xf32> to vector<4x8xf32>
    %c6 = arith.constant 6 : index
    %c0_12 = arith.constant 0 : index
    %c0_13 = arith.constant 0 : index
    %12 = vector.load %arg2[%c6, %c0_12, %c0_13] : memref<9x4x8xf32, #tpu.memory_space<vmem>>, vector<1x4x8xf32>
    %13 = vector.shape_cast %12 : vector<1x4x8xf32> to vector<4x8xf32>
    %c7 = arith.constant 7 : index
    %c0_14 = arith.constant 0 : index
    %c0_15 = arith.constant 0 : index
    %14 = vector.load %arg2[%c7, %c0_14, %c0_15] : memref<9x4x8xf32, #tpu.memory_space<vmem>>, vector<1x4x8xf32>
    %15 = vector.shape_cast %14 : vector<1x4x8xf32> to vector<4x8xf32>
    %c8 = arith.constant 8 : index
    %c0_16 = arith.constant 0 : index
    %c0_17 = arith.constant 0 : index
    %16 = vector.load %arg2[%c8, %c0_16, %c0_17] : memref<9x4x8xf32, #tpu.memory_space<vmem>>, vector<1x4x8xf32>
    %17 = vector.shape_cast %16 : vector<1x4x8xf32> to vector<4x8xf32>
    %c0_18 = arith.constant 0 : index
    %c0_19 = arith.constant 0 : index
    %18 = vector.load %arg3[%c0_18, %c0_19] : memref<1x8xf32, #tpu.memory_space<vmem>>, vector<1x8xf32>
    %19 = vector.shape_cast %18 : vector<1x8xf32> to vector<1x8xf32>
    %20 = vector.broadcast %19 : vector<1x8xf32> to vector<6x8xf32>
    %c0_20 = arith.constant 0 : index
    %c0_21 = arith.constant 0 : index
    %21 = vector.load %arg1[%c0_20, %c0_21] : memref<256x4xf32, #tpu.memory_space<vmem>>, vector<222x4xf32>
    %cst = arith.constant dense<0.000000e+00> : vector<222x8xf32>
    %22 = tpu.matmul %21, %1, %cst {dimension_numbers = #tpu.dot_dimension_numbers<[1], [0], [0], [1], [0, 0, 1, 1], [], []>} : vector<222x4xf32>, vector<4x8xf32>, vector<222x8xf32> -> vector<222x8xf32>
    %c0_22 = arith.constant 0 : index
    %c0_23 = arith.constant 0 : index
    %23 = vector.load %arg5[%c0_22, %c0_23] : memref<222x8xf32, #tpu.memory_space<vmem>>, vector<222x8xf32>
    tpu.vector_store %arg5[%c0_22, %c0_23], %22 {strides = array<i32>} : memref<222x8xf32, #tpu.memory_space<vmem>>, vector<222x8xf32>,
    %c1_24 = arith.constant 1 : index
    %c0_25 = arith.constant 0 : index
    %24 = vector.load %arg1[%c1_24, %c0_25] : memref<256x4xf32, #tpu.memory_space<vmem>>, vector<222x4xf32>
    %cst_26 = arith.constant dense<0.000000e+00> : vector<222x8xf32>
    %25 = tpu.matmul %24, %3, %cst_26 {dimension_numbers = #tpu.dot_dimension_numbers<[1], [0], [0], [1], [0, 0, 1, 1], [], []>} : vector<222x4xf32>, vector<4x8xf32>, vector<222x8xf32> -> vector<222x8xf32>
    %c0_27 = arith.constant 0 : index
    %c0_28 = arith.constant 0 : index
    %26 = vector.load %arg5[%c0_27, %c0_28] : memref<222x8xf32, #tpu.memory_space<vmem>>, vector<222x8xf32>
    %27 = arith.addf %26, %25 : vector<222x8xf32>
    %c0_29 = arith.constant 0 : index
    %c0_30 = arith.constant 0 : index
    %28 = vector.load %arg5[%c0_29, %c0_30] : memref<222x8xf32, #tpu.memory_space<vmem>>, vector<222x8xf32>
    tpu.vector_store %arg5[%c0_29, %c0_30], %27 {strides = array<i32>} : memref<222x8xf32, #tpu.memory_space<vmem>>, vector<222x8xf32>,
    %c2_31 = arith.constant 2 : index
    %c0_32 = arith.constant 0 : index
    %29 = vector.load %arg1[%c2_31, %c0_32] : memref<256x4xf32, #tpu.memory_space<vmem>>, vector<222x4xf32>
    %cst_33 = arith.constant dense<0.000000e+00> : vector<222x8xf32>
    %30 = tpu.matmul %29, %5, %cst_33 {dimension_numbers = #tpu.dot_dimension_numbers<[1], [0], [0], [1], [0, 0, 1, 1], [], []>} : vector<222x4xf32>, vector<4x8xf32>, vector<222x8xf32> -> vector<222x8xf32>
    %c0_34 = arith.constant 0 : index
    %c0_35 = arith.constant 0 : index
    %31 = vector.load %arg5[%c0_34, %c0_35] : memref<222x8xf32, #tpu.memory_space<vmem>>, vector<222x8xf32>
    %32 = arith.addf %31, %30 : vector<222x8xf32>
    %c0_36 = arith.constant 0 : index
    %c0_37 = arith.constant 0 : index
    %33 = vector.load %arg5[%c0_36, %c0_37] : memref<222x8xf32, #tpu.memory_space<vmem>>, vector<222x8xf32>
    tpu.vector_store %arg5[%c0_36, %c0_37], %32 {strides = array<i32>} : memref<222x8xf32, #tpu.memory_space<vmem>>, vector<222x8xf32>,
    %c16 = arith.constant 16 : index
    %c0_38 = arith.constant 0 : index
    %34 = vector.load %arg1[%c16, %c0_38] : memref<256x4xf32, #tpu.memory_space<vmem>>, vector<222x4xf32>
    %cst_39 = arith.constant dense<0.000000e+00> : vector<222x8xf32>
    %35 = tpu.matmul %34, %7, %cst_39 {dimension_numbers = #tpu.dot_dimension_numbers<[1], [0], [0], [1], [0, 0, 1, 1], [], []>} : vector<222x4xf32>, vector<4x8xf32>, vector<222x8xf32> -> vector<222x8xf32>
    %c0_40 = arith.constant 0 : index
    %c0_41 = arith.constant 0 : index
    %36 = vector.load %arg5[%c0_40, %c0_41] : memref<222x8xf32, #tpu.memory_space<vmem>>, vector<222x8xf32>
    %37 = arith.addf %36, %35 : vector<222x8xf32>
    %c0_42 = arith.constant 0 : index
    %c0_43 = arith.constant 0 : index
    %38 = vector.load %arg5[%c0_42, %c0_43] : memref<222x8xf32, #tpu.memory_space<vmem>>, vector<222x8xf32>
    tpu.vector_store %arg5[%c0_42, %c0_43], %37 {strides = array<i32>} : memref<222x8xf32, #tpu.memory_space<vmem>>, vector<222x8xf32>,
    %c17 = arith.constant 17 : index
    %c0_44 = arith.constant 0 : index
    %39 = vector.load %arg1[%c17, %c0_44] : memref<256x4xf32, #tpu.memory_space<vmem>>, vector<222x4xf32>
    %cst_45 = arith.constant dense<0.000000e+00> : vector<222x8xf32>
    %40 = tpu.matmul %39, %9, %cst_45 {dimension_numbers = #tpu.dot_dimension_numbers<[1], [0], [0], [1], [0, 0, 1, 1], [], []>} : vector<222x4xf32>, vector<4x8xf32>, vector<222x8xf32> -> vector<222x8xf32>
    %c0_46 = arith.constant 0 : index
    %c0_47 = arith.constant 0 : index
    %41 = vector.load %arg5[%c0_46, %c0_47] : memref<222x8xf32, #tpu.memory_space<vmem>>, vector<222x8xf32>
    %42 = arith.addf %41, %40 : vector<222x8xf32>
    %c0_48 = arith.constant 0 : index
    %c0_49 = arith.constant 0 : index
    %43 = vector.load %arg5[%c0_48, %c0_49] : memref<222x8xf32, #tpu.memory_space<vmem>>, vector<222x8xf32>
    tpu.vector_store %arg5[%c0_48, %c0_49], %42 {strides = array<i32>} : memref<222x8xf32, #tpu.memory_space<vmem>>, vector<222x8xf32>,
    %c18 = arith.constant 18 : index
    %c0_50 = arith.constant 0 : index
    %44 = vector.load %arg1[%c18, %c0_50] : memref<256x4xf32, #tpu.memory_space<vmem>>, vector<222x4xf32>
    %cst_51 = arith.constant dense<0.000000e+00> : vector<222x8xf32>
    %45 = tpu.matmul %44, %11, %cst_51 {dimension_numbers = #tpu.dot_dimension_numbers<[1], [0], [0], [1], [0, 0, 1, 1], [], []>} : vector<222x4xf32>, vector<4x8xf32>, vector<222x8xf32> -> vector<222x8xf32>
    %c0_52 = arith.constant 0 : index
    %c0_53 = arith.constant 0 : index
    %46 = vector.load %arg5[%c0_52, %c0_53] : memref<222x8xf32, #tpu.memory_space<vmem>>, vector<222x8xf32>
    %47 = arith.addf %46, %45 : vector<222x8xf32>
    %c0_54 = arith.constant 0 : index
    %c0_55 = arith.constant 0 : index
    %48 = vector.load %arg5[%c0_54, %c0_55] : memref<222x8xf32, #tpu.memory_space<vmem>>, vector<222x8xf32>
    tpu.vector_store %arg5[%c0_54, %c0_55], %47 {strides = array<i32>} : memref<222x8xf32, #tpu.memory_space<vmem>>, vector<222x8xf32>,
    %c32 = arith.constant 32 : index
    %c0_56 = arith.constant 0 : index
    %49 = vector.load %arg1[%c32, %c0_56] : memref<256x4xf32, #tpu.memory_space<vmem>>, vector<222x4xf32>
    %cst_57 = arith.constant dense<0.000000e+00> : vector<222x8xf32>
    %50 = tpu.matmul %49, %13, %cst_57 {dimension_numbers = #tpu.dot_dimension_numbers<[1], [0], [0], [1], [0, 0, 1, 1], [], []>} : vector<222x4xf32>, vector<4x8xf32>, vector<222x8xf32> -> vector<222x8xf32>
    %c0_58 = arith.constant 0 : index
    %c0_59 = arith.constant 0 : index
    %51 = vector.load %arg5[%c0_58, %c0_59] : memref<222x8xf32, #tpu.memory_space<vmem>>, vector<222x8xf32>
    %52 = arith.addf %51, %50 : vector<222x8xf32>
    %c0_60 = arith.constant 0 : index
    %c0_61 = arith.constant 0 : index
    %53 = vector.load %arg5[%c0_60, %c0_61] : memref<222x8xf32, #tpu.memory_space<vmem>>, vector<222x8xf32>
    tpu.vector_store %arg5[%c0_60, %c0_61], %52 {strides = array<i32>} : memref<222x8xf32, #tpu.memory_space<vmem>>, vector<222x8xf32>,
    %c33 = arith.constant 33 : index
    %c0_62 = arith.constant 0 : index
    %54 = vector.load %arg1[%c33, %c0_62] : memref<256x4xf32, #tpu.memory_space<vmem>>, vector<222x4xf32>
    %cst_63 = arith.constant dense<0.000000e+00> : vector<222x8xf32>
    %55 = tpu.matmul %54, %15, %cst_63 {dimension_numbers = #tpu.dot_dimension_numbers<[1], [0], [0], [1], [0, 0, 1, 1], [], []>} : vector<222x4xf32>, vector<4x8xf32>, vector<222x8xf32> -> vector<222x8xf32>
    %c0_64 = arith.constant 0 : index
    %c0_65 = arith.constant 0 : index
    %56 = vector.load %arg5[%c0_64, %c0_65] : memref<222x8xf32, #tpu.memory_space<vmem>>, vector<222x8xf32>
    %57 = arith.addf %56, %55 : vector<222x8xf32>
    %c0_66 = arith.constant 0 : index
    %c0_67 = arith.constant 0 : index
    %58 = vector.load %arg5[%c0_66, %c0_67] : memref<222x8xf32, #tpu.memory_space<vmem>>, vector<222x8xf32>
    tpu.vector_store %arg5[%c0_66, %c0_67], %57 {strides = array<i32>} : memref<222x8xf32, #tpu.memory_space<vmem>>, vector<222x8xf32>,
    %c34 = arith.constant 34 : index
    %c0_68 = arith.constant 0 : index
    %59 = vector.load %arg1[%c34, %c0_68] : memref<256x4xf32, #tpu.memory_space<vmem>>, vector<222x4xf32>
    %cst_69 = arith.constant dense<0.000000e+00> : vector<222x8xf32>
    %60 = tpu.matmul %59, %17, %cst_69 {dimension_numbers = #tpu.dot_dimension_numbers<[1], [0], [0], [1], [0, 0, 1, 1], [], []>} : vector<222x4xf32>, vector<4x8xf32>, vector<222x8xf32> -> vector<222x8xf32>
    %c0_70 = arith.constant 0 : index
    %c0_71 = arith.constant 0 : index
    %61 = vector.load %arg5[%c0_70, %c0_71] : memref<222x8xf32, #tpu.memory_space<vmem>>, vector<222x8xf32>
    %62 = arith.addf %61, %60 : vector<222x8xf32>
    %c0_72 = arith.constant 0 : index
    %c0_73 = arith.constant 0 : index
    %63 = vector.load %arg5[%c0_72, %c0_73] : memref<222x8xf32, #tpu.memory_space<vmem>>, vector<222x8xf32>
    tpu.vector_store %arg5[%c0_72, %c0_73], %62 {strides = array<i32>} : memref<222x8xf32, #tpu.memory_space<vmem>>, vector<222x8xf32>,
    %c0_74 = arith.constant 0 : index
    %c0_75 = arith.constant 0 : index
    %64 = vector.load %arg5[%c0_74, %c0_75] : memref<222x8xf32, #tpu.memory_space<vmem>>, vector<14x8xf32>
    %c16_76 = arith.constant 16 : index
    %c0_77 = arith.constant 0 : index
    %65 = vector.load %arg5[%c16_76, %c0_77] : memref<222x8xf32, #tpu.memory_space<vmem>>, vector<14x8xf32>
    %66 = arith.maximumf %64, %65 : vector<14x8xf32>
    %c32_78 = arith.constant 32 : index
    %c0_79 = arith.constant 0 : index
    %67 = vector.load %arg5[%c32_78, %c0_79] : memref<222x8xf32, #tpu.memory_space<vmem>>, vector<14x8xf32>
    %68 = arith.maximumf %66, %67 : vector<14x8xf32>
    %69 = vector.extract_strided_slice %68 {offsets = [0, 0], sizes = [12, 8], strides = [1, 1]} : vector<14x8xf32> to vector<12x8xf32>
    %70 = vector.extract_strided_slice %68 {offsets = [1, 0], sizes = [12, 8], strides = [1, 1]} : vector<14x8xf32> to vector<12x8xf32>
    %71 = arith.maximumf %69, %70 : vector<12x8xf32>
    %72 = vector.extract_strided_slice %68 {offsets = [2, 0], sizes = [12, 8], strides = [1, 1]} : vector<14x8xf32> to vector<12x8xf32>
    %73 = arith.maximumf %71, %72 : vector<12x8xf32>
    %74 = vector.extract_strided_slice %73 {offsets = [0, 0], sizes = [1, 8], strides = [1, 1]} : vector<12x8xf32> to vector<1x8xf32>
    %75 = vector.extract_strided_slice %73 {offsets = [2, 0], sizes = [1, 8], strides = [1, 1]} : vector<12x8xf32> to vector<1x8xf32>
    %76 = vector.extract_strided_slice %73 {offsets = [4, 0], sizes = [1, 8], strides = [1, 1]} : vector<12x8xf32> to vector<1x8xf32>
    %77 = vector.extract_strided_slice %73 {offsets = [6, 0], sizes = [1, 8], strides = [1, 1]} : vector<12x8xf32> to vector<1x8xf32>
    %78 = vector.extract_strided_slice %73 {offsets = [8, 0], sizes = [1, 8], strides = [1, 1]} : vector<12x8xf32> to vector<1x8xf32>
    %79 = vector.extract_strided_slice %73 {offsets = [10, 0], sizes = [1, 8], strides = [1, 1]} : vector<12x8xf32> to vector<1x8xf32>
    %80 = tpu.concatenate %74, %75, %76, %77, %78, %79 in 0 : vector<1x8xf32>, vector<1x8xf32>, vector<1x8xf32>, vector<1x8xf32>, vector<1x8xf32>, vector<1x8xf32> -> vector<6x8xf32>
    %81 = arith.addf %80, %20 : vector<6x8xf32>
    %cst_80 = arith.constant 0.000000e+00 : f32
    %82 = vector.broadcast %cst_80 : f32 to vector<6x8xf32>
    %83 = arith.maximumf %81, %82 : vector<6x8xf32>
    %c0_81 = arith.constant 0 : index
    %c0_82 = arith.constant 0 : index
    %c0_83 = arith.constant 0 : index
    %c0_84 = arith.constant 0 : index
    %84 = vector.load %arg4[%c0_81, %c0_82, %c0_83, %c0_84] : memref<1x6x6x8xf32, #tpu.memory_space<vmem>>, vector<1x1x6x8xf32>
    %85 = vector.shape_cast %84 : vector<1x1x6x8xf32> to vector<6x8xf32>
    %86 = vector.shape_cast %83 : vector<6x8xf32> to vector<1x1x6x8xf32>
    tpu.vector_store %arg4[%c0_81, %c0_82, %c0_83, %c0_84], %86 {strides = array<i32>} : memref<1x6x6x8xf32, #tpu.memory_space<vmem>>, vector<1x1x6x8xf32>,
    %c32_85 = arith.constant 32 : index
    %c0_86 = arith.constant 0 : index
    %87 = vector.load %arg5[%c32_85, %c0_86] : memref<222x8xf32, #tpu.memory_space<vmem>>, vector<14x8xf32>
    %c48 = arith.constant 48 : index
    %c0_87 = arith.constant 0 : index
    %88 = vector.load %arg5[%c48, %c0_87] : memref<222x8xf32, #tpu.memory_space<vmem>>, vector<14x8xf32>
    %89 = arith.maximumf %87, %88 : vector<14x8xf32>
    %c64 = arith.constant 64 : index
    %c0_88 = arith.constant 0 : index
    %90 = vector.load %arg5[%c64, %c0_88] : memref<222x8xf32, #tpu.memory_space<vmem>>, vector<14x8xf32>
    %91 = arith.maximumf %89, %90 : vector<14x8xf32>
    %92 = vector.extract_strided_slice %91 {offsets = [0, 0], sizes = [12, 8], strides = [1, 1]} : vector<14x8xf32> to vector<12x8xf32>
    %93 = vector.extract_strided_slice %91 {offsets = [1, 0], sizes = [12, 8], strides = [1, 1]} : vector<14x8xf32> to vector<12x8xf32>
    %94 = arith.maximumf %92, %93 : vector<12x8xf32>
    %95 = vector.extract_strided_slice %91 {offsets = [2, 0], sizes = [12, 8], strides = [1, 1]} : vector<14x8xf32> to vector<12x8xf32>
    %96 = arith.maximumf %94, %95 : vector<12x8xf32>
    %97 = vector.extract_strided_slice %96 {offsets = [0, 0], sizes = [1, 8], strides = [1, 1]} : vector<12x8xf32> to vector<1x8xf32>
    %98 = vector.extract_strided_slice %96 {offsets = [2, 0], sizes = [1, 8], strides = [1, 1]} : vector<12x8xf32> to vector<1x8xf32>
    %99 = vector.extract_strided_slice %96 {offsets = [4, 0], sizes = [1, 8], strides = [1, 1]} : vector<12x8xf32> to vector<1x8xf32>
    %100 = vector.extract_strided_slice %96 {offsets = [6, 0], sizes = [1, 8], strides = [1, 1]} : vector<12x8xf32> to vector<1x8xf32>
    %101 = vector.extract_strided_slice %96 {offsets = [8, 0], sizes = [1, 8], strides = [1, 1]} : vector<12x8xf32> to vector<1x8xf32>
    %102 = vector.extract_strided_slice %96 {offsets = [10, 0], sizes = [1, 8], strides = [1, 1]} : vector<12x8xf32> to vector<1x8xf32>
    %103 = tpu.concatenate %97, %98, %99, %100, %101, %102 in 0 : vector<1x8xf32>, vector<1x8xf32>, vector<1x8xf32>, vector<1x8xf32>, vector<1x8xf32>, vector<1x8xf32> -> vector<6x8xf32>
    %104 = arith.addf %103, %20 : vector<6x8xf32>
    %cst_89 = arith.constant 0.000000e+00 : f32
    %105 = vector.broadcast %cst_89 : f32 to vector<6x8xf32>
    %106 = arith.maximumf %104, %105 : vector<6x8xf32>
    %c0_90 = arith.constant 0 : index
    %c1_91 = arith.constant 1 : index
    %c0_92 = arith.constant 0 : index
    %c0_93 = arith.constant 0 : index
    %107 = vector.load %arg4[%c0_90, %c1_91, %c0_92, %c0_93] : memref<1x6x6x8xf32, #tpu.memory_space<vmem>>, vector<1x1x6x8xf32>
    %108 = vector.shape_cast %107 : vector<1x1x6x8xf32> to vector<6x8xf32>
    %109 = vector.shape_cast %106 : vector<6x8xf32> to vector<1x1x6x8xf32>
    tpu.vector_store %arg4[%c0_90, %c1_91, %c0_92, %c0_93], %109 {strides = array<i32>} : memref<1x6x6x8xf32, #tpu.memory_space<vmem>>, vector<1x1x6x8xf32>,
    %c64_94 = arith.constant 64 : index
    %c0_95 = arith.constant 0 : index
    %110 = vector.load %arg5[%c64_94, %c0_95] : memref<222x8xf32, #tpu.memory_space<vmem>>, vector<14x8xf32>
    %c80 = arith.constant 80 : index
    %c0_96 = arith.constant 0 : index
    %111 = vector.load %arg5[%c80, %c0_96] : memref<222x8xf32, #tpu.memory_space<vmem>>, vector<14x8xf32>
    %112 = arith.maximumf %110, %111 : vector<14x8xf32>
    %c96 = arith.constant 96 : index
    %c0_97 = arith.constant 0 : index
    %113 = vector.load %arg5[%c96, %c0_97] : memref<222x8xf32, #tpu.memory_space<vmem>>, vector<14x8xf32>
    %114 = arith.maximumf %112, %113 : vector<14x8xf32>
    %115 = vector.extract_strided_slice %114 {offsets = [0, 0], sizes = [12, 8], strides = [1, 1]} : vector<14x8xf32> to vector<12x8xf32>
    %116 = vector.extract_strided_slice %114 {offsets = [1, 0], sizes = [12, 8], strides = [1, 1]} : vector<14x8xf32> to vector<12x8xf32>
    %117 = arith.maximumf %115, %116 : vector<12x8xf32>
    %118 = vector.extract_strided_slice %114 {offsets = [2, 0], sizes = [12, 8], strides = [1, 1]} : vector<14x8xf32> to vector<12x8xf32>
    %119 = arith.maximumf %117, %118 : vector<12x8xf32>
    %120 = vector.extract_strided_slice %119 {offsets = [0, 0], sizes = [1, 8], strides = [1, 1]} : vector<12x8xf32> to vector<1x8xf32>
    %121 = vector.extract_strided_slice %119 {offsets = [2, 0], sizes = [1, 8], strides = [1, 1]} : vector<12x8xf32> to vector<1x8xf32>
    %122 = vector.extract_strided_slice %119 {offsets = [4, 0], sizes = [1, 8], strides = [1, 1]} : vector<12x8xf32> to vector<1x8xf32>
    %123 = vector.extract_strided_slice %119 {offsets = [6, 0], sizes = [1, 8], strides = [1, 1]} : vector<12x8xf32> to vector<1x8xf32>
    %124 = vector.extract_strided_slice %119 {offsets = [8, 0], sizes = [1, 8], strides = [1, 1]} : vector<12x8xf32> to vector<1x8xf32>
    %125 = vector.extract_strided_slice %119 {offsets = [10, 0], sizes = [1, 8], strides = [1, 1]} : vector<12x8xf32> to vector<1x8xf32>
    %126 = tpu.concatenate %120, %121, %122, %123, %124, %125 in 0 : vector<1x8xf32>, vector<1x8xf32>, vector<1x8xf32>, vector<1x8xf32>, vector<1x8xf32>, vector<1x8xf32> -> vector<6x8xf32>
    %127 = arith.addf %126, %20 : vector<6x8xf32>
    %cst_98 = arith.constant 0.000000e+00 : f32
    %128 = vector.broadcast %cst_98 : f32 to vector<6x8xf32>
    %129 = arith.maximumf %127, %128 : vector<6x8xf32>
    %c0_99 = arith.constant 0 : index
    %c2_100 = arith.constant 2 : index
    %c0_101 = arith.constant 0 : index
    %c0_102 = arith.constant 0 : index
    %130 = vector.load %arg4[%c0_99, %c2_100, %c0_101, %c0_102] : memref<1x6x6x8xf32, #tpu.memory_space<vmem>>, vector<1x1x6x8xf32>
    %131 = vector.shape_cast %130 : vector<1x1x6x8xf32> to vector<6x8xf32>
    %132 = vector.shape_cast %129 : vector<6x8xf32> to vector<1x1x6x8xf32>
    tpu.vector_store %arg4[%c0_99, %c2_100, %c0_101, %c0_102], %132 {strides = array<i32>} : memref<1x6x6x8xf32, #tpu.memory_space<vmem>>, vector<1x1x6x8xf32>,
    %c96_103 = arith.constant 96 : index
    %c0_104 = arith.constant 0 : index
    %133 = vector.load %arg5[%c96_103, %c0_104] : memref<222x8xf32, #tpu.memory_space<vmem>>, vector<14x8xf32>
    %c112 = arith.constant 112 : index
    %c0_105 = arith.constant 0 : index
    %134 = vector.load %arg5[%c112, %c0_105] : memref<222x8xf32, #tpu.memory_space<vmem>>, vector<14x8xf32>
    %135 = arith.maximumf %133, %134 : vector<14x8xf32>
    %c128 = arith.constant 128 : index
    %c0_106 = arith.constant 0 : index
    %136 = vector.load %arg5[%c128, %c0_106] : memref<222x8xf32, #tpu.memory_space<vmem>>, vector<14x8xf32>
    %137 = arith.maximumf %135, %136 : vector<14x8xf32>
    %138 = vector.extract_strided_slice %137 {offsets = [0, 0], sizes = [12, 8], strides = [1, 1]} : vector<14x8xf32> to vector<12x8xf32>
    %139 = vector.extract_strided_slice %137 {offsets = [1, 0], sizes = [12, 8], strides = [1, 1]} : vector<14x8xf32> to vector<12x8xf32>
    %140 = arith.maximumf %138, %139 : vector<12x8xf32>
    %141 = vector.extract_strided_slice %137 {offsets = [2, 0], sizes = [12, 8], strides = [1, 1]} : vector<14x8xf32> to vector<12x8xf32>
    %142 = arith.maximumf %140, %141 : vector<12x8xf32>
    %143 = vector.extract_strided_slice %142 {offsets = [0, 0], sizes = [1, 8], strides = [1, 1]} : vector<12x8xf32> to vector<1x8xf32>
    %144 = vector.extract_strided_slice %142 {offsets = [2, 0], sizes = [1, 8], strides = [1, 1]} : vector<12x8xf32> to vector<1x8xf32>
    %145 = vector.extract_strided_slice %142 {offsets = [4, 0], sizes = [1, 8], strides = [1, 1]} : vector<12x8xf32> to vector<1x8xf32>
    %146 = vector.extract_strided_slice %142 {offsets = [6, 0], sizes = [1, 8], strides = [1, 1]} : vector<12x8xf32> to vector<1x8xf32>
    %147 = vector.extract_strided_slice %142 {offsets = [8, 0], sizes = [1, 8], strides = [1, 1]} : vector<12x8xf32> to vector<1x8xf32>
    %148 = vector.extract_strided_slice %142 {offsets = [10, 0], sizes = [1, 8], strides = [1, 1]} : vector<12x8xf32> to vector<1x8xf32>
    %149 = tpu.concatenate %143, %144, %145, %146, %147, %148 in 0 : vector<1x8xf32>, vector<1x8xf32>, vector<1x8xf32>, vector<1x8xf32>, vector<1x8xf32>, vector<1x8xf32> -> vector<6x8xf32>
    %150 = arith.addf %149, %20 : vector<6x8xf32>
    %cst_107 = arith.constant 0.000000e+00 : f32
    %151 = vector.broadcast %cst_107 : f32 to vector<6x8xf32>
    %152 = arith.maximumf %150, %151 : vector<6x8xf32>
    %c0_108 = arith.constant 0 : index
    %c3_109 = arith.constant 3 : index
    %c0_110 = arith.constant 0 : index
    %c0_111 = arith.constant 0 : index
    %153 = vector.load %arg4[%c0_108, %c3_109, %c0_110, %c0_111] : memref<1x6x6x8xf32, #tpu.memory_space<vmem>>, vector<1x1x6x8xf32>
    %154 = vector.shape_cast %153 : vector<1x1x6x8xf32> to vector<6x8xf32>
    %155 = vector.shape_cast %152 : vector<6x8xf32> to vector<1x1x6x8xf32>
    tpu.vector_store %arg4[%c0_108, %c3_109, %c0_110, %c0_111], %155 {strides = array<i32>} : memref<1x6x6x8xf32, #tpu.memory_space<vmem>>, vector<1x1x6x8xf32>,
    %c128_112 = arith.constant 128 : index
    %c0_113 = arith.constant 0 : index
    %156 = vector.load %arg5[%c128_112, %c0_113] : memref<222x8xf32, #tpu.memory_space<vmem>>, vector<14x8xf32>
    %c144 = arith.constant 144 : index
    %c0_114 = arith.constant 0 : index
    %157 = vector.load %arg5[%c144, %c0_114] : memref<222x8xf32, #tpu.memory_space<vmem>>, vector<14x8xf32>
    %158 = arith.maximumf %156, %157 : vector<14x8xf32>
    %c160 = arith.constant 160 : index
    %c0_115 = arith.constant 0 : index
    %159 = vector.load %arg5[%c160, %c0_115] : memref<222x8xf32, #tpu.memory_space<vmem>>, vector<14x8xf32>
    %160 = arith.maximumf %158, %159 : vector<14x8xf32>
    %161 = vector.extract_strided_slice %160 {offsets = [0, 0], sizes = [12, 8], strides = [1, 1]} : vector<14x8xf32> to vector<12x8xf32>
    %162 = vector.extract_strided_slice %160 {offsets = [1, 0], sizes = [12, 8], strides = [1, 1]} : vector<14x8xf32> to vector<12x8xf32>
    %163 = arith.maximumf %161, %162 : vector<12x8xf32>
    %164 = vector.extract_strided_slice %160 {offsets = [2, 0], sizes = [12, 8], strides = [1, 1]} : vector<14x8xf32> to vector<12x8xf32>
    %165 = arith.maximumf %163, %164 : vector<12x8xf32>
    %166 = vector.extract_strided_slice %165 {offsets = [0, 0], sizes = [1, 8], strides = [1, 1]} : vector<12x8xf32> to vector<1x8xf32>
    %167 = vector.extract_strided_slice %165 {offsets = [2, 0], sizes = [1, 8], strides = [1, 1]} : vector<12x8xf32> to vector<1x8xf32>
    %168 = vector.extract_strided_slice %165 {offsets = [4, 0], sizes = [1, 8], strides = [1, 1]} : vector<12x8xf32> to vector<1x8xf32>
    %169 = vector.extract_strided_slice %165 {offsets = [6, 0], sizes = [1, 8], strides = [1, 1]} : vector<12x8xf32> to vector<1x8xf32>
    %170 = vector.extract_strided_slice %165 {offsets = [8, 0], sizes = [1, 8], strides = [1, 1]} : vector<12x8xf32> to vector<1x8xf32>
    %171 = vector.extract_strided_slice %165 {offsets = [10, 0], sizes = [1, 8], strides = [1, 1]} : vector<12x8xf32> to vector<1x8xf32>
    %172 = tpu.concatenate %166, %167, %168, %169, %170, %171 in 0 : vector<1x8xf32>, vector<1x8xf32>, vector<1x8xf32>, vector<1x8xf32>, vector<1x8xf32>, vector<1x8xf32> -> vector<6x8xf32>
    %173 = arith.addf %172, %20 : vector<6x8xf32>
    %cst_116 = arith.constant 0.000000e+00 : f32
    %174 = vector.broadcast %cst_116 : f32 to vector<6x8xf32>
    %175 = arith.maximumf %173, %174 : vector<6x8xf32>
    %c0_117 = arith.constant 0 : index
    %c4_118 = arith.constant 4 : index
    %c0_119 = arith.constant 0 : index
    %c0_120 = arith.constant 0 : index
    %176 = vector.load %arg4[%c0_117, %c4_118, %c0_119, %c0_120] : memref<1x6x6x8xf32, #tpu.memory_space<vmem>>, vector<1x1x6x8xf32>
    %177 = vector.shape_cast %176 : vector<1x1x6x8xf32> to vector<6x8xf32>
    %178 = vector.shape_cast %175 : vector<6x8xf32> to vector<1x1x6x8xf32>
    tpu.vector_store %arg4[%c0_117, %c4_118, %c0_119, %c0_120], %178 {strides = array<i32>} : memref<1x6x6x8xf32, #tpu.memory_space<vmem>>, vector<1x1x6x8xf32>,
    %c160_121 = arith.constant 160 : index
    %c0_122 = arith.constant 0 : index
    %179 = vector.load %arg5[%c160_121, %c0_122] : memref<222x8xf32, #tpu.memory_space<vmem>>, vector<14x8xf32>
    %c176 = arith.constant 176 : index
    %c0_123 = arith.constant 0 : index
    %180 = vector.load %arg5[%c176, %c0_123] : memref<222x8xf32, #tpu.memory_space<vmem>>, vector<14x8xf32>
    %181 = arith.maximumf %179, %180 : vector<14x8xf32>
    %c192 = arith.constant 192 : index
    %c0_124 = arith.constant 0 : index
    %182 = vector.load %arg5[%c192, %c0_124] : memref<222x8xf32, #tpu.memory_space<vmem>>, vector<14x8xf32>
    %183 = arith.maximumf %181, %182 : vector<14x8xf32>
    %184 = vector.extract_strided_slice %183 {offsets = [0, 0], sizes = [12, 8], strides = [1, 1]} : vector<14x8xf32> to vector<12x8xf32>
    %185 = vector.extract_strided_slice %183 {offsets = [1, 0], sizes = [12, 8], strides = [1, 1]} : vector<14x8xf32> to vector<12x8xf32>
    %186 = arith.maximumf %184, %185 : vector<12x8xf32>
    %187 = vector.extract_strided_slice %183 {offsets = [2, 0], sizes = [12, 8], strides = [1, 1]} : vector<14x8xf32> to vector<12x8xf32>
    %188 = arith.maximumf %186, %187 : vector<12x8xf32>
    %189 = vector.extract_strided_slice %188 {offsets = [0, 0], sizes = [1, 8], strides = [1, 1]} : vector<12x8xf32> to vector<1x8xf32>
    %190 = vector.extract_strided_slice %188 {offsets = [2, 0], sizes = [1, 8], strides = [1, 1]} : vector<12x8xf32> to vector<1x8xf32>
    %191 = vector.extract_strided_slice %188 {offsets = [4, 0], sizes = [1, 8], strides = [1, 1]} : vector<12x8xf32> to vector<1x8xf32>
    %192 = vector.extract_strided_slice %188 {offsets = [6, 0], sizes = [1, 8], strides = [1, 1]} : vector<12x8xf32> to vector<1x8xf32>
    %193 = vector.extract_strided_slice %188 {offsets = [8, 0], sizes = [1, 8], strides = [1, 1]} : vector<12x8xf32> to vector<1x8xf32>
    %194 = vector.extract_strided_slice %188 {offsets = [10, 0], sizes = [1, 8], strides = [1, 1]} : vector<12x8xf32> to vector<1x8xf32>
    %195 = tpu.concatenate %189, %190, %191, %192, %193, %194 in 0 : vector<1x8xf32>, vector<1x8xf32>, vector<1x8xf32>, vector<1x8xf32>, vector<1x8xf32>, vector<1x8xf32> -> vector<6x8xf32>
    %196 = arith.addf %195, %20 : vector<6x8xf32>
    %cst_125 = arith.constant 0.000000e+00 : f32
    %197 = vector.broadcast %cst_125 : f32 to vector<6x8xf32>
    %198 = arith.maximumf %196, %197 : vector<6x8xf32>
    %c0_126 = arith.constant 0 : index
    %c5_127 = arith.constant 5 : index
    %c0_128 = arith.constant 0 : index
    %c0_129 = arith.constant 0 : index
    %199 = vector.load %arg4[%c0_126, %c5_127, %c0_128, %c0_129] : memref<1x6x6x8xf32, #tpu.memory_space<vmem>>, vector<1x1x6x8xf32>
    %200 = vector.shape_cast %199 : vector<1x1x6x8xf32> to vector<6x8xf32>
    %201 = vector.shape_cast %198 : vector<6x8xf32> to vector<1x1x6x8xf32>
    tpu.vector_store %arg4[%c0_126, %c5_127, %c0_128, %c0_129], %201 {strides = array<i32>} : memref<1x6x6x8xf32, #tpu.memory_space<vmem>>, vector<1x1x6x8xf32>,
    return
  }
  func.func @transform_0(%arg0: i32) -> (i32, i32) {
    %c0_i32 = arith.constant 0 : i32
    %c0_i32_0 = arith.constant 0 : i32
    return %arg0, %c0_i32 : i32, i32
  }
  func.func @transform_1(%arg0: i32) -> (i32, i32, i32) {
    %c0_i32 = arith.constant 0 : i32
    %c0_i32_0 = arith.constant 0 : i32
    %c0_i32_1 = arith.constant 0 : i32
    %c0_i32_2 = arith.constant 0 : i32
    return %c0_i32, %c0_i32_0, %c0_i32_1 : i32, i32, i32
  }
  func.func @transform_2(%arg0: i32) -> (i32, i32) {
    %c0_i32 = arith.constant 0 : i32
    %c0_i32_0 = arith.constant 0 : i32
    %c0_i32_1 = arith.constant 0 : i32
    return %c0_i32, %c0_i32_0 : i32, i32
  }
  func.func @transform_3(%arg0: i32) -> (i32, i32, i32, i32) {
    %c0_i32 = arith.constant 0 : i32
    %c0_i32_0 = arith.constant 0 : i32
    %c0_i32_1 = arith.constant 0 : i32
    %c0_i32_2 = arith.constant 0 : i32
    return %arg0, %c0_i32, %c0_i32_0, %c0_i32_1 : i32, i32, i32, i32
  }
}

</mosaic_0001>

<llo_original>
// kernel: tpu_custom_call.1
$region0: #{tpu_custom_call.1}
  #allocation0 [shape = 'u32[]', space=smem, size = 0x4, offset = 0x4, fixed_abs, tag = 'smem constant byte address 0x4 - core index']
  #allocation1 [shape = 'u32[144,128]{1,0:T(1,128)}', space=vmem, size = 0x12000, scoped, tag = 'internal scratch']
  #allocation2 [shape = 'f32[222,8]{1,0:T(8,128)}', space=vmem, size = 0x1c000, scoped, tag = 'scratch operand']
  %s0 = inlined_call_operand.vmem [shape: f32[512,4], index: 0, kind: input, shape index: {}]
  %s1 = inlined_call_operand.vmem [shape: f32[9,4,8], index: 1, kind: input, shape index: {}]
  %s2 = inlined_call_operand.vmem [shape: f32[1,8], index: 2, kind: input, shape index: {}]
  %s3 = inlined_call_operand.vmem [shape: f32[2,6,6,8], index: 3, kind: output, shape index: {}]
  %s4 = sld [smem:[#allocation0]]
  $region45: #{tpu_custom_call.1} parent=0
    _
  %s6 = ssub.s32 1, %s4
  %s7 = scalar_select 0, %s6, %s4
  loop: start=0, step=1, limit=4
  $region2: #{tpu_custom_call.1} parent=0 // loop_pre_header
    _
  $region3: #{tpu_custom_call.1} parent=0 // loop_header
    %s9 = sphi 0, %s13
    %p10 = scmp.ge.s32.totalorder %s9, 4
    %s19 = sphi 0, %s21
    %s22 = sphi 0, %s19
    %s23 = sphi 0, %s22
    %s39 = sphi 0, %s23
    %s43 = sphi 0, %s43
    %s45 = sphi 0, %s43
    %s46 = sphi 0, %s45
    %s60 = sphi 0, %s46
    %s64 = sphi 0, %s64
    %s66 = sphi 0, %s64
    %s67 = sphi 0, %s66
    %s81 = sphi 0, %s67
    %s87 = sphi 0, %s89
    %s90 = sphi 0, %s87
    %s91 = sphi 0, %s90
    %s107 = sphi 0, %s91
  $region4: #{tpu_custom_call.1} parent=0 // loop_header_branch
    %12 = sbr.rel (%p10) target = $region8
  $region5: #{tpu_custom_call.1} parent=0 // loop_body
    %s14 = ssub.s32 %s9, 1
    %s15 = ssub.s32 %s9, 2
    %s16 = sadd.s32 %s9, 1
    %s17 = ssub.s32 %s9, %s16
    %p18 = scmp.eq.s32.totalorder %s17, 0
    %s20 = sadd.s32 %s19, 1
    %s21 = scalar_select %p18, %s19, %s20
    %p24 = pneg %p18
    %p25 = scmp.eq.s32.totalorder %s9, 1
    %p26 = por %p24, %p25
    %p27 = scmp.ne.s32.totalorder %s19, %s22
    %p28 = scmp.eq.s32.totalorder %s9, 0
    %p29 = por %p27, %p28
    %p30 = scmp.ne.s32.totalorder %s19, %s22
    %p31 = scmp.eq.s32.totalorder %s14, 1
    %p32 = por %p30, %p31
    %p33 = scmp.ne.s32.totalorder %s22, %s23
    %p34 = scmp.eq.s32.totalorder %s14, 0
    %p35 = por %p33, %p34
    %p36 = scmp.ne.s32.totalorder %s22, %s23
    %p37 = scmp.eq.s32.totalorder %s15, 1
    %p38 = por %p36, %p37
    %p40 = scmp.ne.s32.totalorder %s23, %s39
    %p41 = scmp.eq.s32.totalorder %s15, 0
    %p42 = por %p40, %p41
    %s44 = sadd.s32 %s43, 1
    %p47 = scmp.eq.s32.totalorder %s9, 1
    %p48 = scmp.ne.s32.totalorder %s43, %s45
    %p49 = scmp.eq.s32.totalorder %s9, 0
    %p50 = por %p48, %p49
    %p51 = scmp.ne.s32.totalorder %s43, %s45
    %p52 = scmp.eq.s32.totalorder %s14, 1
    %p53 = por %p51, %p52
    %p54 = scmp.ne.s32.totalorder %s45, %s46
    %p55 = scmp.eq.s32.totalorder %s14, 0
    %p56 = por %p54, %p55
    %p57 = scmp.ne.s32.totalorder %s45, %s46
    %p58 = scmp.eq.s32.totalorder %s15, 1
    %p59 = por %p57, %p58
    %p61 = scmp.ne.s32.totalorder %s46, %s60
    %p62 = scmp.eq.s32.totalorder %s15, 0
    %p63 = por %p61, %p62
    %s65 = sadd.s32 %s64, 1
    %p68 = scmp.eq.s32.totalorder %s9, 1
    %p69 = scmp.ne.s32.totalorder %s64, %s66
    %p70 = scmp.eq.s32.totalorder %s9, 0
    %p71 = por %p69, %p70
    %p72 = scmp.ne.s32.totalorder %s64, %s66
    %p73 = scmp.eq.s32.totalorder %s14, 1
    %p74 = por %p72, %p73
    %p75 = scmp.ne.s32.totalorder %s66, %s67
    %p76 = scmp.eq.s32.totalorder %s14, 0
    %p77 = por %p75, %p76
    %p78 = scmp.ne.s32.totalorder %s66, %s67
    %p79 = scmp.eq.s32.totalorder %s15, 1
    %p80 = por %p78, %p79
    %p82 = scmp.ne.s32.totalorder %s67, %s81
    %p83 = scmp.eq.s32.totalorder %s15, 0
    %p84 = por %p82, %p83
    %s85 = ssub.s32 %s9, %s16
    %p86 = scmp.eq.s32.totalorder %s85, 0
    %s88 = sadd.s32 %s87, 1
    %s89 = scalar_select %p86, %s87, %s88
    %p92 = pneg %p86
    %p93 = scmp.eq.s32.totalorder %s9, 1
    %p94 = por %p92, %p93
    %p95 = scmp.ne.s32.totalorder %s87, %s90
    %p96 = scmp.eq.s32.totalorder %s9, 0
    %p97 = por %p95, %p96
    %p98 = scmp.ne.s32.totalorder %s87, %s90
    %p99 = scmp.eq.s32.totalorder %s14, 1
    %p100 = por %p98, %p99
    %p101 = scmp.ne.s32.totalorder %s90, %s91
    %p102 = scmp.eq.s32.totalorder %s14, 0
    %p103 = por %p101, %p102
    %p104 = scmp.ne.s32.totalorder %s90, %s91
    %p105 = scmp.eq.s32.totalorder %s15, 1
    %p106 = por %p104, %p105
    %p108 = scmp.ne.s32.totalorder %s91, %s107
    %p109 = scmp.eq.s32.totalorder %s15, 0
    %p110 = por %p108, %p109
    %p111 = scmp.le.s32.totalorder 1, %s9
    %p112 = scmp.lt.s32.totalorder %s9, 3
    %p113 = pnand %p111, %p112
    %p114 = pneg %p113
    // Predicated region
    $region9: #{tpu_custom_call.1} parent=5 // pred_check
      _
    $region10: #{tpu_custom_call.1} parent=5 // pred_check_branch
      %116 = sbr.rel (%p113) target = $region12
    $region11: #{tpu_custom_call.1} parent=5 // pred_region
      %s117 = ssub.s32 %s9, 1
      // Predicated region
      $region13: #{tpu_custom_call.1} parent=11 // pred_check
        %p118 = pneg %p56
      $region14: #{tpu_custom_call.1} parent=11 // pred_check_branch
        %120 = sbr.rel (%p118) target = $region16
      $region15: #{tpu_custom_call.1} parent=11 // pred_region
        _
      $region16: #{tpu_custom_call.1} parent=11 // pred_fallthru
        _
      // Predicated region
      $region17: #{tpu_custom_call.1} parent=11 // pred_check
        %p121 = pneg %p77
      $region18: #{tpu_custom_call.1} parent=11 // pred_check_branch
        %123 = sbr.rel (%p121) target = $region20
      $region19: #{tpu_custom_call.1} parent=11 // pred_region
        _
      $region20: #{tpu_custom_call.1} parent=11 // pred_fallthru
        _
    $region12: #{tpu_custom_call.1} parent=5 // pred_fallthru
      _
    %p124 = scmp.lt.s32.totalorder %s9, 2
    // Predicated region
    $region21: #{tpu_custom_call.1} parent=5 // pred_check
      %p125 = pneg %p124
    $region22: #{tpu_custom_call.1} parent=5 // pred_check_branch
      %127 = sbr.rel (%p125) target = $region24
    $region23: #{tpu_custom_call.1} parent=5 // pred_region
      // Predicated region
      $region25: #{tpu_custom_call.1} parent=23 // pred_check
        %p128 = pneg %p29
      $region26: #{tpu_custom_call.1} parent=23 // pred_check_branch
        %130 = sbr.rel (%p128) target = $region28
      $region27: #{tpu_custom_call.1} parent=23 // pred_region
        %s131 = smul.u32 32, %s9
        %p132 = scmp.lt.s32.totalorder %s131, 63
        %s133 = scalar_select %p132, %s131, 63
        %s134 = smul.addr %s133, 8
        %s135 = scalar_lea.vmem %s0, %s134
        %s136 = smul.u32 32, %s9
      $region28: #{tpu_custom_call.1} parent=23 // pred_fallthru
        _
    $region24: #{tpu_custom_call.1} parent=5 // pred_fallthru
      _
    %p137 = scmp.le.s32.totalorder 1, %s9
    %p138 = scmp.lt.s32.totalorder %s9, 3
    %p139 = pnand %p137, %p138
    %p140 = pneg %p139
    // Predicated region
    $region29: #{tpu_custom_call.1} parent=5 // pred_check
      _
    $region30: #{tpu_custom_call.1} parent=5 // pred_check_branch
      %142 = sbr.rel (%p139) target = $region32
    $region31: #{tpu_custom_call.1} parent=5 // pred_region
      %s143 = ssub.s32 %s9, 1
      %s144 = smul.u32 32, %s14
      %p145 = scmp.lt.s32.totalorder %s144, 63
      %s146 = scalar_select %p145, %s144, 63
      %s147 = smul.addr %s146, 8
      %s148 = scalar_lea.vmem %s0, %s147
      %p149 = pneg %p35
      %p150 = pneg %p32
      %p151 = pneg %p56
      %p152 = pneg %p53
      %p153 = pneg %p77
      %p154 = pneg %p74
      %p155 = pneg %p103
      %p156 = pneg %p100
      %p157 = scmp.lt.s32.totalorder %s14, 1
      %s158 = scalar_select %p157, %s14, 1
      %s159 = smul.addr %s158, 6
      %s160 = smul.addr %s159, 8
      %s161 = scalar_lea.vmem %s3, %s160
      %s162 = smul.u32 32, %s14
      %p163 = scmp.lt.s32.totalorder %s162, 63
      %s164 = scalar_select %p163, %s162, 63
      %s165 = smul.addr %s164, 8
      %s166 = scalar_lea.vmem %s0, %s165
      %s167 = smul.u32 32, %s14
      %p168 = scmp.lt.s32.totalorder %s14, 1
      %s169 = scalar_select %p168, %s14, 1
      %s170 = smul.addr %s169, 6
      %s171 = smul.addr %s170, 8
      %s172 = scalar_lea.vmem %s3, %s171
      %v173 = vld [vmem:[%s1] sm:$0xf]
      %s174 = scalar_lea.vmem %s1, 4
      %v175 = vld [vmem:[%s174] sm:$0xf]
      %s176 = scalar_lea.vmem %s1, 8
      %v177 = vld [vmem:[%s176] sm:$0xf]
      %s178 = scalar_lea.vmem %s1, 12
      %v179 = vld [vmem:[%s178] sm:$0xf]
      %s180 = scalar_lea.vmem %s1, 16
      %v181 = vld [vmem:[%s180] sm:$0xf]
      %s182 = scalar_lea.vmem %s1, 20
      %v183 = vld [vmem:[%s182] sm:$0xf]
      %s184 = scalar_lea.vmem %s1, 24
      %v185 = vld [vmem:[%s184] sm:$0xf]
      %s186 = scalar_lea.vmem %s1, 28
      %v187 = vld [vmem:[%s186] sm:$0xf]
      %s188 = scalar_lea.vmem %s1, 32
      %v189 = vld [vmem:[%s188] sm:$0xf]
      %v190 = vld [vmem:[%s2] sm:$0x1]
      %v192 = vlaneseq
      %v193 = vshrl.u32 %v192, 7
      %v194 = vsub.s32 0, %v193
      %v195 = vrot.slane %v190, %v194
      %v197 = vld [vmem:[%s166] sm:$0xff]
      %v198 = vld [vmem:[%s166 + $0x8] sm:$0xff]
      %v199 = vld [vmem:[%s166 + $0x10] sm:$0xff]
      %v200 = vld [vmem:[%s166 + $0x18] sm:$0xff]
      %v201 = vld [vmem:[%s166 + $0x20] sm:$0xff]
      %v202 = vld [vmem:[%s166 + $0x28] sm:$0xff]
      %v203 = vld [vmem:[%s166 + $0x30] sm:$0xff]
      %v204 = vld [vmem:[%s166 + $0x38] sm:$0xff]
      %v205 = vld [vmem:[%s166 + $0x40] sm:$0xff]
      %v206 = vld [vmem:[%s166 + $0x48] sm:$0xff]
      %v207 = vld [vmem:[%s166 + $0x50] sm:$0xff]
      %v208 = vld [vmem:[%s166 + $0x58] sm:$0xff]
      %v209 = vld [vmem:[%s166 + $0x60] sm:$0xff]
      %v210 = vld [vmem:[%s166 + $0x68] sm:$0xff]
      %v211 = vld [vmem:[%s166 + $0x70] sm:$0xff]
      %v212 = vld [vmem:[%s166 + $0x78] sm:$0xff]
      %v213 = vld [vmem:[%s166 + $0x80] sm:$0xff]
      %v214 = vld [vmem:[%s166 + $0x88] sm:$0xff]
      %v215 = vld [vmem:[%s166 + $0x90] sm:$0xff]
      %v216 = vld [vmem:[%s166 + $0x98] sm:$0xff]
      %v217 = vld [vmem:[%s166 + $0xa0] sm:$0xff]
      %v218 = vld [vmem:[%s166 + $0xa8] sm:$0xff]
      %v219 = vld [vmem:[%s166 + $0xb0] sm:$0xff]
      %v220 = vld [vmem:[%s166 + $0xb8] sm:$0xff]
      %v221 = vld [vmem:[%s166 + $0xc0] sm:$0xff]
      %v222 = vld [vmem:[%s166 + $0xc8] sm:$0xff]
      %v223 = vld [vmem:[%s166 + $0xd0] sm:$0xff]
      %v224 = vld [vmem:[%s166 + $0xd8] sm:$0x3f]
      %vm225 = vcmask 31744
      %v227 = vsel %vm225, %v197, 0
      %v230 = vsel %vm225, %v198, 0
      %v233 = vsel %vm225, %v199, 0
      %v236 = vsel %vm225, %v200, 0
      %v239 = vsel %vm225, %v201, 0
      %v242 = vsel %vm225, %v202, 0
      %v245 = vsel %vm225, %v203, 0
      %v248 = vsel %vm225, %v204, 0
      %v251 = vsel %vm225, %v205, 0
      %v254 = vsel %vm225, %v206, 0
      %v257 = vsel %vm225, %v207, 0
      %v260 = vsel %vm225, %v208, 0
      %v263 = vsel %vm225, %v209, 0
      %v266 = vsel %vm225, %v210, 0
      %v269 = vsel %vm225, %v211, 0
      %v272 = vsel %vm225, %v212, 0
      %v275 = vsel %vm225, %v213, 0
      %v278 = vsel %vm225, %v214, 0
      %v281 = vsel %vm225, %v215, 0
      %v284 = vsel %vm225, %v216, 0
      %v287 = vsel %vm225, %v217, 0
      %v290 = vsel %vm225, %v218, 0
      %v293 = vsel %vm225, %v219, 0
      %v296 = vsel %vm225, %v220, 0
      %v299 = vsel %vm225, %v221, 0
      %v302 = vsel %vm225, %v222, 0
      %v305 = vsel %vm225, %v223, 0
      %v308 = vsel %vm225, %v224, 0
      %vm310 = vcmask 1043456
      %v312 = vsel %vm310, %v173, 0
      %314 = vmatprep.subr.mxu0 0.0
      %315 = vmatpush1.msra.mxu0 %v312
      %316 = vmatprep.subr.mxu0 0.0
      %317 = vmatpush1.msra.mxu0 0.0
      %318 = vmatprep.subr.mxu0 0.0
      %319 = vmatpush1.msra.mxu0 0.0
      %320 = vmatprep.subr.mxu0 0.0
      %321 = vmatpush1.msra.mxu0 0.0
      %322 = vmatprep.subr.mxu0 0.0
      %323 = vmatpush1.msra.mxu0 0.0
      %324 = vmatprep.subr.mxu0 0.0
      %325 = vmatpush1.msra.mxu0 0.0
      %326 = vmatprep.subr.mxu0 0.0
      %327 = vmatpush1.msra.mxu0 0.0
      %328 = vmatprep.subr.mxu0 0.0
      %329 = vmatpush1.msra.mxu0 0.0
      %330 = vmatprep.subr.mxu0 0.0
      %331 = vmatpush1.msra.mxu0 0.0
      %332 = vmatprep.subr.mxu0 0.0
      %333 = vmatpush1.msra.mxu0 0.0
      %334 = vmatprep.subr.mxu0 0.0
      %335 = vmatpush1.msra.mxu0 0.0
      %336 = vmatprep.subr.mxu0 0.0
      %337 = vmatpush1.msra.mxu0 0.0
      %338 = vmatprep.subr.mxu0 0.0
      %339 = vmatpush1.msra.mxu0 0.0
      %340 = vmatprep.subr.mxu0 0.0
      %341 = vmatpush1.msra.mxu0 0.0
      %342 = vmatprep.subr.mxu0 0.0
      %343 = vmatpush1.msra.mxu0 0.0
      %344 = vmatprep.subr.mxu0 0.0
      %345 = vmatpush1.msra.mxu0 0.0
      %346 = vmatprep.subr.mxu0 0.0
      %347 = vmatpush1.msra.mxu0 0.0
      %348 = vmatprep.subr.mxu0 0.0
      %349 = vmatpush1.msra.mxu0 0.0
      %350 = vmatprep.subr.mxu0 0.0
      %351 = vmatpush1.msra.mxu0 0.0
      %352 = vmatprep.subr.mxu0 0.0
      %353 = vmatpush1.msra.mxu0 0.0
      %354 = vmatprep.subr.mxu0 0.0
      %355 = vmatpush1.msra.mxu0 0.0
      %356 = vmatprep.subr.mxu0 0.0
      %357 = vmatpush1.msra.mxu0 0.0
      %358 = vmatprep.subr.mxu0 0.0
      %359 = vmatpush1.msra.mxu0 0.0
      %360 = vmatprep.subr.mxu0 0.0
      %361 = vmatpush1.msra.mxu0 0.0
      %362 = vmatprep.subr.mxu0 0.0
      %363 = vmatpush1.msra.mxu0 0.0
      %364 = vmatprep.subr.mxu0 0.0
      %365 = vmatpush1.msra.mxu0 0.0
      %366 = vmatprep.subr.mxu0 0.0
      %367 = vmatpush1.msra.mxu0 0.0
      %368 = vmatprep.subr.mxu0 0.0
      %369 = vmatpush1.msra.mxu0 0.0
      %370 = vmatprep.subr.mxu0 0.0
      %371 = vmatpush1.msra.mxu0 0.0
      %372 = vmatprep.subr.mxu0 0.0
      %373 = vmatpush1.msra.mxu0 0.0
      %374 = vmatprep.subr.mxu0 0.0
      %375 = vmatpush1.msra.mxu0 0.0
      %376 = vmatprep.subr.mxu0 0.0
      %377 = vmatpush1.msra.mxu0 0.0
      %378 = vmatprep.mubr.f32.mxu0 0.0
      %379 = vmatmul.mubr.f32.gmra.mrb[0].mxu0 %v227
      %v380 = vpop.f32.mrb[0].mxu0
      %v381 = vadd.f32 0.0, %v380
      %v382 = vpop.f32.mrb[0].mxu0
      %383 = vmatprep.mubr.f32.mxu0 0.0
      %384 = vmatmul.mubr.f32.gmra.mrb[0].mxu0 %v230
      %v385 = vpop.f32.mrb[0].mxu0
      %v386 = vadd.f32 0.0, %v385
      %v387 = vpop.f32.mrb[0].mxu0
      %388 = vmatprep.mubr.f32.mxu0 0.0
      %389 = vmatmul.mubr.f32.gmra.mrb[0].mxu0 %v233
      %v390 = vpop.f32.mrb[0].mxu0
      %v391 = vadd.f32 0.0, %v390
      %v392 = vpop.f32.mrb[0].mxu0
      %393 = vmatprep.mubr.f32.mxu0 0.0
      %394 = vmatmul.mubr.f32.gmra.mrb[0].mxu0 %v236
      %v395 = vpop.f32.mrb[0].mxu0
      %v396 = vadd.f32 0.0, %v395
      %v397 = vpop.f32.mrb[0].mxu0
      %398 = vmatprep.mubr.f32.mxu0 0.0
      %399 = vmatmul.mubr.f32.gmra.mrb[0].mxu0 %v239
      %v400 = vpop.f32.mrb[0].mxu0
      %v401 = vadd.f32 0.0, %v400
      %v402 = vpop.f32.mrb[0].mxu0
      %403 = vmatprep.mubr.f32.mxu0 0.0
      %404 = vmatmul.mubr.f32.gmra.mrb[0].mxu0 %v242
      %v405 = vpop.f32.mrb[0].mxu0
      %v406 = vadd.f32 0.0, %v405
      %v407 = vpop.f32.mrb[0].mxu0
      %408 = vmatprep.mubr.f32.mxu0 0.0
      %409 = vmatmul.mubr.f32.gmra.mrb[0].mxu0 %v245
      %v410 = vpop.f32.mrb[0].mxu0
      %v411 = vadd.f32 0.0, %v410
      %v412 = vpop.f32.mrb[0].mxu0
      %413 = vmatprep.mubr.f32.mxu0 0.0
      %414 = vmatmul.mubr.f32.gmra.mrb[0].mxu0 %v248
      %v415 = vpop.f32.mrb[0].mxu0
      %v416 = vadd.f32 0.0, %v415
      %v417 = vpop.f32.mrb[0].mxu0
      %418 = vmatprep.mubr.f32.mxu0 0.0
      %419 = vmatmul.mubr.f32.gmra.mrb[0].mxu0 %v251
      %v420 = vpop.f32.mrb[0].mxu0
      %v421 = vadd.f32 0.0, %v420
      %v422 = vpop.f32.mrb[0].mxu0
      %423 = vmatprep.mubr.f32.mxu0 0.0
      %424 = vmatmul.mubr.f32.gmra.mrb[0].mxu0 %v254
      %v425 = vpop.f32.mrb[0].mxu0
      %v426 = vadd.f32 0.0, %v425
      %v427 = vpop.f32.mrb[0].mxu0
      %428 = vmatprep.mubr.f32.mxu0 0.0
      %429 = vmatmul.mubr.f32.gmra.mrb[0].mxu0 %v257
      %v430 = vpop.f32.mrb[0].mxu0
      %v431 = vadd.f32 0.0, %v430
      %v432 = vpop.f32.mrb[0].mxu0
      %433 = vmatprep.mubr.f32.mxu0 0.0
      %434 = vmatmul.mubr.f32.gmra.mrb[0].mxu0 %v260
      %v435 = vpop.f32.mrb[0].mxu0
      %v436 = vadd.f32 0.0, %v435
      %v437 = vpop.f32.mrb[0].mxu0
      %438 = vmatprep.mubr.f32.mxu0 0.0
      %439 = vmatmul.mubr.f32.gmra.mrb[0].mxu0 %v263
      %v440 = vpop.f32.mrb[0].mxu0
      %v441 = vadd.f32 0.0, %v440
      %v442 = vpop.f32.mrb[0].mxu0
      %443 = vmatprep.mubr.f32.mxu0 0.0
      %444 = vmatmul.mubr.f32.gmra.mrb[0].mxu0 %v266
      %v445 = vpop.f32.mrb[0].mxu0
      %v446 = vadd.f32 0.0, %v445
      %v447 = vpop.f32.mrb[0].mxu0
      %448 = vmatprep.mubr.f32.mxu0 0.0
      %449 = vmatmul.mubr.f32.gmra.mrb[0].mxu0 %v269
      %v450 = vpop.f32.mrb[0].mxu0
      %v451 = vadd.f32 0.0, %v450
      %v452 = vpop.f32.mrb[0].mxu0
      %453 = vmatprep.mubr.f32.mxu0 0.0
      %454 = vmatmul.mubr.f32.gmra.mrb[0].mxu0 %v272
      %v455 = vpop.f32.mrb[0].mxu0
      %v456 = vadd.f32 0.0, %v455
      %v457 = vpop.f32.mrb[0].mxu0
      %458 = vmatprep.mubr.f32.mxu0 0.0
      %459 = vmatmul.mubr.f32.gmra.mrb[0].mxu0 %v275
      %v460 = vpop.f32.mrb[0].mxu0
      %v461 = vadd.f32 0.0, %v460
      %v462 = vpop.f32.mrb[0].mxu0
      %463 = vmatprep.mubr.f32.mxu0 0.0
      %464 = vmatmul.mubr.f32.gmra.mrb[0].mxu0 %v278
      %v465 = vpop.f32.mrb[0].mxu0
      %v466 = vadd.f32 0.0, %v465
      %v467 = vpop.f32.mrb[0].mxu0
      %468 = vmatprep.mubr.f32.mxu0 0.0
      %469 = vmatmul.mubr.f32.gmra.mrb[0].mxu0 %v281
      %v470 = vpop.f32.mrb[0].mxu0
      %v471 = vadd.f32 0.0, %v470
      %v472 = vpop.f32.mrb[0].mxu0
      %473 = vmatprep.mubr.f32.mxu0 0.0
      %474 = vmatmul.mubr.f32.gmra.mrb[0].mxu0 %v284
      %v475 = vpop.f32.mrb[0].mxu0
      %v476 = vadd.f32 0.0, %v475
      %v477 = vpop.f32.mrb[0].mxu0
      %478 = vmatprep.mubr.f32.mxu0 0.0
      %479 = vmatmul.mubr.f32.gmra.mrb[0].mxu0 %v287
      %v480 = vpop.f32.mrb[0].mxu0
      %v481 = vadd.f32 0.0, %v480
      %v482 = vpop.f32.mrb[0].mxu0
      %483 = vmatprep.mubr.f32.mxu0 0.0
      %484 = vmatmul.mubr.f32.gmra.mrb[0].mxu0 %v290
      %v485 = vpop.f32.mrb[0].mxu0
      %v486 = vadd.f32 0.0, %v485
      %v487 = vpop.f32.mrb[0].mxu0
      %488 = vmatprep.mubr.f32.mxu0 0.0
      %489 = vmatmul.mubr.f32.gmra.mrb[0].mxu0 %v293
      %v490 = vpop.f32.mrb[0].mxu0
      %v491 = vadd.f32 0.0, %v490
      %v492 = vpop.f32.mrb[0].mxu0
      %493 = vmatprep.mubr.f32.mxu0 0.0
      %494 = vmatmul.mubr.f32.gmra.mrb[0].mxu0 %v296
      %v495 = vpop.f32.mrb[0].mxu0
      %v496 = vadd.f32 0.0, %v495
      %v497 = vpop.f32.mrb[0].mxu0
      %498 = vmatprep.mubr.f32.mxu0 0.0
      %499 = vmatmul.mubr.f32.gmra.mrb[0].mxu0 %v299
      %v500 = vpop.f32.mrb[0].mxu0
      %v501 = vadd.f32 0.0, %v500
      %v502 = vpop.f32.mrb[0].mxu0
      %503 = vmatprep.mubr.f32.mxu0 0.0
      %504 = vmatmul.mubr.f32.gmra.mrb[0].mxu0 %v302
      %v505 = vpop.f32.mrb[0].mxu0
      %v506 = vadd.f32 0.0, %v505
      %v507 = vpop.f32.mrb[0].mxu0
      %508 = vmatprep.mubr.f32.mxu0 0.0
      %509 = vmatmul.mubr.f32.gmra.mrb[0].mxu0 %v305
      %v510 = vpop.f32.mrb[0].mxu0
      %v511 = vadd.f32 0.0, %v510
      %v512 = vpop.f32.mrb[0].mxu0
      %513 = vmatprep.mubr.f32.mxu0 0.0
      %514 = vmatmul.mubr.f32.gmra.mrb[0].mxu0 %v308
      %v515 = vpop.f32.mrb[0].mxu0
      %v516 = vadd.f32 0.0, %v515
      %v517 = vpop.f32.mrb[0].mxu0
      %518 = vdwg.mxu0
      %vm519 = vcmask 64512
      %520 = vst.msk [vmem:[#allocation2] sm:$0xff] %vm519, %v381
      %521 = vst.msk [vmem:[#allocation2 + $0x8] sm:$0xff] %vm519, %v386
      %522 = vst.msk [vmem:[#allocation2 + $0x10] sm:$0xff] %vm519, %v391
      %523 = vst.msk [vmem:[#allocation2 + $0x18] sm:$0xff] %vm519, %v396
      %524 = vst.msk [vmem:[#allocation2 + $0x20] sm:$0xff] %vm519, %v401
      %525 = vst.msk [vmem:[#allocation2 + $0x28] sm:$0xff] %vm519, %v406
      %526 = vst.msk [vmem:[#allocation2 + $0x30] sm:$0xff] %vm519, %v411
      %527 = vst.msk [vmem:[#allocation2 + $0x38] sm:$0xff] %vm519, %v416
      %528 = vst.msk [vmem:[#allocation2 + $0x40] sm:$0xff] %vm519, %v421
      %529 = vst.msk [vmem:[#allocation2 + $0x48] sm:$0xff] %vm519, %v426
      %530 = vst.msk [vmem:[#allocation2 + $0x50] sm:$0xff] %vm519, %v431
      %531 = vst.msk [vmem:[#allocation2 + $0x58] sm:$0xff] %vm519, %v436
      %532 = vst.msk [vmem:[#allocation2 + $0x60] sm:$0xff] %vm519, %v441
      %533 = vst.msk [vmem:[#allocation2 + $0x68] sm:$0xff] %vm519, %v446
      %534 = vst.msk [vmem:[#allocation2 + $0x70] sm:$0xff] %vm519, %v451
      %535 = vst.msk [vmem:[#allocation2 + $0x78] sm:$0xff] %vm519, %v456
      %536 = vst.msk [vmem:[#allocation2 + $0x80] sm:$0xff] %vm519, %v461
      %537 = vst.msk [vmem:[#allocation2 + $0x88] sm:$0xff] %vm519, %v466
      %538 = vst.msk [vmem:[#allocation2 + $0x90] sm:$0xff] %vm519, %v471
      %539 = vst.msk [vmem:[#allocation2 + $0x98] sm:$0xff] %vm519, %v476
      %540 = vst.msk [vmem:[#allocation2 + $0xa0] sm:$0xff] %vm519, %v481
      %541 = vst.msk [vmem:[#allocation2 + $0xa8] sm:$0xff] %vm519, %v486
      %542 = vst.msk [vmem:[#allocation2 + $0xb0] sm:$0xff] %vm519, %v491
      %543 = vst.msk [vmem:[#allocation2 + $0xb8] sm:$0xff] %vm519, %v496
      %544 = vst.msk [vmem:[#allocation2 + $0xc0] sm:$0xff] %vm519, %v501
      %545 = vst.msk [vmem:[#allocation2 + $0xc8] sm:$0xff] %vm519, %v506
      %546 = vst.msk [vmem:[#allocation2 + $0xd0] sm:$0xff] %vm519, %v511
      %vm547 = vcmask 62464
      %548 = vst.msk [vmem:[#allocation2 + $0xd8] sm:$0x3f] %vm547, %v516
      %v549 = vld [vmem:[%s166 + $0x1] sm:$0xff]
      %v550 = vld [vmem:[%s166 + $0x9] sm:$0xff]
      %v551 = vld [vmem:[%s166 + $0x11] sm:$0xff]
      %v552 = vld [vmem:[%s166 + $0x19] sm:$0xff]
      %v553 = vld [vmem:[%s166 + $0x21] sm:$0xff]
      %v554 = vld [vmem:[%s166 + $0x29] sm:$0xff]
      %v555 = vld [vmem:[%s166 + $0x31] sm:$0xff]
      %v556 = vld [vmem:[%s166 + $0x39] sm:$0xff]
      %v557 = vld [vmem:[%s166 + $0x41] sm:$0xff]
      %v558 = vld [vmem:[%s166 + $0x49] sm:$0xff]
      %v559 = vld [vmem:[%s166 + $0x51] sm:$0xff]
      %v560 = vld [vmem:[%s166 + $0x59] sm:$0xff]
      %v561 = vld [vmem:[%s166 + $0x61] sm:$0xff]
      %v562 = vld [vmem:[%s166 + $0x69] sm:$0xff]
      %v563 = vld [vmem:[%s166 + $0x71] sm:$0xff]
      %v564 = vld [vmem:[%s166 + $0x79] sm:$0xff]
      %v565 = vld [vmem:[%s166 + $0x81] sm:$0xff]
      %v566 = vld [vmem:[%s166 + $0x89] sm:$0xff]
      %v567 = vld [vmem:[%s166 + $0x91] sm:$0xff]
      %v568 = vld [vmem:[%s166 + $0x99] sm:$0xff]
      %v569 = vld [vmem:[%s166 + $0xa1] sm:$0xff]
      %v570 = vld [vmem:[%s166 + $0xa9] sm:$0xff]
      %v571 = vld [vmem:[%s166 + $0xb1] sm:$0xff]
      %v572 = vld [vmem:[%s166 + $0xb9] sm:$0xff]
      %v573 = vld [vmem:[%s166 + $0xc1] sm:$0xff]
      %v574 = vld [vmem:[%s166 + $0xc9] sm:$0xff]
      %v575 = vld [vmem:[%s166 + $0xd1] sm:$0xff]
      %v576 = vld [vmem:[%s166 + $0xd9] sm:$0x3f]
      %v578 = vsel %vm225, %v549, 0
      %v581 = vsel %vm225, %v550, 0
      %v584 = vsel %vm225, %v551, 0
      %v587 = vsel %vm225, %v552, 0
      %v590 = vsel %vm225, %v553, 0
      %v593 = vsel %vm225, %v554, 0
      %v596 = vsel %vm225, %v555, 0
      %v599 = vsel %vm225, %v556, 0
      %v602 = vsel %vm225, %v557, 0
      %v605 = vsel %vm225, %v558, 0
      %v608 = vsel %vm225, %v559, 0
      %v611 = vsel %vm225, %v560, 0
      %v614 = vsel %vm225, %v561, 0
      %v617 = vsel %vm225, %v562, 0
      %v620 = vsel %vm225, %v563, 0
      %v623 = vsel %vm225, %v564, 0
      %v626 = vsel %vm225, %v565, 0
      %v629 = vsel %vm225, %v566, 0
      %v632 = vsel %vm225, %v567, 0
      %v635 = vsel %vm225, %v568, 0
      %v638 = vsel %vm225, %v569, 0
      %v641 = vsel %vm225, %v570, 0
      %v644 = vsel %vm225, %v571, 0
      %v647 = vsel %vm225, %v572, 0
      %v650 = vsel %vm225, %v573, 0
      %v653 = vsel %vm225, %v574, 0
      %v656 = vsel %vm225, %v575, 0
      %v659 = vsel %vm225, %v576, 0
      %v662 = vsel %vm310, %v175, 0
      %664 = vmatprep.subr.mxu0 0.0
      %665 = vmatpush1.msra.mxu0 %v662
      %666 = vmatprep.subr.mxu0 0.0
      %667 = vmatpush1.msra.mxu0 0.0
      %668 = vmatprep.subr.mxu0 0.0
      %669 = vmatpush1.msra.mxu0 0.0
      %670 = vmatprep.subr.mxu0 0.0
      %671 = vmatpush1.msra.mxu0 0.0
      %672 = vmatprep.subr.mxu0 0.0
      %673 = vmatpush1.msra.mxu0 0.0
      %674 = vmatprep.subr.mxu0 0.0
      %675 = vmatpush1.msra.mxu0 0.0
      %676 = vmatprep.subr.mxu0 0.0
      %677 = vmatpush1.msra.mxu0 0.0
      %678 = vmatprep.subr.mxu0 0.0
      %679 = vmatpush1.msra.mxu0 0.0
      %680 = vmatprep.subr.mxu0 0.0
      %681 = vmatpush1.msra.mxu0 0.0
      %682 = vmatprep.subr.mxu0 0.0
      %683 = vmatpush1.msra.mxu0 0.0
      %684 = vmatprep.subr.mxu0 0.0
      %685 = vmatpush1.msra.mxu0 0.0
      %686 = vmatprep.subr.mxu0 0.0
      %687 = vmatpush1.msra.mxu0 0.0
      %688 = vmatprep.subr.mxu0 0.0
      %689 = vmatpush1.msra.mxu0 0.0
      %690 = vmatprep.subr.mxu0 0.0
      %691 = vmatpush1.msra.mxu0 0.0
      %692 = vmatprep.subr.mxu0 0.0
      %693 = vmatpush1.msra.mxu0 0.0
      %694 = vmatprep.subr.mxu0 0.0
      %695 = vmatpush1.msra.mxu0 0.0
      %696 = vmatprep.subr.mxu0 0.0
      %697 = vmatpush1.msra.mxu0 0.0
      %698 = vmatprep.subr.mxu0 0.0
      %699 = vmatpush1.msra.mxu0 0.0
      %700 = vmatprep.subr.mxu0 0.0
      %701 = vmatpush1.msra.mxu0 0.0
      %702 = vmatprep.subr.mxu0 0.0
      %703 = vmatpush1.msra.mxu0 0.0
      %704 = vmatprep.subr.mxu0 0.0
      %705 = vmatpush1.msra.mxu0 0.0
      %706 = vmatprep.subr.mxu0 0.0
      %707 = vmatpush1.msra.mxu0 0.0
      %708 = vmatprep.subr.mxu0 0.0
      %709 = vmatpush1.msra.mxu0 0.0
      %710 = vmatprep.subr.mxu0 0.0
      %711 = vmatpush1.msra.mxu0 0.0
      %712 = vmatprep.subr.mxu0 0.0
      %713 = vmatpush1.msra.mxu0 0.0
      %714 = vmatprep.subr.mxu0 0.0
      %715 = vmatpush1.msra.mxu0 0.0
      %716 = vmatprep.subr.mxu0 0.0
      %717 = vmatpush1.msra.mxu0 0.0
      %718 = vmatprep.subr.mxu0 0.0
      %719 = vmatpush1.msra.mxu0 0.0
      %720 = vmatprep.subr.mxu0 0.0
      %721 = vmatpush1.msra.mxu0 0.0
      %722 = vmatprep.subr.mxu0 0.0
      %723 = vmatpush1.msra.mxu0 0.0
      %724 = vmatprep.subr.mxu0 0.0
      %725 = vmatpush1.msra.mxu0 0.0
      %726 = vmatprep.subr.mxu0 0.0
      %727 = vmatpush1.msra.mxu0 0.0
      %728 = vmatprep.mubr.f32.mxu0 0.0
      %729 = vmatmul.mubr.f32.gmra.mrb[0].mxu0 %v578
      %v730 = vpop.f32.mrb[0].mxu0
      %v731 = vadd.f32 0.0, %v730
      %v732 = vpop.f32.mrb[0].mxu0
      %733 = vmatprep.mubr.f32.mxu0 0.0
      %734 = vmatmul.mubr.f32.gmra.mrb[0].mxu0 %v581
      %v735 = vpop.f32.mrb[0].mxu0
      %v736 = vadd.f32 0.0, %v735
      %v737 = vpop.f32.mrb[0].mxu0
      %738 = vmatprep.mubr.f32.mxu0 0.0
      %739 = vmatmul.mubr.f32.gmra.mrb[0].mxu0 %v584
      %v740 = vpop.f32.mrb[0].mxu0
      %v741 = vadd.f32 0.0, %v740
      %v742 = vpop.f32.mrb[0].mxu0
      %743 = vmatprep.mubr.f32.mxu0 0.0
      %744 = vmatmul.mubr.f32.gmra.mrb[0].mxu0 %v587
      %v745 = vpop.f32.mrb[0].mxu0
      %v746 = vadd.f32 0.0, %v745
      %v747 = vpop.f32.mrb[0].mxu0
      %748 = vmatprep.mubr.f32.mxu0 0.0
      %749 = vmatmul.mubr.f32.gmra.mrb[0].mxu0 %v590
      %v750 = vpop.f32.mrb[0].mxu0
      %v751 = vadd.f32 0.0, %v750
      %v752 = vpop.f32.mrb[0].mxu0
      %753 = vmatprep.mubr.f32.mxu0 0.0
      %754 = vmatmul.mubr.f32.gmra.mrb[0].mxu0 %v593
      %v755 = vpop.f32.mrb[0].mxu0
      %v756 = vadd.f32 0.0, %v755
      %v757 = vpop.f32.mrb[0].mxu0
      %758 = vmatprep.mubr.f32.mxu0 0.0
      %759 = vmatmul.mubr.f32.gmra.mrb[0].mxu0 %v596
      %v760 = vpop.f32.mrb[0].mxu0
      %v761 = vadd.f32 0.0, %v760
      %v762 = vpop.f32.mrb[0].mxu0
      %763 = vmatprep.mubr.f32.mxu0 0.0
      %764 = vmatmul.mubr.f32.gmra.mrb[0].mxu0 %v599
      %v765 = vpop.f32.mrb[0].mxu0
      %v766 = vadd.f32 0.0, %v765
      %v767 = vpop.f32.mrb[0].mxu0
      %768 = vmatprep.mubr.f32.mxu0 0.0
      %769 = vmatmul.mubr.f32.gmra.mrb[0].mxu0 %v602
      %v770 = vpop.f32.mrb[0].mxu0
      %v771 = vadd.f32 0.0, %v770
      %v772 = vpop.f32.mrb[0].mxu0
      %773 = vmatprep.mubr.f32.mxu0 0.0
      %774 = vmatmul.mubr.f32.gmra.mrb[0].mxu0 %v605
      %v775 = vpop.f32.mrb[0].mxu0
      %v776 = vadd.f32 0.0, %v775
      %v777 = vpop.f32.mrb[0].mxu0
      %778 = vmatprep.mubr.f32.mxu0 0.0
      %779 = vmatmul.mubr.f32.gmra.mrb[0].mxu0 %v608
      %v780 = vpop.f32.mrb[0].mxu0
      %v781 = vadd.f32 0.0, %v780
      %v782 = vpop.f32.mrb[0].mxu0
      %783 = vmatprep.mubr.f32.mxu0 0.0
      %784 = vmatmul.mubr.f32.gmra.mrb[0].mxu0 %v611
      %v785 = vpop.f32.mrb[0].mxu0
      %v786 = vadd.f32 0.0, %v785
      %v787 = vpop.f32.mrb[0].mxu0
      %788 = vmatprep.mubr.f32.mxu0 0.0
      %789 = vmatmul.mubr.f32.gmra.mrb[0].mxu0 %v614
      %v790 = vpop.f32.mrb[0].mxu0
      %v791 = vadd.f32 0.0, %v790
      %v792 = vpop.f32.mrb[0].mxu0
      %793 = vmatprep.mubr.f32.mxu0 0.0
      %794 = vmatmul.mubr.f32.gmra.mrb[0].mxu0 %v617
      %v795 = vpop.f32.mrb[0].mxu0
      %v796 = vadd.f32 0.0, %v795
      %v797 = vpop.f32.mrb[0].mxu0
      %798 = vmatprep.mubr.f32.mxu0 0.0
      %799 = vmatmul.mubr.f32.gmra.mrb[0].mxu0 %v620
      %v800 = vpop.f32.mrb[0].mxu0
      %v801 = vadd.f32 0.0, %v800
      %v802 = vpop.f32.mrb[0].mxu0
      %803 = vmatprep.mubr.f32.mxu0 0.0
      %804 = vmatmul.mubr.f32.gmra.mrb[0].mxu0 %v623
      %v805 = vpop.f32.mrb[0].mxu0
      %v806 = vadd.f32 0.0, %v805
      %v807 = vpop.f32.mrb[0].mxu0
      %808 = vmatprep.mubr.f32.mxu0 0.0
      %809 = vmatmul.mubr.f32.gmra.mrb[0].mxu0 %v626
      %v810 = vpop.f32.mrb[0].mxu0
      %v811 = vadd.f32 0.0, %v810
      %v812 = vpop.f32.mrb[0].mxu0
      %813 = vmatprep.mubr.f32.mxu0 0.0
      %814 = vmatmul.mubr.f32.gmra.mrb[0].mxu0 %v629
      %v815 = vpop.f32.mrb[0].mxu0
      %v816 = vadd.f32 0.0, %v815
      %v817 = vpop.f32.mrb[0].mxu0
      %818 = vmatprep.mubr.f32.mxu0 0.0
      %819 = vmatmul.mubr.f32.gmra.mrb[0].mxu0 %v632
      %v820 = vpop.f32.mrb[0].mxu0
      %v821 = vadd.f32 0.0, %v820
      %v822 = vpop.f32.mrb[0].mxu0
      %823 = vmatprep.mubr.f32.mxu0 0.0
      %824 = vmatmul.mubr.f32.gmra.mrb[0].mxu0 %v635
      %v825 = vpop.f32.mrb[0].mxu0
      %v826 = vadd.f32 0.0, %v825
      %v827 = vpop.f32.mrb[0].mxu0
      %828 = vmatprep.mubr.f32.mxu0 0.0
      %829 = vmatmul.mubr.f32.gmra.mrb[0].mxu0 %v638
      %v830 = vpop.f32.mrb[0].mxu0
      %v831 = vadd.f32 0.0, %v830
      %v832 = vpop.f32.mrb[0].mxu0
      %833 = vmatprep.mubr.f32.mxu0 0.0
      %834 = vmatmul.mubr.f32.gmra.mrb[0].mxu0 %v641
      %v835 = vpop.f32.mrb[0].mxu0
      %v836 = vadd.f32 0.0, %v835
      %v837 = vpop.f32.mrb[0].mxu0
      %838 = vmatprep.mubr.f32.mxu0 0.0
      %839 = vmatmul.mubr.f32.gmra.mrb[0].mxu0 %v644
      %v840 = vpop.f32.mrb[0].mxu0
      %v841 = vadd.f32 0.0, %v840
      %v842 = vpop.f32.mrb[0].mxu0
      %843 = vmatprep.mubr.f32.mxu0 0.0
      %844 = vmatmul.mubr.f32.gmra.mrb[0].mxu0 %v647
      %v845 = vpop.f32.mrb[0].mxu0
      %v846 = vadd.f32 0.0, %v845
      %v847 = vpop.f32.mrb[0].mxu0
      %848 = vmatprep.mubr.f32.mxu0 0.0
      %849 = vmatmul.mubr.f32.gmra.mrb[0].mxu0 %v650
      %v850 = vpop.f32.mrb[0].mxu0
      %v851 = vadd.f32 0.0, %v850
      %v852 = vpop.f32.mrb[0].mxu0
      %853 = vmatprep.mubr.f32.mxu0 0.0
      %854 = vmatmul.mubr.f32.gmra.mrb[0].mxu0 %v653
      %v855 = vpop.f32.mrb[0].mxu0
      %v856 = vadd.f32 0.0, %v855
      %v857 = vpop.f32.mrb[0].mxu0
      %858 = vmatprep.mubr.f32.mxu0 0.0
      %859 = vmatmul.mubr.f32.gmra.mrb[0].mxu0 %v656
      %v860 = vpop.f32.mrb[0].mxu0
      %v861 = vadd.f32 0.0, %v860
      %v862 = vpop.f32.mrb[0].mxu0
      %863 = vmatprep.mubr.f32.mxu0 0.0
      %864 = vmatmul.mubr.f32.gmra.mrb[0].mxu0 %v659
      %v865 = vpop.f32.mrb[0].mxu0
      %v866 = vadd.f32 0.0, %v865
      %v867 = vpop.f32.mrb[0].mxu0
      %868 = vdwg.mxu0
      %v869 = vld [vmem:[#allocation2] sm:$0xff]
      %v870 = vld [vmem:[#allocation2 + $0x8] sm:$0xff]
      %v871 = vld [vmem:[#allocation2 + $0x10] sm:$0xff]
      %v872 = vld [vmem:[#allocation2 + $0x18] sm:$0xff]
      %v873 = vld [vmem:[#allocation2 + $0x20] sm:$0xff]
      %v874 = vld [vmem:[#allocation2 + $0x28] sm:$0xff]
      %v875 = vld [vmem:[#allocation2 + $0x30] sm:$0xff]
      %v876 = vld [vmem:[#allocation2 + $0x38] sm:$0xff]
      %v877 = vld [vmem:[#allocation2 + $0x40] sm:$0xff]
      %v878 = vld [vmem:[#allocation2 + $0x48] sm:$0xff]
      %v879 = vld [vmem:[#allocation2 + $0x50] sm:$0xff]
      %v880 = vld [vmem:[#allocation2 + $0x58] sm:$0xff]
      %v881 = vld [vmem:[#allocation2 + $0x60] sm:$0xff]
      %v882 = vld [vmem:[#allocation2 + $0x68] sm:$0xff]
      %v883 = vld [vmem:[#allocation2 + $0x70] sm:$0xff]
      %v884 = vld [vmem:[#allocation2 + $0x78] sm:$0xff]
      %v885 = vld [vmem:[#allocation2 + $0x80] sm:$0xff]
      %v886 = vld [vmem:[#allocation2 + $0x88] sm:$0xff]
      %v887 = vld [vmem:[#allocation2 + $0x90] sm:$0xff]
      %v888 = vld [vmem:[#allocation2 + $0x98] sm:$0xff]
      %v889 = vld [vmem:[#allocation2 + $0xa0] sm:$0xff]
      %v890 = vld [vmem:[#allocation2 + $0xa8] sm:$0xff]
      %v891 = vld [vmem:[#allocation2 + $0xb0] sm:$0xff]
      %v892 = vld [vmem:[#allocation2 + $0xb8] sm:$0xff]
      %v893 = vld [vmem:[#allocation2 + $0xc0] sm:$0xff]
      %v894 = vld [vmem:[#allocation2 + $0xc8] sm:$0xff]
      %v895 = vld [vmem:[#allocation2 + $0xd0] sm:$0xff]
      %v896 = vld [vmem:[#allocation2 + $0xd8] sm:$0x3f]
      %v897 = vadd.f32 %v869, %v731
      %v898 = vadd.f32 %v870, %v736
      %v899 = vadd.f32 %v871, %v741
      %v900 = vadd.f32 %v872, %v746
      %v901 = vadd.f32 %v873, %v751
      %v902 = vadd.f32 %v874, %v756
      %v903 = vadd.f32 %v875, %v761
      %v904 = vadd.f32 %v876, %v766
      %v905 = vadd.f32 %v877, %v771
      %v906 = vadd.f32 %v878, %v776
      %v907 = vadd.f32 %v879, %v781
      %v908 = vadd.f32 %v880, %v786
      %v909 = vadd.f32 %v881, %v791
      %v910 = vadd.f32 %v882, %v796
      %v911 = vadd.f32 %v883, %v801
      %v912 = vadd.f32 %v884, %v806
      %v913 = vadd.f32 %v885, %v811
      %v914 = vadd.f32 %v886, %v816
      %v915 = vadd.f32 %v887, %v821
      %v916 = vadd.f32 %v888, %v826
      %v917 = vadd.f32 %v889, %v831
      %v918 = vadd.f32 %v890, %v836
      %v919 = vadd.f32 %v891, %v841
      %v920 = vadd.f32 %v892, %v846
      %v921 = vadd.f32 %v893, %v851
      %v922 = vadd.f32 %v894, %v856
      %v923 = vadd.f32 %v895, %v861
      %v924 = vadd.f32 %v896, %v866
      %925 = vst.msk [vmem:[#allocation2] sm:$0xff] %vm519, %v897
      %926 = vst.msk [vmem:[#allocation2 + $0x8] sm:$0xff] %vm519, %v898
      %927 = vst.msk [vmem:[#allocation2 + $0x10] sm:$0xff] %vm519, %v899
      %928 = vst.msk [vmem:[#allocation2 + $0x18] sm:$0xff] %vm519, %v900
      %929 = vst.msk [vmem:[#allocation2 + $0x20] sm:$0xff] %vm519, %v901
      %930 = vst.msk [vmem:[#allocation2 + $0x28] sm:$0xff] %vm519, %v902
      %931 = vst.msk [vmem:[#allocation2 + $0x30] sm:$0xff] %vm519, %v903
      %932 = vst.msk [vmem:[#allocation2 + $0x38] sm:$0xff] %vm519, %v904
      %933 = vst.msk [vmem:[#allocation2 + $0x40] sm:$0xff] %vm519, %v905
      %934 = vst.msk [vmem:[#allocation2 + $0x48] sm:$0xff] %vm519, %v906
      %935 = vst.msk [vmem:[#allocation2 + $0x50] sm:$0xff] %vm519, %v907
      %936 = vst.msk [vmem:[#allocation2 + $0x58] sm:$0xff] %vm519, %v908
      %937 = vst.msk [vmem:[#allocation2 + $0x60] sm:$0xff] %vm519, %v909
      %938 = vst.msk [vmem:[#allocation2 + $0x68] sm:$0xff] %vm519, %v910
      %939 = vst.msk [vmem:[#allocation2 + $0x70] sm:$0xff] %vm519, %v911
      %940 = vst.msk [vmem:[#allocation2 + $0x78] sm:$0xff] %vm519, %v912
      %941 = vst.msk [vmem:[#allocation2 + $0x80] sm:$0xff] %vm519, %v913
      %942 = vst.msk [vmem:[#allocation2 + $0x88] sm:$0xff] %vm519, %v914
      %943 = vst.msk [vmem:[#allocation2 + $0x90] sm:$0xff] %vm519, %v915
      %944 = vst.msk [vmem:[#allocation2 + $0x98] sm:$0xff] %vm519, %v916
      %945 = vst.msk [vmem:[#allocation2 + $0xa0] sm:$0xff] %vm519, %v917
      %946 = vst.msk [vmem:[#allocation2 + $0xa8] sm:$0xff] %vm519, %v918
      %947 = vst.msk [vmem:[#allocation2 + $0xb0] sm:$0xff] %vm519, %v919
      %948 = vst.msk [vmem:[#allocation2 + $0xb8] sm:$0xff] %vm519, %v920
      %949 = vst.msk [vmem:[#allocation2 + $0xc0] sm:$0xff] %vm519, %v921
      %950 = vst.msk [vmem:[#allocation2 + $0xc8] sm:$0xff] %vm519, %v922
      %951 = vst.msk [vmem:[#allocation2 + $0xd0] sm:$0xff] %vm519, %v923
      %952 = vst.msk [vmem:[#allocation2 + $0xd8] sm:$0x3f] %vm547, %v924
      %v953 = vld [vmem:[%s166 + $0x2] sm:$0xff]
      %v954 = vld [vmem:[%s166 + $0xa] sm:$0xff]
      %v955 = vld [vmem:[%s166 + $0x12] sm:$0xff]
      %v956 = vld [vmem:[%s166 + $0x1a] sm:$0xff]
      %v957 = vld [vmem:[%s166 + $0x22] sm:$0xff]
      %v958 = vld [vmem:[%s166 + $0x2a] sm:$0xff]
      %v959 = vld [vmem:[%s166 + $0x32] sm:$0xff]
      %v960 = vld [vmem:[%s166 + $0x3a] sm:$0xff]
      %v961 = vld [vmem:[%s166 + $0x42] sm:$0xff]
      %v962 = vld [vmem:[%s166 + $0x4a] sm:$0xff]
      %v963 = vld [vmem:[%s166 + $0x52] sm:$0xff]
      %v964 = vld [vmem:[%s166 + $0x5a] sm:$0xff]
      %v965 = vld [vmem:[%s166 + $0x62] sm:$0xff]
      %v966 = vld [vmem:[%s166 + $0x6a] sm:$0xff]
      %v967 = vld [vmem:[%s166 + $0x72] sm:$0xff]
      %v968 = vld [vmem:[%s166 + $0x7a] sm:$0xff]
      %v969 = vld [vmem:[%s166 + $0x82] sm:$0xff]
      %v970 = vld [vmem:[%s166 + $0x8a] sm:$0xff]
      %v971 = vld [vmem:[%s166 + $0x92] sm:$0xff]
      %v972 = vld [vmem:[%s166 + $0x9a] sm:$0xff]
      %v973 = vld [vmem:[%s166 + $0xa2] sm:$0xff]
      %v974 = vld [vmem:[%s166 + $0xaa] sm:$0xff]
      %v975 = vld [vmem:[%s166 + $0xb2] sm:$0xff]
      %v976 = vld [vmem:[%s166 + $0xba] sm:$0xff]
      %v977 = vld [vmem:[%s166 + $0xc2] sm:$0xff]
      %v978 = vld [vmem:[%s166 + $0xca] sm:$0xff]
      %v979 = vld [vmem:[%s166 + $0xd2] sm:$0xff]
      %v980 = vld [vmem:[%s166 + $0xda] sm:$0x3f]
      %v982 = vsel %vm225, %v953, 0
      %v985 = vsel %vm225, %v954, 0
      %v988 = vsel %vm225, %v955, 0
      %v991 = vsel %vm225, %v956, 0
      %v994 = vsel %vm225, %v957, 0
      %v997 = vsel %vm225, %v958, 0
      %v1000 = vsel %vm225, %v959, 0
      %v1003 = vsel %vm225, %v960, 0
      %v1006 = vsel %vm225, %v961, 0
      %v1009 = vsel %vm225, %v962, 0
      %v1012 = vsel %vm225, %v963, 0
      %v1015 = vsel %vm225, %v964, 0
      %v1018 = vsel %vm225, %v965, 0
      %v1021 = vsel %vm225, %v966, 0
      %v1024 = vsel %vm225, %v967, 0
      %v1027 = vsel %vm225, %v968, 0
      %v1030 = vsel %vm225, %v969, 0
      %v1033 = vsel %vm225, %v970, 0
      %v1036 = vsel %vm225, %v971, 0
      %v1039 = vsel %vm225, %v972, 0
      %v1042 = vsel %vm225, %v973, 0
      %v1045 = vsel %vm225, %v974, 0
      %v1048 = vsel %vm225, %v975, 0
      %v1051 = vsel %vm225, %v976, 0
      %v1054 = vsel %vm225, %v977, 0
      %v1057 = vsel %vm225, %v978, 0
      %v1060 = vsel %vm225, %v979, 0
      %v1063 = vsel %vm225, %v980, 0
      %v1066 = vsel %vm310, %v177, 0
      %1068 = vmatprep.subr.mxu0 0.0
      %1069 = vmatpush1.msra.mxu0 %v1066
      %1070 = vmatprep.subr.mxu0 0.0
      %1071 = vmatpush1.msra.mxu0 0.0
      %1072 = vmatprep.subr.mxu0 0.0
      %1073 = vmatpush1.msra.mxu0 0.0
      %1074 = vmatprep.subr.mxu0 0.0
      %1075 = vmatpush1.msra.mxu0 0.0
      %1076 = vmatprep.subr.mxu0 0.0
      %1077 = vmatpush1.msra.mxu0 0.0
      %1078 = vmatprep.subr.mxu0 0.0
      %1079 = vmatpush1.msra.mxu0 0.0
      %1080 = vmatprep.subr.mxu0 0.0
      %1081 = vmatpush1.msra.mxu0 0.0
      %1082 = vmatprep.subr.mxu0 0.0
      %1083 = vmatpush1.msra.mxu0 0.0
      %1084 = vmatprep.subr.mxu0 0.0
      %1085 = vmatpush1.msra.mxu0 0.0
      %1086 = vmatprep.subr.mxu0 0.0
      %1087 = vmatpush1.msra.mxu0 0.0
      %1088 = vmatprep.subr.mxu0 0.0
      %1089 = vmatpush1.msra.mxu0 0.0
      %1090 = vmatprep.subr.mxu0 0.0
      %1091 = vmatpush1.msra.mxu0 0.0
      %1092 = vmatprep.subr.mxu0 0.0
      %1093 = vmatpush1.msra.mxu0 0.0
      %1094 = vmatprep.subr.mxu0 0.0
      %1095 = vmatpush1.msra.mxu0 0.0
      %1096 = vmatprep.subr.mxu0 0.0
      %1097 = vmatpush1.msra.mxu0 0.0
      %1098 = vmatprep.subr.mxu0 0.0
      %1099 = vmatpush1.msra.mxu0 0.0
      %1100 = vmatprep.subr.mxu0 0.0
      %1101 = vmatpush1.msra.mxu0 0.0
      %1102 = vmatprep.subr.mxu0 0.0
      %1103 = vmatpush1.msra.mxu0 0.0
      %1104 = vmatprep.subr.mxu0 0.0
      %1105 = vmatpush1.msra.mxu0 0.0
      %1106 = vmatprep.subr.mxu0 0.0
      %1107 = vmatpush1.msra.mxu0 0.0
      %1108 = vmatprep.subr.mxu0 0.0
      %1109 = vmatpush1.msra.mxu0 0.0
      %1110 = vmatprep.subr.mxu0 0.0
      %1111 = vmatpush1.msra.mxu0 0.0
      %1112 = vmatprep.subr.mxu0 0.0
      %1113 = vmatpush1.msra.mxu0 0.0
      %1114 = vmatprep.subr.mxu0 0.0
      %1115 = vmatpush1.msra.mxu0 0.0
      %1116 = vmatprep.subr.mxu0 0.0
      %1117 = vmatpush1.msra.mxu0 0.0
      %1118 = vmatprep.subr.mxu0 0.0
      %1119 = vmatpush1.msra.mxu0 0.0
      %1120 = vmatprep.subr.mxu0 0.0
      %1121 = vmatpush1.msra.mxu0 0.0
      %1122 = vmatprep.subr.mxu0 0.0
      %1123 = vmatpush1.msra.mxu0 0.0
      %1124 = vmatprep.subr.mxu0 0.0
      %1125 = vmatpush1.msra.mxu0 0.0
      %1126 = vmatprep.subr.mxu0 0.0
      %1127 = vmatpush1.msra.mxu0 0.0
      %1128 = vmatprep.subr.mxu0 0.0
      %1129 = vmatpush1.msra.mxu0 0.0
      %1130 = vmatprep.subr.mxu0 0.0
      %1131 = vmatpush1.msra.mxu0 0.0
      %1132 = vmatprep.mubr.f32.mxu0 0.0
      %1133 = vmatmul.mubr.f32.gmra.mrb[0].mxu0 %v982
      %v1134 = vpop.f32.mrb[0].mxu0
      %v1135 = vadd.f32 0.0, %v1134
      %v1136 = vpop.f32.mrb[0].mxu0
      %1137 = vmatprep.mubr.f32.mxu0 0.0
      %1138 = vmatmul.mubr.f32.gmra.mrb[0].mxu0 %v985
      %v1139 = vpop.f32.mrb[0].mxu0
      %v1140 = vadd.f32 0.0, %v1139
      %v1141 = vpop.f32.mrb[0].mxu0
      %1142 = vmatprep.mubr.f32.mxu0 0.0
      %1143 = vmatmul.mubr.f32.gmra.mrb[0].mxu0 %v988
      %v1144 = vpop.f32.mrb[0].mxu0
      %v1145 = vadd.f32 0.0, %v1144
      %v1146 = vpop.f32.mrb[0].mxu0
      %1147 = vmatprep.mubr.f32.mxu0 0.0
      %1148 = vmatmul.mubr.f32.gmra.mrb[0].mxu0 %v991
      %v1149 = vpop.f32.mrb[0].mxu0
      %v1150 = vadd.f32 0.0, %v1149
      %v1151 = vpop.f32.mrb[0].mxu0
      %1152 = vmatprep.mubr.f32.mxu0 0.0
      %1153 = vmatmul.mubr.f32.gmra.mrb[0].mxu0 %v994
      %v1154 = vpop.f32.mrb[0].mxu0
      %v1155 = vadd.f32 0.0, %v1154
      %v1156 = vpop.f32.mrb[0].mxu0
      %1157 = vmatprep.mubr.f32.mxu0 0.0
      %1158 = vmatmul.mubr.f32.gmra.mrb[0].mxu0 %v997
      %v1159 = vpop.f32.mrb[0].mxu0
      %v1160 = vadd.f32 0.0, %v1159
      %v1161 = vpop.f32.mrb[0].mxu0
      %1162 = vmatprep.mubr.f32.mxu0 0.0
      %1163 = vmatmul.mubr.f32.gmra.mrb[0].mxu0 %v1000
      %v1164 = vpop.f32.mrb[0].mxu0
      %v1165 = vadd.f32 0.0, %v1164
      %v1166 = vpop.f32.mrb[0].mxu0
      %1167 = vmatprep.mubr.f32.mxu0 0.0
      %1168 = vmatmul.mubr.f32.gmra.mrb[0].mxu0 %v1003
      %v1169 = vpop.f32.mrb[0].mxu0
      %v1170 = vadd.f32 0.0, %v1169
      %v1171 = vpop.f32.mrb[0].mxu0
      %1172 = vmatprep.mubr.f32.mxu0 0.0
      %1173 = vmatmul.mubr.f32.gmra.mrb[0].mxu0 %v1006
      %v1174 = vpop.f32.mrb[0].mxu0
      %v1175 = vadd.f32 0.0, %v1174
      %v1176 = vpop.f32.mrb[0].mxu0
      %1177 = vmatprep.mubr.f32.mxu0 0.0
      %1178 = vmatmul.mubr.f32.gmra.mrb[0].mxu0 %v1009
      %v1179 = vpop.f32.mrb[0].mxu0
      %v1180 = vadd.f32 0.0, %v1179
      %v1181 = vpop.f32.mrb[0].mxu0
      %1182 = vmatprep.mubr.f32.mxu0 0.0
      %1183 = vmatmul.mubr.f32.gmra.mrb[0].mxu0 %v1012
      %v1184 = vpop.f32.mrb[0].mxu0
      %v1185 = vadd.f32 0.0, %v1184
      %v1186 = vpop.f32.mrb[0].mxu0
      %1187 = vmatprep.mubr.f32.mxu0 0.0
      %1188 = vmatmul.mubr.f32.gmra.mrb[0].mxu0 %v1015
      %v1189 = vpop.f32.mrb[0].mxu0
      %v1190 = vadd.f32 0.0, %v1189
      %v1191 = vpop.f32.mrb[0].mxu0
      %1192 = vmatprep.mubr.f32.mxu0 0.0
      %1193 = vmatmul.mubr.f32.gmra.mrb[0].mxu0 %v1018
      %v1194 = vpop.f32.mrb[0].mxu0
      %v1195 = vadd.f32 0.0, %v1194
      %v1196 = vpop.f32.mrb[0].mxu0
      %1197 = vmatprep.mubr.f32.mxu0 0.0
      %1198 = vmatmul.mubr.f32.gmra.mrb[0].mxu0 %v1021
      %v1199 = vpop.f32.mrb[0].mxu0
      %v1200 = vadd.f32 0.0, %v1199
      %v1201 = vpop.f32.mrb[0].mxu0
      %1202 = vmatprep.mubr.f32.mxu0 0.0
      %1203 = vmatmul.mubr.f32.gmra.mrb[0].mxu0 %v1024
      %v1204 = vpop.f32.mrb[0].mxu0
      %v1205 = vadd.f32 0.0, %v1204
      %v1206 = vpop.f32.mrb[0].mxu0
      %1207 = vmatprep.mubr.f32.mxu0 0.0
      %1208 = vmatmul.mubr.f32.gmra.mrb[0].mxu0 %v1027
      %v1209 = vpop.f32.mrb[0].mxu0
      %v1210 = vadd.f32 0.0, %v1209
      %v1211 = vpop.f32.mrb[0].mxu0
      %1212 = vmatprep.mubr.f32.mxu0 0.0
      %1213 = vmatmul.mubr.f32.gmra.mrb[0].mxu0 %v1030
      %v1214 = vpop.f32.mrb[0].mxu0
      %v1215 = vadd.f32 0.0, %v1214
      %v1216 = vpop.f32.mrb[0].mxu0
      %1217 = vmatprep.mubr.f32.mxu0 0.0
      %1218 = vmatmul.mubr.f32.gmra.mrb[0].mxu0 %v1033
      %v1219 = vpop.f32.mrb[0].mxu0
      %v1220 = vadd.f32 0.0, %v1219
      %v1221 = vpop.f32.mrb[0].mxu0
      %1222 = vmatprep.mubr.f32.mxu0 0.0
      %1223 = vmatmul.mubr.f32.gmra.mrb[0].mxu0 %v1036
      %v1224 = vpop.f32.mrb[0].mxu0
      %v1225 = vadd.f32 0.0, %v1224
      %v1226 = vpop.f32.mrb[0].mxu0
      %1227 = vmatprep.mubr.f32.mxu0 0.0
      %1228 = vmatmul.mubr.f32.gmra.mrb[0].mxu0 %v1039
      %v1229 = vpop.f32.mrb[0].mxu0
      %v1230 = vadd.f32 0.0, %v1229
      %v1231 = vpop.f32.mrb[0].mxu0
      %1232 = vmatprep.mubr.f32.mxu0 0.0
      %1233 = vmatmul.mubr.f32.gmra.mrb[0].mxu0 %v1042
      %v1234 = vpop.f32.mrb[0].mxu0
      %v1235 = vadd.f32 0.0, %v1234
      %v1236 = vpop.f32.mrb[0].mxu0
      %1237 = vmatprep.mubr.f32.mxu0 0.0
      %1238 = vmatmul.mubr.f32.gmra.mrb[0].mxu0 %v1045
      %v1239 = vpop.f32.mrb[0].mxu0
      %v1240 = vadd.f32 0.0, %v1239
      %v1241 = vpop.f32.mrb[0].mxu0
      %1242 = vmatprep.mubr.f32.mxu0 0.0
      %1243 = vmatmul.mubr.f32.gmra.mrb[0].mxu0 %v1048
      %v1244 = vpop.f32.mrb[0].mxu0
      %v1245 = vadd.f32 0.0, %v1244
      %v1246 = vpop.f32.mrb[0].mxu0
      %1247 = vmatprep.mubr.f32.mxu0 0.0
      %1248 = vmatmul.mubr.f32.gmra.mrb[0].mxu0 %v1051
      %v1249 = vpop.f32.mrb[0].mxu0
      %v1250 = vadd.f32 0.0, %v1249
      %v1251 = vpop.f32.mrb[0].mxu0
      %1252 = vmatprep.mubr.f32.mxu0 0.0
      %1253 = vmatmul.mubr.f32.gmra.mrb[0].mxu0 %v1054
      %v1254 = vpop.f32.mrb[0].mxu0
      %v1255 = vadd.f32 0.0, %v1254
      %v1256 = vpop.f32.mrb[0].mxu0
      %1257 = vmatprep.mubr.f32.mxu0 0.0
      %1258 = vmatmul.mubr.f32.gmra.mrb[0].mxu0 %v1057
      %v1259 = vpop.f32.mrb[0].mxu0
      %v1260 = vadd.f32 0.0, %v1259
      %v1261 = vpop.f32.mrb[0].mxu0
      %1262 = vmatprep.mubr.f32.mxu0 0.0
      %1263 = vmatmul.mubr.f32.gmra.mrb[0].mxu0 %v1060
      %v1264 = vpop.f32.mrb[0].mxu0
      %v1265 = vadd.f32 0.0, %v1264
      %v1266 = vpop.f32.mrb[0].mxu0
      %1267 = vmatprep.mubr.f32.mxu0 0.0
      %1268 = vmatmul.mubr.f32.gmra.mrb[0].mxu0 %v1063
      %v1269 = vpop.f32.mrb[0].mxu0
      %v1270 = vadd.f32 0.0, %v1269
      %v1271 = vpop.f32.mrb[0].mxu0
      %1272 = vdwg.mxu0
      %v1273 = vld [vmem:[#allocation2] sm:$0xff]
      %v1274 = vld [vmem:[#allocation2 + $0x8] sm:$0xff]
      %v1275 = vld [vmem:[#allocation2 + $0x10] sm:$0xff]
      %v1276 = vld [vmem:[#allocation2 + $0x18] sm:$0xff]
      %v1277 = vld [vmem:[#allocation2 + $0x20] sm:$0xff]
      %v1278 = vld [vmem:[#allocation2 + $0x28] sm:$0xff]
      %v1279 = vld [vmem:[#allocation2 + $0x30] sm:$0xff]
      %v1280 = vld [vmem:[#allocation2 + $0x38] sm:$0xff]
      %v1281 = vld [vmem:[#allocation2 + $0x40] sm:$0xff]
      %v1282 = vld [vmem:[#allocation2 + $0x48] sm:$0xff]
      %v1283 = vld [vmem:[#allocation2 + $0x50] sm:$0xff]
      %v1284 = vld [vmem:[#allocation2 + $0x58] sm:$0xff]
      %v1285 = vld [vmem:[#allocation2 + $0x60] sm:$0xff]
      %v1286 = vld [vmem:[#allocation2 + $0x68] sm:$0xff]
      %v1287 = vld [vmem:[#allocation2 + $0x70] sm:$0xff]
      %v1288 = vld [vmem:[#allocation2 + $0x78] sm:$0xff]
      %v1289 = vld [vmem:[#allocation2 + $0x80] sm:$0xff]
      %v1290 = vld [vmem:[#allocation2 + $0x88] sm:$0xff]
      %v1291 = vld [vmem:[#allocation2 + $0x90] sm:$0xff]
      %v1292 = vld [vmem:[#allocation2 + $0x98] sm:$0xff]
      %v1293 = vld [vmem:[#allocation2 + $0xa0] sm:$0xff]
      %v1294 = vld [vmem:[#allocation2 + $0xa8] sm:$0xff]
      %v1295 = vld [vmem:[#allocation2 + $0xb0] sm:$0xff]
      %v1296 = vld [vmem:[#allocation2 + $0xb8] sm:$0xff]
      %v1297 = vld [vmem:[#allocation2 + $0xc0] sm:$0xff]
      %v1298 = vld [vmem:[#allocation2 + $0xc8] sm:$0xff]
      %v1299 = vld [vmem:[#allocation2 + $0xd0] sm:$0xff]
      %v1300 = vld [vmem:[#allocation2 + $0xd8] sm:$0x3f]
      %v1301 = vadd.f32 %v1273, %v1135
      %v1302 = vadd.f32 %v1274, %v1140
      %v1303 = vadd.f32 %v1275, %v1145
      %v1304 = vadd.f32 %v1276, %v1150
      %v1305 = vadd.f32 %v1277, %v1155
      %v1306 = vadd.f32 %v1278, %v1160
      %v1307 = vadd.f32 %v1279, %v1165
      %v1308 = vadd.f32 %v1280, %v1170
      %v1309 = vadd.f32 %v1281, %v1175
      %v1310 = vadd.f32 %v1282, %v1180
      %v1311 = vadd.f32 %v1283, %v1185
      %v1312 = vadd.f32 %v1284, %v1190
      %v1313 = vadd.f32 %v1285, %v1195
      %v1314 = vadd.f32 %v1286, %v1200
      %v1315 = vadd.f32 %v1287, %v1205
      %v1316 = vadd.f32 %v1288, %v1210
      %v1317 = vadd.f32 %v1289, %v1215
      %v1318 = vadd.f32 %v1290, %v1220
      %v1319 = vadd.f32 %v1291, %v1225
      %v1320 = vadd.f32 %v1292, %v1230
      %v1321 = vadd.f32 %v1293, %v1235
      %v1322 = vadd.f32 %v1294, %v1240
      %v1323 = vadd.f32 %v1295, %v1245
      %v1324 = vadd.f32 %v1296, %v1250
      %v1325 = vadd.f32 %v1297, %v1255
      %v1326 = vadd.f32 %v1298, %v1260
      %v1327 = vadd.f32 %v1299, %v1265
      %v1328 = vadd.f32 %v1300, %v1270
      %1329 = vst.msk [vmem:[#allocation2] sm:$0xff] %vm519, %v1301
      %1330 = vst.msk [vmem:[#allocation2 + $0x8] sm:$0xff] %vm519, %v1302
      %1331 = vst.msk [vmem:[#allocation2 + $0x10] sm:$0xff] %vm519, %v1303
      %1332 = vst.msk [vmem:[#allocation2 + $0x18] sm:$0xff] %vm519, %v1304
      %1333 = vst.msk [vmem:[#allocation2 + $0x20] sm:$0xff] %vm519, %v1305
      %1334 = vst.msk [vmem:[#allocation2 + $0x28] sm:$0xff] %vm519, %v1306
      %1335 = vst.msk [vmem:[#allocation2 + $0x30] sm:$0xff] %vm519, %v1307
      %1336 = vst.msk [vmem:[#allocation2 + $0x38] sm:$0xff] %vm519, %v1308
      %1337 = vst.msk [vmem:[#allocation2 + $0x40] sm:$0xff] %vm519, %v1309
      %1338 = vst.msk [vmem:[#allocation2 + $0x48] sm:$0xff] %vm519, %v1310
      %1339 = vst.msk [vmem:[#allocation2 + $0x50] sm:$0xff] %vm519, %v1311
      %1340 = vst.msk [vmem:[#allocation2 + $0x58] sm:$0xff] %vm519, %v1312
      %1341 = vst.msk [vmem:[#allocation2 + $0x60] sm:$0xff] %vm519, %v1313
      %1342 = vst.msk [vmem:[#allocation2 + $0x68] sm:$0xff] %vm519, %v1314
      %1343 = vst.msk [vmem:[#allocation2 + $0x70] sm:$0xff] %vm519, %v1315
      %1344 = vst.msk [vmem:[#allocation2 + $0x78] sm:$0xff] %vm519, %v1316
      %1345 = vst.msk [vmem:[#allocation2 + $0x80] sm:$0xff] %vm519, %v1317
      %1346 = vst.msk [vmem:[#allocation2 + $0x88] sm:$0xff] %vm519, %v1318
      %1347 = vst.msk [vmem:[#allocation2 + $0x90] sm:$0xff] %vm519, %v1319
      %1348 = vst.msk [vmem:[#allocation2 + $0x98] sm:$0xff] %vm519, %v1320
      %1349 = vst.msk [vmem:[#allocation2 + $0xa0] sm:$0xff] %vm519, %v1321
      %1350 = vst.msk [vmem:[#allocation2 + $0xa8] sm:$0xff] %vm519, %v1322
      %1351 = vst.msk [vmem:[#allocation2 + $0xb0] sm:$0xff] %vm519, %v1323
      %1352 = vst.msk [vmem:[#allocation2 + $0xb8] sm:$0xff] %vm519, %v1324
      %1353 = vst.msk [vmem:[#allocation2 + $0xc0] sm:$0xff] %vm519, %v1325
      %1354 = vst.msk [vmem:[#allocation2 + $0xc8] sm:$0xff] %vm519, %v1326
      %1355 = vst.msk [vmem:[#allocation2 + $0xd0] sm:$0xff] %vm519, %v1327
      %1356 = vst.msk [vmem:[#allocation2 + $0xd8] sm:$0x3f] %vm547, %v1328
      %v1357 = vld [vmem:[%s166 + $0x10] sm:$0xff]
      %v1358 = vld [vmem:[%s166 + $0x18] sm:$0xff]
      %v1359 = vld [vmem:[%s166 + $0x20] sm:$0xff]
      %v1360 = vld [vmem:[%s166 + $0x28] sm:$0xff]
      %v1361 = vld [vmem:[%s166 + $0x30] sm:$0xff]
      %v1362 = vld [vmem:[%s166 + $0x38] sm:$0xff]
      %v1363 = vld [vmem:[%s166 + $0x40] sm:$0xff]
      %v1364 = vld [vmem:[%s166 + $0x48] sm:$0xff]
      %v1365 = vld [vmem:[%s166 + $0x50] sm:$0xff]
      %v1366 = vld [vmem:[%s166 + $0x58] sm:$0xff]
      %v1367 = vld [vmem:[%s166 + $0x60] sm:$0xff]
      %v1368 = vld [vmem:[%s166 + $0x68] sm:$0xff]
      %v1369 = vld [vmem:[%s166 + $0x70] sm:$0xff]
      %v1370 = vld [vmem:[%s166 + $0x78] sm:$0xff]
      %v1371 = vld [vmem:[%s166 + $0x80] sm:$0xff]
      %v1372 = vld [vmem:[%s166 + $0x88] sm:$0xff]
      %v1373 = vld [vmem:[%s166 + $0x90] sm:$0xff]
      %v1374 = vld [vmem:[%s166 + $0x98] sm:$0xff]
      %v1375 = vld [vmem:[%s166 + $0xa0] sm:$0xff]
      %v1376 = vld [vmem:[%s166 + $0xa8] sm:$0xff]
      %v1377 = vld [vmem:[%s166 + $0xb0] sm:$0xff]
      %v1378 = vld [vmem:[%s166 + $0xb8] sm:$0xff]
      %v1379 = vld [vmem:[%s166 + $0xc0] sm:$0xff]
      %v1380 = vld [vmem:[%s166 + $0xc8] sm:$0xff]
      %v1381 = vld [vmem:[%s166 + $0xd0] sm:$0xff]
      %v1382 = vld [vmem:[%s166 + $0xd8] sm:$0xff]
      %v1383 = vld [vmem:[%s166 + $0xe0] sm:$0xff]
      %v1384 = vld [vmem:[%s166 + $0xe8] sm:$0x3f]
      %v1386 = vsel %vm225, %v1357, 0
      %v1389 = vsel %vm225, %v1358, 0
      %v1392 = vsel %vm225, %v1359, 0
      %v1395 = vsel %vm225, %v1360, 0
      %v1398 = vsel %vm225, %v1361, 0
      %v1401 = vsel %vm225, %v1362, 0
      %v1404 = vsel %vm225, %v1363, 0
      %v1407 = vsel %vm225, %v1364, 0
      %v1410 = vsel %vm225, %v1365, 0
      %v1413 = vsel %vm225, %v1366, 0
      %v1416 = vsel %vm225, %v1367, 0
      %v1419 = vsel %vm225, %v1368, 0
      %v1422 = vsel %vm225, %v1369, 0
      %v1425 = vsel %vm225, %v1370, 0
      %v1428 = vsel %vm225, %v1371, 0
      %v1431 = vsel %vm225, %v1372, 0
      %v1434 = vsel %vm225, %v1373, 0
      %v1437 = vsel %vm225, %v1374, 0
      %v1440 = vsel %vm225, %v1375, 0
      %v1443 = vsel %vm225, %v1376, 0
      %v1446 = vsel %vm225, %v1377, 0
      %v1449 = vsel %vm225, %v1378, 0
      %v1452 = vsel %vm225, %v1379, 0
      %v1455 = vsel %vm225, %v1380, 0
      %v1458 = vsel %vm225, %v1381, 0
      %v1461 = vsel %vm225, %v1382, 0
      %v1464 = vsel %vm225, %v1383, 0
      %v1467 = vsel %vm225, %v1384, 0
      %v1470 = vsel %vm310, %v179, 0
      %1472 = vmatprep.subr.mxu0 0.0
      %1473 = vmatpush1.msra.mxu0 %v1470
      %1474 = vmatprep.subr.mxu0 0.0
      %1475 = vmatpush1.msra.mxu0 0.0
      %1476 = vmatprep.subr.mxu0 0.0
      %1477 = vmatpush1.msra.mxu0 0.0
      %1478 = vmatprep.subr.mxu0 0.0
      %1479 = vmatpush1.msra.mxu0 0.0
      %1480 = vmatprep.subr.mxu0 0.0
      %1481 = vmatpush1.msra.mxu0 0.0
      %1482 = vmatprep.subr.mxu0 0.0
      %1483 = vmatpush1.msra.mxu0 0.0
      %1484 = vmatprep.subr.mxu0 0.0
      %1485 = vmatpush1.msra.mxu0 0.0
      %1486 = vmatprep.subr.mxu0 0.0
      %1487 = vmatpush1.msra.mxu0 0.0
      %1488 = vmatprep.subr.mxu0 0.0
      %1489 = vmatpush1.msra.mxu0 0.0
      %1490 = vmatprep.subr.mxu0 0.0
      %1491 = vmatpush1.msra.mxu0 0.0
      %1492 = vmatprep.subr.mxu0 0.0
      %1493 = vmatpush1.msra.mxu0 0.0
      %1494 = vmatprep.subr.mxu0 0.0
      %1495 = vmatpush1.msra.mxu0 0.0
      %1496 = vmatprep.subr.mxu0 0.0
      %1497 = vmatpush1.msra.mxu0 0.0
      %1498 = vmatprep.subr.mxu0 0.0
      %1499 = vmatpush1.msra.mxu0 0.0
      %1500 = vmatprep.subr.mxu0 0.0
      %1501 = vmatpush1.msra.mxu0 0.0
      %1502 = vmatprep.subr.mxu0 0.0
      %1503 = vmatpush1.msra.mxu0 0.0
      %1504 = vmatprep.subr.mxu0 0.0
      %1505 = vmatpush1.msra.mxu0 0.0
      %1506 = vmatprep.subr.mxu0 0.0
      %1507 = vmatpush1.msra.mxu0 0.0
      %1508 = vmatprep.subr.mxu0 0.0
      %1509 = vmatpush1.msra.mxu0 0.0
      %1510 = vmatprep.subr.mxu0 0.0
      %1511 = vmatpush1.msra.mxu0 0.0
      %1512 = vmatprep.subr.mxu0 0.0
      %1513 = vmatpush1.msra.mxu0 0.0
      %1514 = vmatprep.subr.mxu0 0.0
      %1515 = vmatpush1.msra.mxu0 0.0
      %1516 = vmatprep.subr.mxu0 0.0
      %1517 = vmatpush1.msra.mxu0 0.0
      %1518 = vmatprep.subr.mxu0 0.0
      %1519 = vmatpush1.msra.mxu0 0.0
      %1520 = vmatprep.subr.mxu0 0.0
      %1521 = vmatpush1.msra.mxu0 0.0
      %1522 = vmatprep.subr.mxu0 0.0
      %1523 = vmatpush1.msra.mxu0 0.0
      %1524 = vmatprep.subr.mxu0 0.0
      %1525 = vmatpush1.msra.mxu0 0.0
      %1526 = vmatprep.subr.mxu0 0.0
      %1527 = vmatpush1.msra.mxu0 0.0
      %1528 = vmatprep.subr.mxu0 0.0
      %1529 = vmatpush1.msra.mxu0 0.0
      %1530 = vmatprep.subr.mxu0 0.0
      %1531 = vmatpush1.msra.mxu0 0.0
      %1532 = vmatprep.subr.mxu0 0.0
      %1533 = vmatpush1.msra.mxu0 0.0
      %1534 = vmatprep.subr.mxu0 0.0
      %1535 = vmatpush1.msra.mxu0 0.0
      %1536 = vmatprep.mubr.f32.mxu0 0.0
      %1537 = vmatmul.mubr.f32.gmra.mrb[0].mxu0 %v1386
      %v1538 = vpop.f32.mrb[0].mxu0
      %v1539 = vadd.f32 0.0, %v1538
      %v1540 = vpop.f32.mrb[0].mxu0
      %1541 = vmatprep.mubr.f32.mxu0 0.0
      %1542 = vmatmul.mubr.f32.gmra.mrb[0].mxu0 %v1389
      %v1543 = vpop.f32.mrb[0].mxu0
      %v1544 = vadd.f32 0.0, %v1543
      %v1545 = vpop.f32.mrb[0].mxu0
      %1546 = vmatprep.mubr.f32.mxu0 0.0
      %1547 = vmatmul.mubr.f32.gmra.mrb[0].mxu0 %v1392
      %v1548 = vpop.f32.mrb[0].mxu0
      %v1549 = vadd.f32 0.0, %v1548
      %v1550 = vpop.f32.mrb[0].mxu0
      %1551 = vmatprep.mubr.f32.mxu0 0.0
      %1552 = vmatmul.mubr.f32.gmra.mrb[0].mxu0 %v1395
      %v1553 = vpop.f32.mrb[0].mxu0
      %v1554 = vadd.f32 0.0, %v1553
      %v1555 = vpop.f32.mrb[0].mxu0
      %1556 = vmatprep.mubr.f32.mxu0 0.0
      %1557 = vmatmul.mubr.f32.gmra.mrb[0].mxu0 %v1398
      %v1558 = vpop.f32.mrb[0].mxu0
      %v1559 = vadd.f32 0.0, %v1558
      %v1560 = vpop.f32.mrb[0].mxu0
      %1561 = vmatprep.mubr.f32.mxu0 0.0
      %1562 = vmatmul.mubr.f32.gmra.mrb[0].mxu0 %v1401
      %v1563 = vpop.f32.mrb[0].mxu0
      %v1564 = vadd.f32 0.0, %v1563
      %v1565 = vpop.f32.mrb[0].mxu0
      %1566 = vmatprep.mubr.f32.mxu0 0.0
      %1567 = vmatmul.mubr.f32.gmra.mrb[0].mxu0 %v1404
      %v1568 = vpop.f32.mrb[0].mxu0
      %v1569 = vadd.f32 0.0, %v1568
      %v1570 = vpop.f32.mrb[0].mxu0
      %1571 = vmatprep.mubr.f32.mxu0 0.0
      %1572 = vmatmul.mubr.f32.gmra.mrb[0].mxu0 %v1407
      %v1573 = vpop.f32.mrb[0].mxu0
      %v1574 = vadd.f32 0.0, %v1573
      %v1575 = vpop.f32.mrb[0].mxu0
      %1576 = vmatprep.mubr.f32.mxu0 0.0
      %1577 = vmatmul.mubr.f32.gmra.mrb[0].mxu0 %v1410
      %v1578 = vpop.f32.mrb[0].mxu0
      %v1579 = vadd.f32 0.0, %v1578
      %v1580 = vpop.f32.mrb[0].mxu0
      %1581 = vmatprep.mubr.f32.mxu0 0.0
      %1582 = vmatmul.mubr.f32.gmra.mrb[0].mxu0 %v1413
      %v1583 = vpop.f32.mrb[0].mxu0
      %v1584 = vadd.f32 0.0, %v1583
      %v1585 = vpop.f32.mrb[0].mxu0
      %1586 = vmatprep.mubr.f32.mxu0 0.0
      %1587 = vmatmul.mubr.f32.gmra.mrb[0].mxu0 %v1416
      %v1588 = vpop.f32.mrb[0].mxu0
      %v1589 = vadd.f32 0.0, %v1588
      %v1590 = vpop.f32.mrb[0].mxu0
      %1591 = vmatprep.mubr.f32.mxu0 0.0
      %1592 = vmatmul.mubr.f32.gmra.mrb[0].mxu0 %v1419
      %v1593 = vpop.f32.mrb[0].mxu0
      %v1594 = vadd.f32 0.0, %v1593
      %v1595 = vpop.f32.mrb[0].mxu0
      %1596 = vmatprep.mubr.f32.mxu0 0.0
      %1597 = vmatmul.mubr.f32.gmra.mrb[0].mxu0 %v1422
      %v1598 = vpop.f32.mrb[0].mxu0
      %v1599 = vadd.f32 0.0, %v1598
      %v1600 = vpop.f32.mrb[0].mxu0
      %1601 = vmatprep.mubr.f32.mxu0 0.0
      %1602 = vmatmul.mubr.f32.gmra.mrb[0].mxu0 %v1425
      %v1603 = vpop.f32.mrb[0].mxu0
      %v1604 = vadd.f32 0.0, %v1603
      %v1605 = vpop.f32.mrb[0].mxu0
      %1606 = vmatprep.mubr.f32.mxu0 0.0
      %1607 = vmatmul.mubr.f32.gmra.mrb[0].mxu0 %v1428
      %v1608 = vpop.f32.mrb[0].mxu0
      %v1609 = vadd.f32 0.0, %v1608
      %v1610 = vpop.f32.mrb[0].mxu0
      %1611 = vmatprep.mubr.f32.mxu0 0.0
      %1612 = vmatmul.mubr.f32.gmra.mrb[0].mxu0 %v1431
      %v1613 = vpop.f32.mrb[0].mxu0
      %v1614 = vadd.f32 0.0, %v1613
      %v1615 = vpop.f32.mrb[0].mxu0
      %1616 = vmatprep.mubr.f32.mxu0 0.0
      %1617 = vmatmul.mubr.f32.gmra.mrb[0].mxu0 %v1434
      %v1618 = vpop.f32.mrb[0].mxu0
      %v1619 = vadd.f32 0.0, %v1618
      %v1620 = vpop.f32.mrb[0].mxu0
      %1621 = vmatprep.mubr.f32.mxu0 0.0
      %1622 = vmatmul.mubr.f32.gmra.mrb[0].mxu0 %v1437
      %v1623 = vpop.f32.mrb[0].mxu0
      %v1624 = vadd.f32 0.0, %v1623
      %v1625 = vpop.f32.mrb[0].mxu0
      %1626 = vmatprep.mubr.f32.mxu0 0.0
      %1627 = vmatmul.mubr.f32.gmra.mrb[0].mxu0 %v1440
      %v1628 = vpop.f32.mrb[0].mxu0
      %v1629 = vadd.f32 0.0, %v1628
      %v1630 = vpop.f32.mrb[0].mxu0
      %1631 = vmatprep.mubr.f32.mxu0 0.0
      %1632 = vmatmul.mubr.f32.gmra.mrb[0].mxu0 %v1443
      %v1633 = vpop.f32.mrb[0].mxu0
      %v1634 = vadd.f32 0.0, %v1633
      %v1635 = vpop.f32.mrb[0].mxu0
      %1636 = vmatprep.mubr.f32.mxu0 0.0
      %1637 = vmatmul.mubr.f32.gmra.mrb[0].mxu0 %v1446
      %v1638 = vpop.f32.mrb[0].mxu0
      %v1639 = vadd.f32 0.0, %v1638
      %v1640 = vpop.f32.mrb[0].mxu0
      %1641 = vmatprep.mubr.f32.mxu0 0.0
      %1642 = vmatmul.mubr.f32.gmra.mrb[0].mxu0 %v1449
      %v1643 = vpop.f32.mrb[0].mxu0
      %v1644 = vadd.f32 0.0, %v1643
      %v1645 = vpop.f32.mrb[0].mxu0
      %1646 = vmatprep.mubr.f32.mxu0 0.0
      %1647 = vmatmul.mubr.f32.gmra.mrb[0].mxu0 %v1452
      %v1648 = vpop.f32.mrb[0].mxu0
      %v1649 = vadd.f32 0.0, %v1648
      %v1650 = vpop.f32.mrb[0].mxu0
      %1651 = vmatprep.mubr.f32.mxu0 0.0
      %1652 = vmatmul.mubr.f32.gmra.mrb[0].mxu0 %v1455
      %v1653 = vpop.f32.mrb[0].mxu0
      %v1654 = vadd.f32 0.0, %v1653
      %v1655 = vpop.f32.mrb[0].mxu0
      %1656 = vmatprep.mubr.f32.mxu0 0.0
      %1657 = vmatmul.mubr.f32.gmra.mrb[0].mxu0 %v1458
      %v1658 = vpop.f32.mrb[0].mxu0
      %v1659 = vadd.f32 0.0, %v1658
      %v1660 = vpop.f32.mrb[0].mxu0
      %1661 = vmatprep.mubr.f32.mxu0 0.0
      %1662 = vmatmul.mubr.f32.gmra.mrb[0].mxu0 %v1461
      %v1663 = vpop.f32.mrb[0].mxu0
      %v1664 = vadd.f32 0.0, %v1663
      %v1665 = vpop.f32.mrb[0].mxu0
      %1666 = vmatprep.mubr.f32.mxu0 0.0
      %1667 = vmatmul.mubr.f32.gmra.mrb[0].mxu0 %v1464
      %v1668 = vpop.f32.mrb[0].mxu0
      %v1669 = vadd.f32 0.0, %v1668
      %v1670 = vpop.f32.mrb[0].mxu0
      %1671 = vmatprep.mubr.f32.mxu0 0.0
      %1672 = vmatmul.mubr.f32.gmra.mrb[0].mxu0 %v1467
      %v1673 = vpop.f32.mrb[0].mxu0
      %v1674 = vadd.f32 0.0, %v1673
      %v1675 = vpop.f32.mrb[0].mxu0
      %1676 = vdwg.mxu0
      %v1677 = vld [vmem:[#allocation2] sm:$0xff]
      %v1678 = vld [vmem:[#allocation2 + $0x8] sm:$0xff]
      %v1679 = vld [vmem:[#allocation2 + $0x10] sm:$0xff]
      %v1680 = vld [vmem:[#allocation2 + $0x18] sm:$0xff]
      %v1681 = vld [vmem:[#allocation2 + $0x20] sm:$0xff]
      %v1682 = vld [vmem:[#allocation2 + $0x28] sm:$0xff]
      %v1683 = vld [vmem:[#allocation2 + $0x30] sm:$0xff]
      %v1684 = vld [vmem:[#allocation2 + $0x38] sm:$0xff]
      %v1685 = vld [vmem:[#allocation2 + $0x40] sm:$0xff]
      %v1686 = vld [vmem:[#allocation2 + $0x48] sm:$0xff]
      %v1687 = vld [vmem:[#allocation2 + $0x50] sm:$0xff]
      %v1688 = vld [vmem:[#allocation2 + $0x58] sm:$0xff]
      %v1689 = vld [vmem:[#allocation2 + $0x60] sm:$0xff]
      %v1690 = vld [vmem:[#allocation2 + $0x68] sm:$0xff]
      %v1691 = vld [vmem:[#allocation2 + $0x70] sm:$0xff]
      %v1692 = vld [vmem:[#allocation2 + $0x78] sm:$0xff]
      %v1693 = vld [vmem:[#allocation2 + $0x80] sm:$0xff]
      %v1694 = vld [vmem:[#allocation2 + $0x88] sm:$0xff]
      %v1695 = vld [vmem:[#allocation2 + $0x90] sm:$0xff]
      %v1696 = vld [vmem:[#allocation2 + $0x98] sm:$0xff]
      %v1697 = vld [vmem:[#allocation2 + $0xa0] sm:$0xff]
      %v1698 = vld [vmem:[#allocation2 + $0xa8] sm:$0xff]
      %v1699 = vld [vmem:[#allocation2 + $0xb0] sm:$0xff]
      %v1700 = vld [vmem:[#allocation2 + $0xb8] sm:$0xff]
      %v1701 = vld [vmem:[#allocation2 + $0xc0] sm:$0xff]
      %v1702 = vld [vmem:[#allocation2 + $0xc8] sm:$0xff]
      %v1703 = vld [vmem:[#allocation2 + $0xd0] sm:$0xff]
      %v1704 = vld [vmem:[#allocation2 + $0xd8] sm:$0x3f]
      %v1705 = vadd.f32 %v1677, %v1539
      %v1706 = vadd.f32 %v1678, %v1544
      %v1707 = vadd.f32 %v1679, %v1549
      %v1708 = vadd.f32 %v1680, %v1554
      %v1709 = vadd.f32 %v1681, %v1559
      %v1710 = vadd.f32 %v1682, %v1564
      %v1711 = vadd.f32 %v1683, %v1569
      %v1712 = vadd.f32 %v1684, %v1574
      %v1713 = vadd.f32 %v1685, %v1579
      %v1714 = vadd.f32 %v1686, %v1584
      %v1715 = vadd.f32 %v1687, %v1589
      %v1716 = vadd.f32 %v1688, %v1594
      %v1717 = vadd.f32 %v1689, %v1599
      %v1718 = vadd.f32 %v1690, %v1604
      %v1719 = vadd.f32 %v1691, %v1609
      %v1720 = vadd.f32 %v1692, %v1614
      %v1721 = vadd.f32 %v1693, %v1619
      %v1722 = vadd.f32 %v1694, %v1624
      %v1723 = vadd.f32 %v1695, %v1629
      %v1724 = vadd.f32 %v1696, %v1634
      %v1725 = vadd.f32 %v1697, %v1639
      %v1726 = vadd.f32 %v1698, %v1644
      %v1727 = vadd.f32 %v1699, %v1649
      %v1728 = vadd.f32 %v1700, %v1654
      %v1729 = vadd.f32 %v1701, %v1659
      %v1730 = vadd.f32 %v1702, %v1664
      %v1731 = vadd.f32 %v1703, %v1669
      %v1732 = vadd.f32 %v1704, %v1674
      %1733 = vst.msk [vmem:[#allocation2] sm:$0xff] %vm519, %v1705
      %1734 = vst.msk [vmem:[#allocation2 + $0x8] sm:$0xff] %vm519, %v1706
      %1735 = vst.msk [vmem:[#allocation2 + $0x10] sm:$0xff] %vm519, %v1707
      %1736 = vst.msk [vmem:[#allocation2 + $0x18] sm:$0xff] %vm519, %v1708
      %1737 = vst.msk [vmem:[#allocation2 + $0x20] sm:$0xff] %vm519, %v1709
      %1738 = vst.msk [vmem:[#allocation2 + $0x28] sm:$0xff] %vm519, %v1710
      %1739 = vst.msk [vmem:[#allocation2 + $0x30] sm:$0xff] %vm519, %v1711
      %1740 = vst.msk [vmem:[#allocation2 + $0x38] sm:$0xff] %vm519, %v1712
      %1741 = vst.msk [vmem:[#allocation2 + $0x40] sm:$0xff] %vm519, %v1713
      %1742 = vst.msk [vmem:[#allocation2 + $0x48] sm:$0xff] %vm519, %v1714
      %1743 = vst.msk [vmem:[#allocation2 + $0x50] sm:$0xff] %vm519, %v1715
      %1744 = vst.msk [vmem:[#allocation2 + $0x58] sm:$0xff] %vm519, %v1716
      %1745 = vst.msk [vmem:[#allocation2 + $0x60] sm:$0xff] %vm519, %v1717
      %1746 = vst.msk [vmem:[#allocation2 + $0x68] sm:$0xff] %vm519, %v1718
      %1747 = vst.msk [vmem:[#allocation2 + $0x70] sm:$0xff] %vm519, %v1719
      %1748 = vst.msk [vmem:[#allocation2 + $0x78] sm:$0xff] %vm519, %v1720
      %1749 = vst.msk [vmem:[#allocation2 + $0x80] sm:$0xff] %vm519, %v1721
      %1750 = vst.msk [vmem:[#allocation2 + $0x88] sm:$0xff] %vm519, %v1722
      %1751 = vst.msk [vmem:[#allocation2 + $0x90] sm:$0xff] %vm519, %v1723
      %1752 = vst.msk [vmem:[#allocation2 + $0x98] sm:$0xff] %vm519, %v1724
      %1753 = vst.msk [vmem:[#allocation2 + $0xa0] sm:$0xff] %vm519, %v1725
      %1754 = vst.msk [vmem:[#allocation2 + $0xa8] sm:$0xff] %vm519, %v1726
      %1755 = vst.msk [vmem:[#allocation2 + $0xb0] sm:$0xff] %vm519, %v1727
      %1756 = vst.msk [vmem:[#allocation2 + $0xb8] sm:$0xff] %vm519, %v1728
      %1757 = vst.msk [vmem:[#allocation2 + $0xc0] sm:$0xff] %vm519, %v1729
      %1758 = vst.msk [vmem:[#allocation2 + $0xc8] sm:$0xff] %vm519, %v1730
      %1759 = vst.msk [vmem:[#allocation2 + $0xd0] sm:$0xff] %vm519, %v1731
      %1760 = vst.msk [vmem:[#allocation2 + $0xd8] sm:$0x3f] %vm547, %v1732
      %v1761 = vld [vmem:[%s166 + $0x11] sm:$0xff]
      %v1762 = vld [vmem:[%s166 + $0x19] sm:$0xff]
      %v1763 = vld [vmem:[%s166 + $0x21] sm:$0xff]
      %v1764 = vld [vmem:[%s166 + $0x29] sm:$0xff]
      %v1765 = vld [vmem:[%s166 + $0x31] sm:$0xff]
      %v1766 = vld [vmem:[%s166 + $0x39] sm:$0xff]
      %v1767 = vld [vmem:[%s166 + $0x41] sm:$0xff]
      %v1768 = vld [vmem:[%s166 + $0x49] sm:$0xff]
      %v1769 = vld [vmem:[%s166 + $0x51] sm:$0xff]
      %v1770 = vld [vmem:[%s166 + $0x59] sm:$0xff]
      %v1771 = vld [vmem:[%s166 + $0x61] sm:$0xff]
      %v1772 = vld [vmem:[%s166 + $0x69] sm:$0xff]
      %v1773 = vld [vmem:[%s166 + $0x71] sm:$0xff]
      %v1774 = vld [vmem:[%s166 + $0x79] sm:$0xff]
      %v1775 = vld [vmem:[%s166 + $0x81] sm:$0xff]
      %v1776 = vld [vmem:[%s166 + $0x89] sm:$0xff]
      %v1777 = vld [vmem:[%s166 + $0x91] sm:$0xff]
      %v1778 = vld [vmem:[%s166 + $0x99] sm:$0xff]
      %v1779 = vld [vmem:[%s166 + $0xa1] sm:$0xff]
      %v1780 = vld [vmem:[%s166 + $0xa9] sm:$0xff]
      %v1781 = vld [vmem:[%s166 + $0xb1] sm:$0xff]
      %v1782 = vld [vmem:[%s166 + $0xb9] sm:$0xff]
      %v1783 = vld [vmem:[%s166 + $0xc1] sm:$0xff]
      %v1784 = vld [vmem:[%s166 + $0xc9] sm:$0xff]
      %v1785 = vld [vmem:[%s166 + $0xd1] sm:$0xff]
      %v1786 = vld [vmem:[%s166 + $0xd9] sm:$0xff]
      %v1787 = vld [vmem:[%s166 + $0xe1] sm:$0xff]
      %v1788 = vld [vmem:[%s166 + $0xe9] sm:$0x3f]
      %v1790 = vsel %vm225, %v1761, 0
      %v1793 = vsel %vm225, %v1762, 0
      %v1796 = vsel %vm225, %v1763, 0
      %v1799 = vsel %vm225, %v1764, 0
      %v1802 = vsel %vm225, %v1765, 0
      %v1805 = vsel %vm225, %v1766, 0
      %v1808 = vsel %vm225, %v1767, 0
      %v1811 = vsel %vm225, %v1768, 0
      %v1814 = vsel %vm225, %v1769, 0
      %v1817 = vsel %vm225, %v1770, 0
      %v1820 = vsel %vm225, %v1771, 0
      %v1823 = vsel %vm225, %v1772, 0
      %v1826 = vsel %vm225, %v1773, 0
      %v1829 = vsel %vm225, %v1774, 0
      %v1832 = vsel %vm225, %v1775, 0
      %v1835 = vsel %vm225, %v1776, 0
      %v1838 = vsel %vm225, %v1777, 0
      %v1841 = vsel %vm225, %v1778, 0
      %v1844 = vsel %vm225, %v1779, 0
      %v1847 = vsel %vm225, %v1780, 0
      %v1850 = vsel %vm225, %v1781, 0
      %v1853 = vsel %vm225, %v1782, 0
      %v1856 = vsel %vm225, %v1783, 0
      %v1859 = vsel %vm225, %v1784, 0
      %v1862 = vsel %vm225, %v1785, 0
      %v1865 = vsel %vm225, %v1786, 0
      %v1868 = vsel %vm225, %v1787, 0
      %v1871 = vsel %vm225, %v1788, 0
      %v1874 = vsel %vm310, %v181, 0
      %1876 = vmatprep.subr.mxu0 0.0
      %1877 = vmatpush1.msra.mxu0 %v1874
      %1878 = vmatprep.subr.mxu0 0.0
      %1879 = vmatpush1.msra.mxu0 0.0
      %1880 = vmatprep.subr.mxu0 0.0
      %1881 = vmatpush1.msra.mxu0 0.0
      %1882 = vmatprep.subr.mxu0 0.0
      %1883 = vmatpush1.msra.mxu0 0.0
      %1884 = vmatprep.subr.mxu0 0.0
      %1885 = vmatpush1.msra.mxu0 0.0
      %1886 = vmatprep.subr.mxu0 0.0
      %1887 = vmatpush1.msra.mxu0 0.0
      %1888 = vmatprep.subr.mxu0 0.0
      %1889 = vmatpush1.msra.mxu0 0.0
      %1890 = vmatprep.subr.mxu0 0.0
      %1891 = vmatpush1.msra.mxu0 0.0
      %1892 = vmatprep.subr.mxu0 0.0
      %1893 = vmatpush1.msra.mxu0 0.0
      %1894 = vmatprep.subr.mxu0 0.0
      %1895 = vmatpush1.msra.mxu0 0.0
      %1896 = vmatprep.subr.mxu0 0.0
      %1897 = vmatpush1.msra.mxu0 0.0
      %1898 = vmatprep.subr.mxu0 0.0
      %1899 = vmatpush1.msra.mxu0 0.0
      %1900 = vmatprep.subr.mxu0 0.0
      %1901 = vmatpush1.msra.mxu0 0.0
      %1902 = vmatprep.subr.mxu0 0.0
      %1903 = vmatpush1.msra.mxu0 0.0
      %1904 = vmatprep.subr.mxu0 0.0
      %1905 = vmatpush1.msra.mxu0 0.0
      %1906 = vmatprep.subr.mxu0 0.0
      %1907 = vmatpush1.msra.mxu0 0.0
      %1908 = vmatprep.subr.mxu0 0.0
      %1909 = vmatpush1.msra.mxu0 0.0
      %1910 = vmatprep.subr.mxu0 0.0
      %1911 = vmatpush1.msra.mxu0 0.0
      %1912 = vmatprep.subr.mxu0 0.0
      %1913 = vmatpush1.msra.mxu0 0.0
      %1914 = vmatprep.subr.mxu0 0.0
      %1915 = vmatpush1.msra.mxu0 0.0
      %1916 = vmatprep.subr.mxu0 0.0
      %1917 = vmatpush1.msra.mxu0 0.0
      %1918 = vmatprep.subr.mxu0 0.0
      %1919 = vmatpush1.msra.mxu0 0.0
      %1920 = vmatprep.subr.mxu0 0.0
      %1921 = vmatpush1.msra.mxu0 0.0
      %1922 = vmatprep.subr.mxu0 0.0
      %1923 = vmatpush1.msra.mxu0 0.0
      %1924 = vmatprep.subr.mxu0 0.0
      %1925 = vmatpush1.msra.mxu0 0.0
      %1926 = vmatprep.subr.mxu0 0.0
      %1927 = vmatpush1.msra.mxu0 0.0
      %1928 = vmatprep.subr.mxu0 0.0
      %1929 = vmatpush1.msra.mxu0 0.0
      %1930 = vmatprep.subr.mxu0 0.0
      %1931 = vmatpush1.msra.mxu0 0.0
      %1932 = vmatprep.subr.mxu0 0.0
      %1933 = vmatpush1.msra.mxu0 0.0
      %1934 = vmatprep.subr.mxu0 0.0
      %1935 = vmatpush1.msra.mxu0 0.0
      %1936 = vmatprep.subr.mxu0 0.0
      %1937 = vmatpush1.msra.mxu0 0.0
      %1938 = vmatprep.subr.mxu0 0.0
      %1939 = vmatpush1.msra.mxu0 0.0
      %1940 = vmatprep.mubr.f32.mxu0 0.0
      %1941 = vmatmul.mubr.f32.gmra.mrb[0].mxu0 %v1790
      %v1942 = vpop.f32.mrb[0].mxu0
      %v1943 = vadd.f32 0.0, %v1942
      %v1944 = vpop.f32.mrb[0].mxu0
      %1945 = vmatprep.mubr.f32.mxu0 0.0
      %1946 = vmatmul.mubr.f32.gmra.mrb[0].mxu0 %v1793
      %v1947 = vpop.f32.mrb[0].mxu0
      %v1948 = vadd.f32 0.0, %v1947
      %v1949 = vpop.f32.mrb[0].mxu0
      %1950 = vmatprep.mubr.f32.mxu0 0.0
      %1951 = vmatmul.mubr.f32.gmra.mrb[0].mxu0 %v1796
      %v1952 = vpop.f32.mrb[0].mxu0
      %v1953 = vadd.f32 0.0, %v1952
      %v1954 = vpop.f32.mrb[0].mxu0
      %1955 = vmatprep.mubr.f32.mxu0 0.0
      %1956 = vmatmul.mubr.f32.gmra.mrb[0].mxu0 %v1799
      %v1957 = vpop.f32.mrb[0].mxu0
      %v1958 = vadd.f32 0.0, %v1957
      %v1959 = vpop.f32.mrb[0].mxu0
      %1960 = vmatprep.mubr.f32.mxu0 0.0
      %1961 = vmatmul.mubr.f32.gmra.mrb[0].mxu0 %v1802
      %v1962 = vpop.f32.mrb[0].mxu0
      %v1963 = vadd.f32 0.0, %v1962
      %v1964 = vpop.f32.mrb[0].mxu0
      %1965 = vmatprep.mubr.f32.mxu0 0.0
      %1966 = vmatmul.mubr.f32.gmra.mrb[0].mxu0 %v1805
      %v1967 = vpop.f32.mrb[0].mxu0
      %v1968 = vadd.f32 0.0, %v1967
      %v1969 = vpop.f32.mrb[0].mxu0
      %1970 = vmatprep.mubr.f32.mxu0 0.0
      %1971 = vmatmul.mubr.f32.gmra.mrb[0].mxu0 %v1808
      %v1972 = vpop.f32.mrb[0].mxu0
      %v1973 = vadd.f32 0.0, %v1972
      %v1974 = vpop.f32.mrb[0].mxu0
      %1975 = vmatprep.mubr.f32.mxu0 0.0
      %1976 = vmatmul.mubr.f32.gmra.mrb[0].mxu0 %v1811
      %v1977 = vpop.f32.mrb[0].mxu0
      %v1978 = vadd.f32 0.0, %v1977
      %v1979 = vpop.f32.mrb[0].mxu0
      %1980 = vmatprep.mubr.f32.mxu0 0.0
      %1981 = vmatmul.mubr.f32.gmra.mrb[0].mxu0 %v1814
      %v1982 = vpop.f32.mrb[0].mxu0
      %v1983 = vadd.f32 0.0, %v1982
      %v1984 = vpop.f32.mrb[0].mxu0
      %1985 = vmatprep.mubr.f32.mxu0 0.0
      %1986 = vmatmul.mubr.f32.gmra.mrb[0].mxu0 %v1817
      %v1987 = vpop.f32.mrb[0].mxu0
      %v1988 = vadd.f32 0.0, %v1987
      %v1989 = vpop.f32.mrb[0].mxu0
      %1990 = vmatprep.mubr.f32.mxu0 0.0
      %1991 = vmatmul.mubr.f32.gmra.mrb[0].mxu0 %v1820
      %v1992 = vpop.f32.mrb[0].mxu0
      %v1993 = vadd.f32 0.0, %v1992
      %v1994 = vpop.f32.mrb[0].mxu0
      %1995 = vmatprep.mubr.f32.mxu0 0.0
      %1996 = vmatmul.mubr.f32.gmra.mrb[0].mxu0 %v1823
      %v1997 = vpop.f32.mrb[0].mxu0
      %v1998 = vadd.f32 0.0, %v1997
      %v1999 = vpop.f32.mrb[0].mxu0
      %2000 = vmatprep.mubr.f32.mxu0 0.0
      %2001 = vmatmul.mubr.f32.gmra.mrb[0].mxu0 %v1826
      %v2002 = vpop.f32.mrb[0].mxu0
      %v2003 = vadd.f32 0.0, %v2002
      %v2004 = vpop.f32.mrb[0].mxu0
      %2005 = vmatprep.mubr.f32.mxu0 0.0
      %2006 = vmatmul.mubr.f32.gmra.mrb[0].mxu0 %v1829
      %v2007 = vpop.f32.mrb[0].mxu0
      %v2008 = vadd.f32 0.0, %v2007
      %v2009 = vpop.f32.mrb[0].mxu0
      %2010 = vmatprep.mubr.f32.mxu0 0.0
      %2011 = vmatmul.mubr.f32.gmra.mrb[0].mxu0 %v1832
      %v2012 = vpop.f32.mrb[0].mxu0
      %v2013 = vadd.f32 0.0, %v2012
      %v2014 = vpop.f32.mrb[0].mxu0
      %2015 = vmatprep.mubr.f32.mxu0 0.0
      %2016 = vmatmul.mubr.f32.gmra.mrb[0].mxu0 %v1835
      %v2017 = vpop.f32.mrb[0].mxu0
      %v2018 = vadd.f32 0.0, %v2017
      %v2019 = vpop.f32.mrb[0].mxu0
      %2020 = vmatprep.mubr.f32.mxu0 0.0
      %2021 = vmatmul.mubr.f32.gmra.mrb[0].mxu0 %v1838
      %v2022 = vpop.f32.mrb[0].mxu0
      %v2023 = vadd.f32 0.0, %v2022
      %v2024 = vpop.f32.mrb[0].mxu0
      %2025 = vmatprep.mubr.f32.mxu0 0.0
      %2026 = vmatmul.mubr.f32.gmra.mrb[0].mxu0 %v1841
      %v2027 = vpop.f32.mrb[0].mxu0
      %v2028 = vadd.f32 0.0, %v2027
      %v2029 = vpop.f32.mrb[0].mxu0
      %2030 = vmatprep.mubr.f32.mxu0 0.0
      %2031 = vmatmul.mubr.f32.gmra.mrb[0].mxu0 %v1844
      %v2032 = vpop.f32.mrb[0].mxu0
      %v2033 = vadd.f32 0.0, %v2032
      %v2034 = vpop.f32.mrb[0].mxu0
      %2035 = vmatprep.mubr.f32.mxu0 0.0
      %2036 = vmatmul.mubr.f32.gmra.mrb[0].mxu0 %v1847
      %v2037 = vpop.f32.mrb[0].mxu0
      %v2038 = vadd.f32 0.0, %v2037
      %v2039 = vpop.f32.mrb[0].mxu0
      %2040 = vmatprep.mubr.f32.mxu0 0.0
      %2041 = vmatmul.mubr.f32.gmra.mrb[0].mxu0 %v1850
      %v2042 = vpop.f32.mrb[0].mxu0
      %v2043 = vadd.f32 0.0, %v2042
      %v2044 = vpop.f32.mrb[0].mxu0
      %2045 = vmatprep.mubr.f32.mxu0 0.0
      %2046 = vmatmul.mubr.f32.gmra.mrb[0].mxu0 %v1853
      %v2047 = vpop.f32.mrb[0].mxu0
      %v2048 = vadd.f32 0.0, %v2047
      %v2049 = vpop.f32.mrb[0].mxu0
      %2050 = vmatprep.mubr.f32.mxu0 0.0
      %2051 = vmatmul.mubr.f32.gmra.mrb[0].mxu0 %v1856
      %v2052 = vpop.f32.mrb[0].mxu0
      %v2053 = vadd.f32 0.0, %v2052
      %v2054 = vpop.f32.mrb[0].mxu0
      %2055 = vmatprep.mubr.f32.mxu0 0.0
      %2056 = vmatmul.mubr.f32.gmra.mrb[0].mxu0 %v1859
      %v2057 = vpop.f32.mrb[0].mxu0
      %v2058 = vadd.f32 0.0, %v2057
      %v2059 = vpop.f32.mrb[0].mxu0
      %2060 = vmatprep.mubr.f32.mxu0 0.0
      %2061 = vmatmul.mubr.f32.gmra.mrb[0].mxu0 %v1862
      %v2062 = vpop.f32.mrb[0].mxu0
      %v2063 = vadd.f32 0.0, %v2062
      %v2064 = vpop.f32.mrb[0].mxu0
      %2065 = vmatprep.mubr.f32.mxu0 0.0
      %2066 = vmatmul.mubr.f32.gmra.mrb[0].mxu0 %v1865
      %v2067 = vpop.f32.mrb[0].mxu0
      %v2068 = vadd.f32 0.0, %v2067
      %v2069 = vpop.f32.mrb[0].mxu0
      %2070 = vmatprep.mubr.f32.mxu0 0.0
      %2071 = vmatmul.mubr.f32.gmra.mrb[0].mxu0 %v1868
      %v2072 = vpop.f32.mrb[0].mxu0
      %v2073 = vadd.f32 0.0, %v2072
      %v2074 = vpop.f32.mrb[0].mxu0
      %2075 = vmatprep.mubr.f32.mxu0 0.0
      %2076 = vmatmul.mubr.f32.gmra.mrb[0].mxu0 %v1871
      %v2077 = vpop.f32.mrb[0].mxu0
      %v2078 = vadd.f32 0.0, %v2077
      %v2079 = vpop.f32.mrb[0].mxu0
      %2080 = vdwg.mxu0
      %v2081 = vld [vmem:[#allocation2] sm:$0xff]
      %v2082 = vld [vmem:[#allocation2 + $0x8] sm:$0xff]
      %v2083 = vld [vmem:[#allocation2 + $0x10] sm:$0xff]
      %v2084 = vld [vmem:[#allocation2 + $0x18] sm:$0xff]
      %v2085 = vld [vmem:[#allocation2 + $0x20] sm:$0xff]
      %v2086 = vld [vmem:[#allocation2 + $0x28] sm:$0xff]
      %v2087 = vld [vmem:[#allocation2 + $0x30] sm:$0xff]
      %v2088 = vld [vmem:[#allocation2 + $0x38] sm:$0xff]
      %v2089 = vld [vmem:[#allocation2 + $0x40] sm:$0xff]
      %v2090 = vld [vmem:[#allocation2 + $0x48] sm:$0xff]
      %v2091 = vld [vmem:[#allocation2 + $0x50] sm:$0xff]
      %v2092 = vld [vmem:[#allocation2 + $0x58] sm:$0xff]
      %v2093 = vld [vmem:[#allocation2 + $0x60] sm:$0xff]
      %v2094 = vld [vmem:[#allocation2 + $0x68] sm:$0xff]
      %v2095 = vld [vmem:[#allocation2 + $0x70] sm:$0xff]
      %v2096 = vld [vmem:[#allocation2 + $0x78] sm:$0xff]
      %v2097 = vld [vmem:[#allocation2 + $0x80] sm:$0xff]
      %v2098 = vld [vmem:[#allocation2 + $0x88] sm:$0xff]
      %v2099 = vld [vmem:[#allocation2 + $0x90] sm:$0xff]
      %v2100 = vld [vmem:[#allocation2 + $0x98] sm:$0xff]
      %v2101 = vld [vmem:[#allocation2 + $0xa0] sm:$0xff]
      %v2102 = vld [vmem:[#allocation2 + $0xa8] sm:$0xff]
      %v2103 = vld [vmem:[#allocation2 + $0xb0] sm:$0xff]
      %v2104 = vld [vmem:[#allocation2 + $0xb8] sm:$0xff]
      %v2105 = vld [vmem:[#allocation2 + $0xc0] sm:$0xff]
      %v2106 = vld [vmem:[#allocation2 + $0xc8] sm:$0xff]
      %v2107 = vld [vmem:[#allocation2 + $0xd0] sm:$0xff]
      %v2108 = vld [vmem:[#allocation2 + $0xd8] sm:$0x3f]
      %v2109 = vadd.f32 %v2081, %v1943
      %v2110 = vadd.f32 %v2082, %v1948
      %v2111 = vadd.f32 %v2083, %v1953
      %v2112 = vadd.f32 %v2084, %v1958
      %v2113 = vadd.f32 %v2085, %v1963
      %v2114 = vadd.f32 %v2086, %v1968
      %v2115 = vadd.f32 %v2087, %v1973
      %v2116 = vadd.f32 %v2088, %v1978
      %v2117 = vadd.f32 %v2089, %v1983
      %v2118 = vadd.f32 %v2090, %v1988
      %v2119 = vadd.f32 %v2091, %v1993
      %v2120 = vadd.f32 %v2092, %v1998
      %v2121 = vadd.f32 %v2093, %v2003
      %v2122 = vadd.f32 %v2094, %v2008
      %v2123 = vadd.f32 %v2095, %v2013
      %v2124 = vadd.f32 %v2096, %v2018
      %v2125 = vadd.f32 %v2097, %v2023
      %v2126 = vadd.f32 %v2098, %v2028
      %v2127 = vadd.f32 %v2099, %v2033
      %v2128 = vadd.f32 %v2100, %v2038
      %v2129 = vadd.f32 %v2101, %v2043
      %v2130 = vadd.f32 %v2102, %v2048
      %v2131 = vadd.f32 %v2103, %v2053
      %v2132 = vadd.f32 %v2104, %v2058
      %v2133 = vadd.f32 %v2105, %v2063
      %v2134 = vadd.f32 %v2106, %v2068
      %v2135 = vadd.f32 %v2107, %v2073
      %v2136 = vadd.f32 %v2108, %v2078
      %2137 = vst.msk [vmem:[#allocation2] sm:$0xff] %vm519, %v2109
      %2138 = vst.msk [vmem:[#allocation2 + $0x8] sm:$0xff] %vm519, %v2110
      %2139 = vst.msk [vmem:[#allocation2 + $0x10] sm:$0xff] %vm519, %v2111
      %2140 = vst.msk [vmem:[#allocation2 + $0x18] sm:$0xff] %vm519, %v2112
      %2141 = vst.msk [vmem:[#allocation2 + $0x20] sm:$0xff] %vm519, %v2113
      %2142 = vst.msk [vmem:[#allocation2 + $0x28] sm:$0xff] %vm519, %v2114
      %2143 = vst.msk [vmem:[#allocation2 + $0x30] sm:$0xff] %vm519, %v2115
      %2144 = vst.msk [vmem:[#allocation2 + $0x38] sm:$0xff] %vm519, %v2116
      %2145 = vst.msk [vmem:[#allocation2 + $0x40] sm:$0xff] %vm519, %v2117
      %2146 = vst.msk [vmem:[#allocation2 + $0x48] sm:$0xff] %vm519, %v2118
      %2147 = vst.msk [vmem:[#allocation2 + $0x50] sm:$0xff] %vm519, %v2119
      %2148 = vst.msk [vmem:[#allocation2 + $0x58] sm:$0xff] %vm519, %v2120
      %2149 = vst.msk [vmem:[#allocation2 + $0x60] sm:$0xff] %vm519, %v2121
      %2150 = vst.msk [vmem:[#allocation2 + $0x68] sm:$0xff] %vm519, %v2122
      %2151 = vst.msk [vmem:[#allocation2 + $0x70] sm:$0xff] %vm519, %v2123
      %2152 = vst.msk [vmem:[#allocation2 + $0x78] sm:$0xff] %vm519, %v2124
      %2153 = vst.msk [vmem:[#allocation2 + $0x80] sm:$0xff] %vm519, %v2125
      %2154 = vst.msk [vmem:[#allocation2 + $0x88] sm:$0xff] %vm519, %v2126
      %2155 = vst.msk [vmem:[#allocation2 + $0x90] sm:$0xff] %vm519, %v2127
      %2156 = vst.msk [vmem:[#allocation2 + $0x98] sm:$0xff] %vm519, %v2128
      %2157 = vst.msk [vmem:[#allocation2 + $0xa0] sm:$0xff] %vm519, %v2129
      %2158 = vst.msk [vmem:[#allocation2 + $0xa8] sm:$0xff] %vm519, %v2130
      %2159 = vst.msk [vmem:[#allocation2 + $0xb0] sm:$0xff] %vm519, %v2131
      %2160 = vst.msk [vmem:[#allocation2 + $0xb8] sm:$0xff] %vm519, %v2132
      %2161 = vst.msk [vmem:[#allocation2 + $0xc0] sm:$0xff] %vm519, %v2133
      %2162 = vst.msk [vmem:[#allocation2 + $0xc8] sm:$0xff] %vm519, %v2134
      %2163 = vst.msk [vmem:[#allocation2 + $0xd0] sm:$0xff] %vm519, %v2135
      %2164 = vst.msk [vmem:[#allocation2 + $0xd8] sm:$0x3f] %vm547, %v2136
      %v2165 = vld [vmem:[%s166 + $0x12] sm:$0xff]
      %v2166 = vld [vmem:[%s166 + $0x1a] sm:$0xff]
      %v2167 = vld [vmem:[%s166 + $0x22] sm:$0xff]
      %v2168 = vld [vmem:[%s166 + $0x2a] sm:$0xff]
      %v2169 = vld [vmem:[%s166 + $0x32] sm:$0xff]
      %v2170 = vld [vmem:[%s166 + $0x3a] sm:$0xff]
      %v2171 = vld [vmem:[%s166 + $0x42] sm:$0xff]
      %v2172 = vld [vmem:[%s166 + $0x4a] sm:$0xff]
      %v2173 = vld [vmem:[%s166 + $0x52] sm:$0xff]
      %v2174 = vld [vmem:[%s166 + $0x5a] sm:$0xff]
      %v2175 = vld [vmem:[%s166 + $0x62] sm:$0xff]
      %v2176 = vld [vmem:[%s166 + $0x6a] sm:$0xff]
      %v2177 = vld [vmem:[%s166 + $0x72] sm:$0xff]
      %v2178 = vld [vmem:[%s166 + $0x7a] sm:$0xff]
      %v2179 = vld [vmem:[%s166 + $0x82] sm:$0xff]
      %v2180 = vld [vmem:[%s166 + $0x8a] sm:$0xff]
      %v2181 = vld [vmem:[%s166 + $0x92] sm:$0xff]
      %v2182 = vld [vmem:[%s166 + $0x9a] sm:$0xff]
      %v2183 = vld [vmem:[%s166 + $0xa2] sm:$0xff]
      %v2184 = vld [vmem:[%s166 + $0xaa] sm:$0xff]
      %v2185 = vld [vmem:[%s166 + $0xb2] sm:$0xff]
      %v2186 = vld [vmem:[%s166 + $0xba] sm:$0xff]
      %v2187 = vld [vmem:[%s166 + $0xc2] sm:$0xff]
      %v2188 = vld [vmem:[%s166 + $0xca] sm:$0xff]
      %v2189 = vld [vmem:[%s166 + $0xd2] sm:$0xff]
      %v2190 = vld [vmem:[%s166 + $0xda] sm:$0xff]
      %v2191 = vld [vmem:[%s166 + $0xe2] sm:$0xff]
      %v2192 = vld [vmem:[%s166 + $0xea] sm:$0x3f]
      %v2194 = vsel %vm225, %v2165, 0
      %v2197 = vsel %vm225, %v2166, 0
      %v2200 = vsel %vm225, %v2167, 0
      %v2203 = vsel %vm225, %v2168, 0
      %v2206 = vsel %vm225, %v2169, 0
      %v2209 = vsel %vm225, %v2170, 0
      %v2212 = vsel %vm225, %v2171, 0
      %v2215 = vsel %vm225, %v2172, 0
      %v2218 = vsel %vm225, %v2173, 0
      %v2221 = vsel %vm225, %v2174, 0
      %v2224 = vsel %vm225, %v2175, 0
      %v2227 = vsel %vm225, %v2176, 0
      %v2230 = vsel %vm225, %v2177, 0
      %v2233 = vsel %vm225, %v2178, 0
      %v2236 = vsel %vm225, %v2179, 0
      %v2239 = vsel %vm225, %v2180, 0
      %v2242 = vsel %vm225, %v2181, 0
      %v2245 = vsel %vm225, %v2182, 0
      %v2248 = vsel %vm225, %v2183, 0
      %v2251 = vsel %vm225, %v2184, 0
      %v2254 = vsel %vm225, %v2185, 0
      %v2257 = vsel %vm225, %v2186, 0
      %v2260 = vsel %vm225, %v2187, 0
      %v2263 = vsel %vm225, %v2188, 0
      %v2266 = vsel %vm225, %v2189, 0
      %v2269 = vsel %vm225, %v2190, 0
      %v2272 = vsel %vm225, %v2191, 0
      %v2275 = vsel %vm225, %v2192, 0
      %v2278 = vsel %vm310, %v183, 0
      %2280 = vmatprep.subr.mxu0 0.0
      %2281 = vmatpush1.msra.mxu0 %v2278
      %2282 = vmatprep.subr.mxu0 0.0
      %2283 = vmatpush1.msra.mxu0 0.0
      %2284 = vmatprep.subr.mxu0 0.0
      %2285 = vmatpush1.msra.mxu0 0.0
      %2286 = vmatprep.subr.mxu0 0.0
      %2287 = vmatpush1.msra.mxu0 0.0
      %2288 = vmatprep.subr.mxu0 0.0
      %2289 = vmatpush1.msra.mxu0 0.0
      %2290 = vmatprep.subr.mxu0 0.0
      %2291 = vmatpush1.msra.mxu0 0.0
      %2292 = vmatprep.subr.mxu0 0.0
      %2293 = vmatpush1.msra.mxu0 0.0
      %2294 = vmatprep.subr.mxu0 0.0
      %2295 = vmatpush1.msra.mxu0 0.0
      %2296 = vmatprep.subr.mxu0 0.0
      %2297 = vmatpush1.msra.mxu0 0.0
      %2298 = vmatprep.subr.mxu0 0.0
      %2299 = vmatpush1.msra.mxu0 0.0
      %2300 = vmatprep.subr.mxu0 0.0
      %2301 = vmatpush1.msra.mxu0 0.0
      %2302 = vmatprep.subr.mxu0 0.0
      %2303 = vmatpush1.msra.mxu0 0.0
      %2304 = vmatprep.subr.mxu0 0.0
      %2305 = vmatpush1.msra.mxu0 0.0
      %2306 = vmatprep.subr.mxu0 0.0
      %2307 = vmatpush1.msra.mxu0 0.0
      %2308 = vmatprep.subr.mxu0 0.0
      %2309 = vmatpush1.msra.mxu0 0.0
      %2310 = vmatprep.subr.mxu0 0.0
      %2311 = vmatpush1.msra.mxu0 0.0
      %2312 = vmatprep.subr.mxu0 0.0
      %2313 = vmatpush1.msra.mxu0 0.0
      %2314 = vmatprep.subr.mxu0 0.0
      %2315 = vmatpush1.msra.mxu0 0.0
      %2316 = vmatprep.subr.mxu0 0.0
      %2317 = vmatpush1.msra.mxu0 0.0
      %2318 = vmatprep.subr.mxu0 0.0
      %2319 = vmatpush1.msra.mxu0 0.0
      %2320 = vmatprep.subr.mxu0 0.0
      %2321 = vmatpush1.msra.mxu0 0.0
      %2322 = vmatprep.subr.mxu0 0.0
      %2323 = vmatpush1.msra.mxu0 0.0
      %2324 = vmatprep.subr.mxu0 0.0
      %2325 = vmatpush1.msra.mxu0 0.0
      %2326 = vmatprep.subr.mxu0 0.0
      %2327 = vmatpush1.msra.mxu0 0.0
      %2328 = vmatprep.subr.mxu0 0.0
      %2329 = vmatpush1.msra.mxu0 0.0
      %2330 = vmatprep.subr.mxu0 0.0
      %2331 = vmatpush1.msra.mxu0 0.0
      %2332 = vmatprep.subr.mxu0 0.0
      %2333 = vmatpush1.msra.mxu0 0.0
      %2334 = vmatprep.subr.mxu0 0.0
      %2335 = vmatpush1.msra.mxu0 0.0
      %2336 = vmatprep.subr.mxu0 0.0
      %2337 = vmatpush1.msra.mxu0 0.0
      %2338 = vmatprep.subr.mxu0 0.0
      %2339 = vmatpush1.msra.mxu0 0.0
      %2340 = vmatprep.subr.mxu0 0.0
      %2341 = vmatpush1.msra.mxu0 0.0
      %2342 = vmatprep.subr.mxu0 0.0
      %2343 = vmatpush1.msra.mxu0 0.0
      %2344 = vmatprep.mubr.f32.mxu0 0.0
      %2345 = vmatmul.mubr.f32.gmra.mrb[0].mxu0 %v2194
      %v2346 = vpop.f32.mrb[0].mxu0
      %v2347 = vadd.f32 0.0, %v2346
      %v2348 = vpop.f32.mrb[0].mxu0
      %2349 = vmatprep.mubr.f32.mxu0 0.0
      %2350 = vmatmul.mubr.f32.gmra.mrb[0].mxu0 %v2197
      %v2351 = vpop.f32.mrb[0].mxu0
      %v2352 = vadd.f32 0.0, %v2351
      %v2353 = vpop.f32.mrb[0].mxu0
      %2354 = vmatprep.mubr.f32.mxu0 0.0
      %2355 = vmatmul.mubr.f32.gmra.mrb[0].mxu0 %v2200
      %v2356 = vpop.f32.mrb[0].mxu0
      %v2357 = vadd.f32 0.0, %v2356
      %v2358 = vpop.f32.mrb[0].mxu0
      %2359 = vmatprep.mubr.f32.mxu0 0.0
      %2360 = vmatmul.mubr.f32.gmra.mrb[0].mxu0 %v2203
      %v2361 = vpop.f32.mrb[0].mxu0
      %v2362 = vadd.f32 0.0, %v2361
      %v2363 = vpop.f32.mrb[0].mxu0
      %2364 = vmatprep.mubr.f32.mxu0 0.0
      %2365 = vmatmul.mubr.f32.gmra.mrb[0].mxu0 %v2206
      %v2366 = vpop.f32.mrb[0].mxu0
      %v2367 = vadd.f32 0.0, %v2366
      %v2368 = vpop.f32.mrb[0].mxu0
      %2369 = vmatprep.mubr.f32.mxu0 0.0
      %2370 = vmatmul.mubr.f32.gmra.mrb[0].mxu0 %v2209
      %v2371 = vpop.f32.mrb[0].mxu0
      %v2372 = vadd.f32 0.0, %v2371
      %v2373 = vpop.f32.mrb[0].mxu0
      %2374 = vmatprep.mubr.f32.mxu0 0.0
      %2375 = vmatmul.mubr.f32.gmra.mrb[0].mxu0 %v2212
      %v2376 = vpop.f32.mrb[0].mxu0
      %v2377 = vadd.f32 0.0, %v2376
      %v2378 = vpop.f32.mrb[0].mxu0
      %2379 = vmatprep.mubr.f32.mxu0 0.0
      %2380 = vmatmul.mubr.f32.gmra.mrb[0].mxu0 %v2215
      %v2381 = vpop.f32.mrb[0].mxu0
      %v2382 = vadd.f32 0.0, %v2381
      %v2383 = vpop.f32.mrb[0].mxu0
      %2384 = vmatprep.mubr.f32.mxu0 0.0
      %2385 = vmatmul.mubr.f32.gmra.mrb[0].mxu0 %v2218
      %v2386 = vpop.f32.mrb[0].mxu0
      %v2387 = vadd.f32 0.0, %v2386
      %v2388 = vpop.f32.mrb[0].mxu0
      %2389 = vmatprep.mubr.f32.mxu0 0.0
      %2390 = vmatmul.mubr.f32.gmra.mrb[0].mxu0 %v2221
      %v2391 = vpop.f32.mrb[0].mxu0
      %v2392 = vadd.f32 0.0, %v2391
      %v2393 = vpop.f32.mrb[0].mxu0
      %2394 = vmatprep.mubr.f32.mxu0 0.0
      %2395 = vmatmul.mubr.f32.gmra.mrb[0].mxu0 %v2224
      %v2396 = vpop.f32.mrb[0].mxu0
      %v2397 = vadd.f32 0.0, %v2396
      %v2398 = vpop.f32.mrb[0].mxu0
      %2399 = vmatprep.mubr.f32.mxu0 0.0
      %2400 = vmatmul.mubr.f32.gmra.mrb[0].mxu0 %v2227
      %v2401 = vpop.f32.mrb[0].mxu0
      %v2402 = vadd.f32 0.0, %v2401
      %v2403 = vpop.f32.mrb[0].mxu0
      %2404 = vmatprep.mubr.f32.mxu0 0.0
      %2405 = vmatmul.mubr.f32.gmra.mrb[0].mxu0 %v2230
      %v2406 = vpop.f32.mrb[0].mxu0
      %v2407 = vadd.f32 0.0, %v2406
      %v2408 = vpop.f32.mrb[0].mxu0
      %2409 = vmatprep.mubr.f32.mxu0 0.0
      %2410 = vmatmul.mubr.f32.gmra.mrb[0].mxu0 %v2233
      %v2411 = vpop.f32.mrb[0].mxu0
      %v2412 = vadd.f32 0.0, %v2411
      %v2413 = vpop.f32.mrb[0].mxu0
      %2414 = vmatprep.mubr.f32.mxu0 0.0
      %2415 = vmatmul.mubr.f32.gmra.mrb[0].mxu0 %v2236
      %v2416 = vpop.f32.mrb[0].mxu0
      %v2417 = vadd.f32 0.0, %v2416
      %v2418 = vpop.f32.mrb[0].mxu0
      %2419 = vmatprep.mubr.f32.mxu0 0.0
      %2420 = vmatmul.mubr.f32.gmra.mrb[0].mxu0 %v2239
      %v2421 = vpop.f32.mrb[0].mxu0
      %v2422 = vadd.f32 0.0, %v2421
      %v2423 = vpop.f32.mrb[0].mxu0
      %2424 = vmatprep.mubr.f32.mxu0 0.0
      %2425 = vmatmul.mubr.f32.gmra.mrb[0].mxu0 %v2242
      %v2426 = vpop.f32.mrb[0].mxu0
      %v2427 = vadd.f32 0.0, %v2426
      %v2428 = vpop.f32.mrb[0].mxu0
      %2429 = vmatprep.mubr.f32.mxu0 0.0
      %2430 = vmatmul.mubr.f32.gmra.mrb[0].mxu0 %v2245
      %v2431 = vpop.f32.mrb[0].mxu0
      %v2432 = vadd.f32 0.0, %v2431
      %v2433 = vpop.f32.mrb[0].mxu0
      %2434 = vmatprep.mubr.f32.mxu0 0.0
      %2435 = vmatmul.mubr.f32.gmra.mrb[0].mxu0 %v2248
      %v2436 = vpop.f32.mrb[0].mxu0
      %v2437 = vadd.f32 0.0, %v2436
      %v2438 = vpop.f32.mrb[0].mxu0
      %2439 = vmatprep.mubr.f32.mxu0 0.0
      %2440 = vmatmul.mubr.f32.gmra.mrb[0].mxu0 %v2251
      %v2441 = vpop.f32.mrb[0].mxu0
      %v2442 = vadd.f32 0.0, %v2441
      %v2443 = vpop.f32.mrb[0].mxu0
      %2444 = vmatprep.mubr.f32.mxu0 0.0
      %2445 = vmatmul.mubr.f32.gmra.mrb[0].mxu0 %v2254
      %v2446 = vpop.f32.mrb[0].mxu0
      %v2447 = vadd.f32 0.0, %v2446
      %v2448 = vpop.f32.mrb[0].mxu0
      %2449 = vmatprep.mubr.f32.mxu0 0.0
      %2450 = vmatmul.mubr.f32.gmra.mrb[0].mxu0 %v2257
      %v2451 = vpop.f32.mrb[0].mxu0
      %v2452 = vadd.f32 0.0, %v2451
      %v2453 = vpop.f32.mrb[0].mxu0
      %2454 = vmatprep.mubr.f32.mxu0 0.0
      %2455 = vmatmul.mubr.f32.gmra.mrb[0].mxu0 %v2260
      %v2456 = vpop.f32.mrb[0].mxu0
      %v2457 = vadd.f32 0.0, %v2456
      %v2458 = vpop.f32.mrb[0].mxu0
      %2459 = vmatprep.mubr.f32.mxu0 0.0
      %2460 = vmatmul.mubr.f32.gmra.mrb[0].mxu0 %v2263
      %v2461 = vpop.f32.mrb[0].mxu0
      %v2462 = vadd.f32 0.0, %v2461
      %v2463 = vpop.f32.mrb[0].mxu0
      %2464 = vmatprep.mubr.f32.mxu0 0.0
      %2465 = vmatmul.mubr.f32.gmra.mrb[0].mxu0 %v2266
      %v2466 = vpop.f32.mrb[0].mxu0
      %v2467 = vadd.f32 0.0, %v2466
      %v2468 = vpop.f32.mrb[0].mxu0
      %2469 = vmatprep.mubr.f32.mxu0 0.0
      %2470 = vmatmul.mubr.f32.gmra.mrb[0].mxu0 %v2269
      %v2471 = vpop.f32.mrb[0].mxu0
      %v2472 = vadd.f32 0.0, %v2471
      %v2473 = vpop.f32.mrb[0].mxu0
      %2474 = vmatprep.mubr.f32.mxu0 0.0
      %2475 = vmatmul.mubr.f32.gmra.mrb[0].mxu0 %v2272
      %v2476 = vpop.f32.mrb[0].mxu0
      %v2477 = vadd.f32 0.0, %v2476
      %v2478 = vpop.f32.mrb[0].mxu0
      %2479 = vmatprep.mubr.f32.mxu0 0.0
      %2480 = vmatmul.mubr.f32.gmra.mrb[0].mxu0 %v2275
      %v2481 = vpop.f32.mrb[0].mxu0
      %v2482 = vadd.f32 0.0, %v2481
      %v2483 = vpop.f32.mrb[0].mxu0
      %2484 = vdwg.mxu0
      %v2485 = vld [vmem:[#allocation2] sm:$0xff]
      %v2486 = vld [vmem:[#allocation2 + $0x8] sm:$0xff]
      %v2487 = vld [vmem:[#allocation2 + $0x10] sm:$0xff]
      %v2488 = vld [vmem:[#allocation2 + $0x18] sm:$0xff]
      %v2489 = vld [vmem:[#allocation2 + $0x20] sm:$0xff]
      %v2490 = vld [vmem:[#allocation2 + $0x28] sm:$0xff]
      %v2491 = vld [vmem:[#allocation2 + $0x30] sm:$0xff]
      %v2492 = vld [vmem:[#allocation2 + $0x38] sm:$0xff]
      %v2493 = vld [vmem:[#allocation2 + $0x40] sm:$0xff]
      %v2494 = vld [vmem:[#allocation2 + $0x48] sm:$0xff]
      %v2495 = vld [vmem:[#allocation2 + $0x50] sm:$0xff]
      %v2496 = vld [vmem:[#allocation2 + $0x58] sm:$0xff]
      %v2497 = vld [vmem:[#allocation2 + $0x60] sm:$0xff]
      %v2498 = vld [vmem:[#allocation2 + $0x68] sm:$0xff]
      %v2499 = vld [vmem:[#allocation2 + $0x70] sm:$0xff]
      %v2500 = vld [vmem:[#allocation2 + $0x78] sm:$0xff]
      %v2501 = vld [vmem:[#allocation2 + $0x80] sm:$0xff]
      %v2502 = vld [vmem:[#allocation2 + $0x88] sm:$0xff]
      %v2503 = vld [vmem:[#allocation2 + $0x90] sm:$0xff]
      %v2504 = vld [vmem:[#allocation2 + $0x98] sm:$0xff]
      %v2505 = vld [vmem:[#allocation2 + $0xa0] sm:$0xff]
      %v2506 = vld [vmem:[#allocation2 + $0xa8] sm:$0xff]
      %v2507 = vld [vmem:[#allocation2 + $0xb0] sm:$0xff]
      %v2508 = vld [vmem:[#allocation2 + $0xb8] sm:$0xff]
      %v2509 = vld [vmem:[#allocation2 + $0xc0] sm:$0xff]
      %v2510 = vld [vmem:[#allocation2 + $0xc8] sm:$0xff]
      %v2511 = vld [vmem:[#allocation2 + $0xd0] sm:$0xff]
      %v2512 = vld [vmem:[#allocation2 + $0xd8] sm:$0x3f]
      %v2513 = vadd.f32 %v2485, %v2347
      %v2514 = vadd.f32 %v2486, %v2352
      %v2515 = vadd.f32 %v2487, %v2357
      %v2516 = vadd.f32 %v2488, %v2362
      %v2517 = vadd.f32 %v2489, %v2367
      %v2518 = vadd.f32 %v2490, %v2372
      %v2519 = vadd.f32 %v2491, %v2377
      %v2520 = vadd.f32 %v2492, %v2382
      %v2521 = vadd.f32 %v2493, %v2387
      %v2522 = vadd.f32 %v2494, %v2392
      %v2523 = vadd.f32 %v2495, %v2397
      %v2524 = vadd.f32 %v2496, %v2402
      %v2525 = vadd.f32 %v2497, %v2407
      %v2526 = vadd.f32 %v2498, %v2412
      %v2527 = vadd.f32 %v2499, %v2417
      %v2528 = vadd.f32 %v2500, %v2422
      %v2529 = vadd.f32 %v2501, %v2427
      %v2530 = vadd.f32 %v2502, %v2432
      %v2531 = vadd.f32 %v2503, %v2437
      %v2532 = vadd.f32 %v2504, %v2442
      %v2533 = vadd.f32 %v2505, %v2447
      %v2534 = vadd.f32 %v2506, %v2452
      %v2535 = vadd.f32 %v2507, %v2457
      %v2536 = vadd.f32 %v2508, %v2462
      %v2537 = vadd.f32 %v2509, %v2467
      %v2538 = vadd.f32 %v2510, %v2472
      %v2539 = vadd.f32 %v2511, %v2477
      %v2540 = vadd.f32 %v2512, %v2482
      %2541 = vst.msk [vmem:[#allocation2] sm:$0xff] %vm519, %v2513
      %2542 = vst.msk [vmem:[#allocation2 + $0x8] sm:$0xff] %vm519, %v2514
      %2543 = vst.msk [vmem:[#allocation2 + $0x10] sm:$0xff] %vm519, %v2515
      %2544 = vst.msk [vmem:[#allocation2 + $0x18] sm:$0xff] %vm519, %v2516
      %2545 = vst.msk [vmem:[#allocation2 + $0x20] sm:$0xff] %vm519, %v2517
      %2546 = vst.msk [vmem:[#allocation2 + $0x28] sm:$0xff] %vm519, %v2518
      %2547 = vst.msk [vmem:[#allocation2 + $0x30] sm:$0xff] %vm519, %v2519
      %2548 = vst.msk [vmem:[#allocation2 + $0x38] sm:$0xff] %vm519, %v2520
      %2549 = vst.msk [vmem:[#allocation2 + $0x40] sm:$0xff] %vm519, %v2521
      %2550 = vst.msk [vmem:[#allocation2 + $0x48] sm:$0xff] %vm519, %v2522
      %2551 = vst.msk [vmem:[#allocation2 + $0x50] sm:$0xff] %vm519, %v2523
      %2552 = vst.msk [vmem:[#allocation2 + $0x58] sm:$0xff] %vm519, %v2524
      %2553 = vst.msk [vmem:[#allocation2 + $0x60] sm:$0xff] %vm519, %v2525
      %2554 = vst.msk [vmem:[#allocation2 + $0x68] sm:$0xff] %vm519, %v2526
      %2555 = vst.msk [vmem:[#allocation2 + $0x70] sm:$0xff] %vm519, %v2527
      %2556 = vst.msk [vmem:[#allocation2 + $0x78] sm:$0xff] %vm519, %v2528
      %2557 = vst.msk [vmem:[#allocation2 + $0x80] sm:$0xff] %vm519, %v2529
      %2558 = vst.msk [vmem:[#allocation2 + $0x88] sm:$0xff] %vm519, %v2530
      %2559 = vst.msk [vmem:[#allocation2 + $0x90] sm:$0xff] %vm519, %v2531
      %2560 = vst.msk [vmem:[#allocation2 + $0x98] sm:$0xff] %vm519, %v2532
      %2561 = vst.msk [vmem:[#allocation2 + $0xa0] sm:$0xff] %vm519, %v2533
      %2562 = vst.msk [vmem:[#allocation2 + $0xa8] sm:$0xff] %vm519, %v2534
      %2563 = vst.msk [vmem:[#allocation2 + $0xb0] sm:$0xff] %vm519, %v2535
      %2564 = vst.msk [vmem:[#allocation2 + $0xb8] sm:$0xff] %vm519, %v2536
      %2565 = vst.msk [vmem:[#allocation2 + $0xc0] sm:$0xff] %vm519, %v2537
      %2566 = vst.msk [vmem:[#allocation2 + $0xc8] sm:$0xff] %vm519, %v2538
      %2567 = vst.msk [vmem:[#allocation2 + $0xd0] sm:$0xff] %vm519, %v2539
      %2568 = vst.msk [vmem:[#allocation2 + $0xd8] sm:$0x3f] %vm547, %v2540
      %v2569 = vld [vmem:[%s166 + $0x20] sm:$0xff]
      %v2570 = vld [vmem:[%s166 + $0x28] sm:$0xff]
      %v2571 = vld [vmem:[%s166 + $0x30] sm:$0xff]
      %v2572 = vld [vmem:[%s166 + $0x38] sm:$0xff]
      %v2573 = vld [vmem:[%s166 + $0x40] sm:$0xff]
      %v2574 = vld [vmem:[%s166 + $0x48] sm:$0xff]
      %v2575 = vld [vmem:[%s166 + $0x50] sm:$0xff]
      %v2576 = vld [vmem:[%s166 + $0x58] sm:$0xff]
      %v2577 = vld [vmem:[%s166 + $0x60] sm:$0xff]
      %v2578 = vld [vmem:[%s166 + $0x68] sm:$0xff]
      %v2579 = vld [vmem:[%s166 + $0x70] sm:$0xff]
      %v2580 = vld [vmem:[%s166 + $0x78] sm:$0xff]
      %v2581 = vld [vmem:[%s166 + $0x80] sm:$0xff]
      %v2582 = vld [vmem:[%s166 + $0x88] sm:$0xff]
      %v2583 = vld [vmem:[%s166 + $0x90] sm:$0xff]
      %v2584 = vld [vmem:[%s166 + $0x98] sm:$0xff]
      %v2585 = vld [vmem:[%s166 + $0xa0] sm:$0xff]
      %v2586 = vld [vmem:[%s166 + $0xa8] sm:$0xff]
      %v2587 = vld [vmem:[%s166 + $0xb0] sm:$0xff]
      %v2588 = vld [vmem:[%s166 + $0xb8] sm:$0xff]
      %v2589 = vld [vmem:[%s166 + $0xc0] sm:$0xff]
      %v2590 = vld [vmem:[%s166 + $0xc8] sm:$0xff]
      %v2591 = vld [vmem:[%s166 + $0xd0] sm:$0xff]
      %v2592 = vld [vmem:[%s166 + $0xd8] sm:$0xff]
      %v2593 = vld [vmem:[%s166 + $0xe0] sm:$0xff]
      %v2594 = vld [vmem:[%s166 + $0xe8] sm:$0xff]
      %v2595 = vld [vmem:[%s166 + $0xf0] sm:$0xff]
      %v2596 = vld [vmem:[%s166 + $0xf8] sm:$0x3f]
      %v2598 = vsel %vm225, %v2569, 0
      %v2601 = vsel %vm225, %v2570, 0
      %v2604 = vsel %vm225, %v2571, 0
      %v2607 = vsel %vm225, %v2572, 0
      %v2610 = vsel %vm225, %v2573, 0
      %v2613 = vsel %vm225, %v2574, 0
      %v2616 = vsel %vm225, %v2575, 0
      %v2619 = vsel %vm225, %v2576, 0
      %v2622 = vsel %vm225, %v2577, 0
      %v2625 = vsel %vm225, %v2578, 0
      %v2628 = vsel %vm225, %v2579, 0
      %v2631 = vsel %vm225, %v2580, 0
      %v2634 = vsel %vm225, %v2581, 0
      %v2637 = vsel %vm225, %v2582, 0
      %v2640 = vsel %vm225, %v2583, 0
      %v2643 = vsel %vm225, %v2584, 0
      %v2646 = vsel %vm225, %v2585, 0
      %v2649 = vsel %vm225, %v2586, 0
      %v2652 = vsel %vm225, %v2587, 0
      %v2655 = vsel %vm225, %v2588, 0
      %v2658 = vsel %vm225, %v2589, 0
      %v2661 = vsel %vm225, %v2590, 0
      %v2664 = vsel %vm225, %v2591, 0
      %v2667 = vsel %vm225, %v2592, 0
      %v2670 = vsel %vm225, %v2593, 0
      %v2673 = vsel %vm225, %v2594, 0
      %v2676 = vsel %vm225, %v2595, 0
      %v2679 = vsel %vm225, %v2596, 0
      %v2682 = vsel %vm310, %v185, 0
      %2684 = vmatprep.subr.mxu0 0.0
      %2685 = vmatpush1.msra.mxu0 %v2682
      %2686 = vmatprep.subr.mxu0 0.0
      %2687 = vmatpush1.msra.mxu0 0.0
      %2688 = vmatprep.subr.mxu0 0.0
      %2689 = vmatpush1.msra.mxu0 0.0
      %2690 = vmatprep.subr.mxu0 0.0
      %2691 = vmatpush1.msra.mxu0 0.0
      %2692 = vmatprep.subr.mxu0 0.0
      %2693 = vmatpush1.msra.mxu0 0.0
      %2694 = vmatprep.subr.mxu0 0.0
      %2695 = vmatpush1.msra.mxu0 0.0
      %2696 = vmatprep.subr.mxu0 0.0
      %2697 = vmatpush1.msra.mxu0 0.0
      %2698 = vmatprep.subr.mxu0 0.0
      %2699 = vmatpush1.msra.mxu0 0.0
      %2700 = vmatprep.subr.mxu0 0.0
      %2701 = vmatpush1.msra.mxu0 0.0
      %2702 = vmatprep.subr.mxu0 0.0
      %2703 = vmatpush1.msra.mxu0 0.0
      %2704 = vmatprep.subr.mxu0 0.0
      %2705 = vmatpush1.msra.mxu0 0.0
      %2706 = vmatprep.subr.mxu0 0.0
      %2707 = vmatpush1.msra.mxu0 0.0
      %2708 = vmatprep.subr.mxu0 0.0
      %2709 = vmatpush1.msra.mxu0 0.0
      %2710 = vmatprep.subr.mxu0 0.0
      %2711 = vmatpush1.msra.mxu0 0.0
      %2712 = vmatprep.subr.mxu0 0.0
      %2713 = vmatpush1.msra.mxu0 0.0
      %2714 = vmatprep.subr.mxu0 0.0
      %2715 = vmatpush1.msra.mxu0 0.0
      %2716 = vmatprep.subr.mxu0 0.0
      %2717 = vmatpush1.msra.mxu0 0.0
      %2718 = vmatprep.subr.mxu0 0.0
      %2719 = vmatpush1.msra.mxu0 0.0
      %2720 = vmatprep.subr.mxu0 0.0
      %2721 = vmatpush1.msra.mxu0 0.0
      %2722 = vmatprep.subr.mxu0 0.0
      %2723 = vmatpush1.msra.mxu0 0.0
      %2724 = vmatprep.subr.mxu0 0.0
      %2725 = vmatpush1.msra.mxu0 0.0
      %2726 = vmatprep.subr.mxu0 0.0
      %2727 = vmatpush1.msra.mxu0 0.0
      %2728 = vmatprep.subr.mxu0 0.0
      %2729 = vmatpush1.msra.mxu0 0.0
      %2730 = vmatprep.subr.mxu0 0.0
      %2731 = vmatpush1.msra.mxu0 0.0
      %2732 = vmatprep.subr.mxu0 0.0
      %2733 = vmatpush1.msra.mxu0 0.0
      %2734 = vmatprep.subr.mxu0 0.0
      %2735 = vmatpush1.msra.mxu0 0.0
      %2736 = vmatprep.subr.mxu0 0.0
      %2737 = vmatpush1.msra.mxu0 0.0
      %2738 = vmatprep.subr.mxu0 0.0
      %2739 = vmatpush1.msra.mxu0 0.0
      %2740 = vmatprep.subr.mxu0 0.0
      %2741 = vmatpush1.msra.mxu0 0.0
      %2742 = vmatprep.subr.mxu0 0.0
      %2743 = vmatpush1.msra.mxu0 0.0
      %2744 = vmatprep.subr.mxu0 0.0
      %2745 = vmatpush1.msra.mxu0 0.0
      %2746 = vmatprep.subr.mxu0 0.0
      %2747 = vmatpush1.msra.mxu0 0.0
      %2748 = vmatprep.mubr.f32.mxu0 0.0
      %2749 = vmatmul.mubr.f32.gmra.mrb[0].mxu0 %v2598
      %v2750 = vpop.f32.mrb[0].mxu0
      %v2751 = vadd.f32 0.0, %v2750
      %v2752 = vpop.f32.mrb[0].mxu0
      %2753 = vmatprep.mubr.f32.mxu0 0.0
      %2754 = vmatmul.mubr.f32.gmra.mrb[0].mxu0 %v2601
      %v2755 = vpop.f32.mrb[0].mxu0
      %v2756 = vadd.f32 0.0, %v2755
      %v2757 = vpop.f32.mrb[0].mxu0
      %2758 = vmatprep.mubr.f32.mxu0 0.0
      %2759 = vmatmul.mubr.f32.gmra.mrb[0].mxu0 %v2604
      %v2760 = vpop.f32.mrb[0].mxu0
      %v2761 = vadd.f32 0.0, %v2760
      %v2762 = vpop.f32.mrb[0].mxu0
      %2763 = vmatprep.mubr.f32.mxu0 0.0
      %2764 = vmatmul.mubr.f32.gmra.mrb[0].mxu0 %v2607
      %v2765 = vpop.f32.mrb[0].mxu0
      %v2766 = vadd.f32 0.0, %v2765
      %v2767 = vpop.f32.mrb[0].mxu0
      %2768 = vmatprep.mubr.f32.mxu0 0.0
      %2769 = vmatmul.mubr.f32.gmra.mrb[0].mxu0 %v2610
      %v2770 = vpop.f32.mrb[0].mxu0
      %v2771 = vadd.f32 0.0, %v2770
      %v2772 = vpop.f32.mrb[0].mxu0
      %2773 = vmatprep.mubr.f32.mxu0 0.0
      %2774 = vmatmul.mubr.f32.gmra.mrb[0].mxu0 %v2613
      %v2775 = vpop.f32.mrb[0].mxu0
      %v2776 = vadd.f32 0.0, %v2775
      %v2777 = vpop.f32.mrb[0].mxu0
      %2778 = vmatprep.mubr.f32.mxu0 0.0
      %2779 = vmatmul.mubr.f32.gmra.mrb[0].mxu0 %v2616
      %v2780 = vpop.f32.mrb[0].mxu0
      %v2781 = vadd.f32 0.0, %v2780
      %v2782 = vpop.f32.mrb[0].mxu0
      %2783 = vmatprep.mubr.f32.mxu0 0.0
      %2784 = vmatmul.mubr.f32.gmra.mrb[0].mxu0 %v2619
      %v2785 = vpop.f32.mrb[0].mxu0
      %v2786 = vadd.f32 0.0, %v2785
      %v2787 = vpop.f32.mrb[0].mxu0
      %2788 = vmatprep.mubr.f32.mxu0 0.0
      %2789 = vmatmul.mubr.f32.gmra.mrb[0].mxu0 %v2622
      %v2790 = vpop.f32.mrb[0].mxu0
      %v2791 = vadd.f32 0.0, %v2790
      %v2792 = vpop.f32.mrb[0].mxu0
      %2793 = vmatprep.mubr.f32.mxu0 0.0
      %2794 = vmatmul.mubr.f32.gmra.mrb[0].mxu0 %v2625
      %v2795 = vpop.f32.mrb[0].mxu0
      %v2796 = vadd.f32 0.0, %v2795
      %v2797 = vpop.f32.mrb[0].mxu0
      %2798 = vmatprep.mubr.f32.mxu0 0.0
      %2799 = vmatmul.mubr.f32.gmra.mrb[0].mxu0 %v2628
      %v2800 = vpop.f32.mrb[0].mxu0
      %v2801 = vadd.f32 0.0, %v2800
      %v2802 = vpop.f32.mrb[0].mxu0
      %2803 = vmatprep.mubr.f32.mxu0 0.0
      %2804 = vmatmul.mubr.f32.gmra.mrb[0].mxu0 %v2631
      %v2805 = vpop.f32.mrb[0].mxu0
      %v2806 = vadd.f32 0.0, %v2805
      %v2807 = vpop.f32.mrb[0].mxu0
      %2808 = vmatprep.mubr.f32.mxu0 0.0
      %2809 = vmatmul.mubr.f32.gmra.mrb[0].mxu0 %v2634
      %v2810 = vpop.f32.mrb[0].mxu0
      %v2811 = vadd.f32 0.0, %v2810
      %v2812 = vpop.f32.mrb[0].mxu0
      %2813 = vmatprep.mubr.f32.mxu0 0.0
      %2814 = vmatmul.mubr.f32.gmra.mrb[0].mxu0 %v2637
      %v2815 = vpop.f32.mrb[0].mxu0
      %v2816 = vadd.f32 0.0, %v2815
      %v2817 = vpop.f32.mrb[0].mxu0
      %2818 = vmatprep.mubr.f32.mxu0 0.0
      %2819 = vmatmul.mubr.f32.gmra.mrb[0].mxu0 %v2640
      %v2820 = vpop.f32.mrb[0].mxu0
      %v2821 = vadd.f32 0.0, %v2820
      %v2822 = vpop.f32.mrb[0].mxu0
      %2823 = vmatprep.mubr.f32.mxu0 0.0
      %2824 = vmatmul.mubr.f32.gmra.mrb[0].mxu0 %v2643
      %v2825 = vpop.f32.mrb[0].mxu0
      %v2826 = vadd.f32 0.0, %v2825
      %v2827 = vpop.f32.mrb[0].mxu0
      %2828 = vmatprep.mubr.f32.mxu0 0.0
      %2829 = vmatmul.mubr.f32.gmra.mrb[0].mxu0 %v2646
      %v2830 = vpop.f32.mrb[0].mxu0
      %v2831 = vadd.f32 0.0, %v2830
      %v2832 = vpop.f32.mrb[0].mxu0
      %2833 = vmatprep.mubr.f32.mxu0 0.0
      %2834 = vmatmul.mubr.f32.gmra.mrb[0].mxu0 %v2649
      %v2835 = vpop.f32.mrb[0].mxu0
      %v2836 = vadd.f32 0.0, %v2835
      %v2837 = vpop.f32.mrb[0].mxu0
      %2838 = vmatprep.mubr.f32.mxu0 0.0
      %2839 = vmatmul.mubr.f32.gmra.mrb[0].mxu0 %v2652
      %v2840 = vpop.f32.mrb[0].mxu0
      %v2841 = vadd.f32 0.0, %v2840
      %v2842 = vpop.f32.mrb[0].mxu0
      %2843 = vmatprep.mubr.f32.mxu0 0.0
      %2844 = vmatmul.mubr.f32.gmra.mrb[0].mxu0 %v2655
      %v2845 = vpop.f32.mrb[0].mxu0
      %v2846 = vadd.f32 0.0, %v2845
      %v2847 = vpop.f32.mrb[0].mxu0
      %2848 = vmatprep.mubr.f32.mxu0 0.0
      %2849 = vmatmul.mubr.f32.gmra.mrb[0].mxu0 %v2658
      %v2850 = vpop.f32.mrb[0].mxu0
      %v2851 = vadd.f32 0.0, %v2850
      %v2852 = vpop.f32.mrb[0].mxu0
      %2853 = vmatprep.mubr.f32.mxu0 0.0
      %2854 = vmatmul.mubr.f32.gmra.mrb[0].mxu0 %v2661
      %v2855 = vpop.f32.mrb[0].mxu0
      %v2856 = vadd.f32 0.0, %v2855
      %v2857 = vpop.f32.mrb[0].mxu0
      %2858 = vmatprep.mubr.f32.mxu0 0.0
      %2859 = vmatmul.mubr.f32.gmra.mrb[0].mxu0 %v2664
      %v2860 = vpop.f32.mrb[0].mxu0
      %v2861 = vadd.f32 0.0, %v2860
      %v2862 = vpop.f32.mrb[0].mxu0
      %2863 = vmatprep.mubr.f32.mxu0 0.0
      %2864 = vmatmul.mubr.f32.gmra.mrb[0].mxu0 %v2667
      %v2865 = vpop.f32.mrb[0].mxu0
      %v2866 = vadd.f32 0.0, %v2865
      %v2867 = vpop.f32.mrb[0].mxu0
      %2868 = vmatprep.mubr.f32.mxu0 0.0
      %2869 = vmatmul.mubr.f32.gmra.mrb[0].mxu0 %v2670
      %v2870 = vpop.f32.mrb[0].mxu0
      %v2871 = vadd.f32 0.0, %v2870
      %v2872 = vpop.f32.mrb[0].mxu0
      %2873 = vmatprep.mubr.f32.mxu0 0.0
      %2874 = vmatmul.mubr.f32.gmra.mrb[0].mxu0 %v2673
      %v2875 = vpop.f32.mrb[0].mxu0
      %v2876 = vadd.f32 0.0, %v2875
      %v2877 = vpop.f32.mrb[0].mxu0
      %2878 = vmatprep.mubr.f32.mxu0 0.0
      %2879 = vmatmul.mubr.f32.gmra.mrb[0].mxu0 %v2676
      %v2880 = vpop.f32.mrb[0].mxu0
      %v2881 = vadd.f32 0.0, %v2880
      %v2882 = vpop.f32.mrb[0].mxu0
      %2883 = vmatprep.mubr.f32.mxu0 0.0
      %2884 = vmatmul.mubr.f32.gmra.mrb[0].mxu0 %v2679
      %v2885 = vpop.f32.mrb[0].mxu0
      %v2886 = vadd.f32 0.0, %v2885
      %v2887 = vpop.f32.mrb[0].mxu0
      %2888 = vdwg.mxu0
      %v2889 = vld [vmem:[#allocation2] sm:$0xff]
      %v2890 = vld [vmem:[#allocation2 + $0x8] sm:$0xff]
      %v2891 = vld [vmem:[#allocation2 + $0x10] sm:$0xff]
      %v2892 = vld [vmem:[#allocation2 + $0x18] sm:$0xff]
      %v2893 = vld [vmem:[#allocation2 + $0x20] sm:$0xff]
      %v2894 = vld [vmem:[#allocation2 + $0x28] sm:$0xff]
      %v2895 = vld [vmem:[#allocation2 + $0x30] sm:$0xff]
      %v2896 = vld [vmem:[#allocation2 + $0x38] sm:$0xff]
      %v2897 = vld [vmem:[#allocation2 + $0x40] sm:$0xff]
      %v2898 = vld [vmem:[#allocation2 + $0x48] sm:$0xff]
      %v2899 = vld [vmem:[#allocation2 + $0x50] sm:$0xff]
      %v2900 = vld [vmem:[#allocation2 + $0x58] sm:$0xff]
      %v2901 = vld [vmem:[#allocation2 + $0x60] sm:$0xff]
      %v2902 = vld [vmem:[#allocation2 + $0x68] sm:$0xff]
      %v2903 = vld [vmem:[#allocation2 + $0x70] sm:$0xff]
      %v2904 = vld [vmem:[#allocation2 + $0x78] sm:$0xff]
      %v2905 = vld [vmem:[#allocation2 + $0x80] sm:$0xff]
      %v2906 = vld [vmem:[#allocation2 + $0x88] sm:$0xff]
      %v2907 = vld [vmem:[#allocation2 + $0x90] sm:$0xff]
      %v2908 = vld [vmem:[#allocation2 + $0x98] sm:$0xff]
      %v2909 = vld [vmem:[#allocation2 + $0xa0] sm:$0xff]
      %v2910 = vld [vmem:[#allocation2 + $0xa8] sm:$0xff]
      %v2911 = vld [vmem:[#allocation2 + $0xb0] sm:$0xff]
      %v2912 = vld [vmem:[#allocation2 + $0xb8] sm:$0xff]
      %v2913 = vld [vmem:[#allocation2 + $0xc0] sm:$0xff]
      %v2914 = vld [vmem:[#allocation2 + $0xc8] sm:$0xff]
      %v2915 = vld [vmem:[#allocation2 + $0xd0] sm:$0xff]
      %v2916 = vld [vmem:[#allocation2 + $0xd8] sm:$0x3f]
      %v2917 = vadd.f32 %v2889, %v2751
      %v2918 = vadd.f32 %v2890, %v2756
      %v2919 = vadd.f32 %v2891, %v2761
      %v2920 = vadd.f32 %v2892, %v2766
      %v2921 = vadd.f32 %v2893, %v2771
      %v2922 = vadd.f32 %v2894, %v2776
      %v2923 = vadd.f32 %v2895, %v2781
      %v2924 = vadd.f32 %v2896, %v2786
      %v2925 = vadd.f32 %v2897, %v2791
      %v2926 = vadd.f32 %v2898, %v2796
      %v2927 = vadd.f32 %v2899, %v2801
      %v2928 = vadd.f32 %v2900, %v2806
      %v2929 = vadd.f32 %v2901, %v2811
      %v2930 = vadd.f32 %v2902, %v2816
      %v2931 = vadd.f32 %v2903, %v2821
      %v2932 = vadd.f32 %v2904, %v2826
      %v2933 = vadd.f32 %v2905, %v2831
      %v2934 = vadd.f32 %v2906, %v2836
      %v2935 = vadd.f32 %v2907, %v2841
      %v2936 = vadd.f32 %v2908, %v2846
      %v2937 = vadd.f32 %v2909, %v2851
      %v2938 = vadd.f32 %v2910, %v2856
      %v2939 = vadd.f32 %v2911, %v2861
      %v2940 = vadd.f32 %v2912, %v2866
      %v2941 = vadd.f32 %v2913, %v2871
      %v2942 = vadd.f32 %v2914, %v2876
      %v2943 = vadd.f32 %v2915, %v2881
      %v2944 = vadd.f32 %v2916, %v2886
      %2945 = vst.msk [vmem:[#allocation2] sm:$0xff] %vm519, %v2917
      %2946 = vst.msk [vmem:[#allocation2 + $0x8] sm:$0xff] %vm519, %v2918
      %2947 = vst.msk [vmem:[#allocation2 + $0x10] sm:$0xff] %vm519, %v2919
      %2948 = vst.msk [vmem:[#allocation2 + $0x18] sm:$0xff] %vm519, %v2920
      %2949 = vst.msk [vmem:[#allocation2 + $0x20] sm:$0xff] %vm519, %v2921
      %2950 = vst.msk [vmem:[#allocation2 + $0x28] sm:$0xff] %vm519, %v2922
      %2951 = vst.msk [vmem:[#allocation2 + $0x30] sm:$0xff] %vm519, %v2923
      %2952 = vst.msk [vmem:[#allocation2 + $0x38] sm:$0xff] %vm519, %v2924
      %2953 = vst.msk [vmem:[#allocation2 + $0x40] sm:$0xff] %vm519, %v2925
      %2954 = vst.msk [vmem:[#allocation2 + $0x48] sm:$0xff] %vm519, %v2926
      %2955 = vst.msk [vmem:[#allocation2 + $0x50] sm:$0xff] %vm519, %v2927
      %2956 = vst.msk [vmem:[#allocation2 + $0x58] sm:$0xff] %vm519, %v2928
      %2957 = vst.msk [vmem:[#allocation2 + $0x60] sm:$0xff] %vm519, %v2929
      %2958 = vst.msk [vmem:[#allocation2 + $0x68] sm:$0xff] %vm519, %v2930
      %2959 = vst.msk [vmem:[#allocation2 + $0x70] sm:$0xff] %vm519, %v2931
      %2960 = vst.msk [vmem:[#allocation2 + $0x78] sm:$0xff] %vm519, %v2932
      %2961 = vst.msk [vmem:[#allocation2 + $0x80] sm:$0xff] %vm519, %v2933
      %2962 = vst.msk [vmem:[#allocation2 + $0x88] sm:$0xff] %vm519, %v2934
      %2963 = vst.msk [vmem:[#allocation2 + $0x90] sm:$0xff] %vm519, %v2935
      %2964 = vst.msk [vmem:[#allocation2 + $0x98] sm:$0xff] %vm519, %v2936
      %2965 = vst.msk [vmem:[#allocation2 + $0xa0] sm:$0xff] %vm519, %v2937
      %2966 = vst.msk [vmem:[#allocation2 + $0xa8] sm:$0xff] %vm519, %v2938
      %2967 = vst.msk [vmem:[#allocation2 + $0xb0] sm:$0xff] %vm519, %v2939
      %2968 = vst.msk [vmem:[#allocation2 + $0xb8] sm:$0xff] %vm519, %v2940
      %2969 = vst.msk [vmem:[#allocation2 + $0xc0] sm:$0xff] %vm519, %v2941
      %2970 = vst.msk [vmem:[#allocation2 + $0xc8] sm:$0xff] %vm519, %v2942
      %2971 = vst.msk [vmem:[#allocation2 + $0xd0] sm:$0xff] %vm519, %v2943
      %2972 = vst.msk [vmem:[#allocation2 + $0xd8] sm:$0x3f] %vm547, %v2944
      %v2973 = vld [vmem:[%s166 + $0x21] sm:$0xff]
      %v2974 = vld [vmem:[%s166 + $0x29] sm:$0xff]
      %v2975 = vld [vmem:[%s166 + $0x31] sm:$0xff]
      %v2976 = vld [vmem:[%s166 + $0x39] sm:$0xff]
      %v2977 = vld [vmem:[%s166 + $0x41] sm:$0xff]
      %v2978 = vld [vmem:[%s166 + $0x49] sm:$0xff]
      %v2979 = vld [vmem:[%s166 + $0x51] sm:$0xff]
      %v2980 = vld [vmem:[%s166 + $0x59] sm:$0xff]
      %v2981 = vld [vmem:[%s166 + $0x61] sm:$0xff]
      %v2982 = vld [vmem:[%s166 + $0x69] sm:$0xff]
      %v2983 = vld [vmem:[%s166 + $0x71] sm:$0xff]
      %v2984 = vld [vmem:[%s166 + $0x79] sm:$0xff]
      %v2985 = vld [vmem:[%s166 + $0x81] sm:$0xff]
      %v2986 = vld [vmem:[%s166 + $0x89] sm:$0xff]
      %v2987 = vld [vmem:[%s166 + $0x91] sm:$0xff]
      %v2988 = vld [vmem:[%s166 + $0x99] sm:$0xff]
      %v2989 = vld [vmem:[%s166 + $0xa1] sm:$0xff]
      %v2990 = vld [vmem:[%s166 + $0xa9] sm:$0xff]
      %v2991 = vld [vmem:[%s166 + $0xb1] sm:$0xff]
      %v2992 = vld [vmem:[%s166 + $0xb9] sm:$0xff]
      %v2993 = vld [vmem:[%s166 + $0xc1] sm:$0xff]
      %v2994 = vld [vmem:[%s166 + $0xc9] sm:$0xff]
      %v2995 = vld [vmem:[%s166 + $0xd1] sm:$0xff]
      %v2996 = vld [vmem:[%s166 + $0xd9] sm:$0xff]
      %v2997 = vld [vmem:[%s166 + $0xe1] sm:$0xff]
      %v2998 = vld [vmem:[%s166 + $0xe9] sm:$0xff]
      %v2999 = vld [vmem:[%s166 + $0xf1] sm:$0xff]
      %v3000 = vld [vmem:[%s166 + $0xf9] sm:$0x3f]
      %v3002 = vsel %vm225, %v2973, 0
      %v3005 = vsel %vm225, %v2974, 0
      %v3008 = vsel %vm225, %v2975, 0
      %v3011 = vsel %vm225, %v2976, 0
      %v3014 = vsel %vm225, %v2977, 0
      %v3017 = vsel %vm225, %v2978, 0
      %v3020 = vsel %vm225, %v2979, 0
      %v3023 = vsel %vm225, %v2980, 0
      %v3026 = vsel %vm225, %v2981, 0
      %v3029 = vsel %vm225, %v2982, 0
      %v3032 = vsel %vm225, %v2983, 0
      %v3035 = vsel %vm225, %v2984, 0
      %v3038 = vsel %vm225, %v2985, 0
      %v3041 = vsel %vm225, %v2986, 0
      %v3044 = vsel %vm225, %v2987, 0
      %v3047 = vsel %vm225, %v2988, 0
      %v3050 = vsel %vm225, %v2989, 0
      %v3053 = vsel %vm225, %v2990, 0
      %v3056 = vsel %vm225, %v2991, 0
      %v3059 = vsel %vm225, %v2992, 0
      %v3062 = vsel %vm225, %v2993, 0
      %v3065 = vsel %vm225, %v2994, 0
      %v3068 = vsel %vm225, %v2995, 0
      %v3071 = vsel %vm225, %v2996, 0
      %v3074 = vsel %vm225, %v2997, 0
      %v3077 = vsel %vm225, %v2998, 0
      %v3080 = vsel %vm225, %v2999, 0
      %v3083 = vsel %vm225, %v3000, 0
      %v3086 = vsel %vm310, %v187, 0
      %3088 = vmatprep.subr.mxu0 0.0
      %3089 = vmatpush1.msra.mxu0 %v3086
      %3090 = vmatprep.subr.mxu0 0.0
      %3091 = vmatpush1.msra.mxu0 0.0
      %3092 = vmatprep.subr.mxu0 0.0
      %3093 = vmatpush1.msra.mxu0 0.0
      %3094 = vmatprep.subr.mxu0 0.0
      %3095 = vmatpush1.msra.mxu0 0.0
      %3096 = vmatprep.subr.mxu0 0.0
      %3097 = vmatpush1.msra.mxu0 0.0
      %3098 = vmatprep.subr.mxu0 0.0
      %3099 = vmatpush1.msra.mxu0 0.0
      %3100 = vmatprep.subr.mxu0 0.0
      %3101 = vmatpush1.msra.mxu0 0.0
      %3102 = vmatprep.subr.mxu0 0.0
      %3103 = vmatpush1.msra.mxu0 0.0
      %3104 = vmatprep.subr.mxu0 0.0
      %3105 = vmatpush1.msra.mxu0 0.0
      %3106 = vmatprep.subr.mxu0 0.0
      %3107 = vmatpush1.msra.mxu0 0.0
      %3108 = vmatprep.subr.mxu0 0.0
      %3109 = vmatpush1.msra.mxu0 0.0
      %3110 = vmatprep.subr.mxu0 0.0
      %3111 = vmatpush1.msra.mxu0 0.0
      %3112 = vmatprep.subr.mxu0 0.0
      %3113 = vmatpush1.msra.mxu0 0.0
      %3114 = vmatprep.subr.mxu0 0.0
      %3115 = vmatpush1.msra.mxu0 0.0
      %3116 = vmatprep.subr.mxu0 0.0
      %3117 = vmatpush1.msra.mxu0 0.0
      %3118 = vmatprep.subr.mxu0 0.0
      %3119 = vmatpush1.msra.mxu0 0.0
      %3120 = vmatprep.subr.mxu0 0.0
      %3121 = vmatpush1.msra.mxu0 0.0
      %3122 = vmatprep.subr.mxu0 0.0
      %3123 = vmatpush1.msra.mxu0 0.0
      %3124 = vmatprep.subr.mxu0 0.0
      %3125 = vmatpush1.msra.mxu0 0.0
      %3126 = vmatprep.subr.mxu0 0.0
      %3127 = vmatpush1.msra.mxu0 0.0
      %3128 = vmatprep.subr.mxu0 0.0
      %3129 = vmatpush1.msra.mxu0 0.0
      %3130 = vmatprep.subr.mxu0 0.0
      %3131 = vmatpush1.msra.mxu0 0.0
      %3132 = vmatprep.subr.mxu0 0.0
      %3133 = vmatpush1.msra.mxu0 0.0
      %3134 = vmatprep.subr.mxu0 0.0
      %3135 = vmatpush1.msra.mxu0 0.0
      %3136 = vmatprep.subr.mxu0 0.0
      %3137 = vmatpush1.msra.mxu0 0.0
      %3138 = vmatprep.subr.mxu0 0.0
      %3139 = vmatpush1.msra.mxu0 0.0
      %3140 = vmatprep.subr.mxu0 0.0
      %3141 = vmatpush1.msra.mxu0 0.0
      %3142 = vmatprep.subr.mxu0 0.0
      %3143 = vmatpush1.msra.mxu0 0.0
      %3144 = vmatprep.subr.mxu0 0.0
      %3145 = vmatpush1.msra.mxu0 0.0
      %3146 = vmatprep.subr.mxu0 0.0
      %3147 = vmatpush1.msra.mxu0 0.0
      %3148 = vmatprep.subr.mxu0 0.0
      %3149 = vmatpush1.msra.mxu0 0.0
      %3150 = vmatprep.subr.mxu0 0.0
      %3151 = vmatpush1.msra.mxu0 0.0
      %3152 = vmatprep.mubr.f32.mxu0 0.0
      %3153 = vmatmul.mubr.f32.gmra.mrb[0].mxu0 %v3002
      %v3154 = vpop.f32.mrb[0].mxu0
      %v3155 = vadd.f32 0.0, %v3154
      %v3156 = vpop.f32.mrb[0].mxu0
      %3157 = vmatprep.mubr.f32.mxu0 0.0
      %3158 = vmatmul.mubr.f32.gmra.mrb[0].mxu0 %v3005
      %v3159 = vpop.f32.mrb[0].mxu0
      %v3160 = vadd.f32 0.0, %v3159
      %v3161 = vpop.f32.mrb[0].mxu0
      %3162 = vmatprep.mubr.f32.mxu0 0.0
      %3163 = vmatmul.mubr.f32.gmra.mrb[0].mxu0 %v3008
      %v3164 = vpop.f32.mrb[0].mxu0
      %v3165 = vadd.f32 0.0, %v3164
      %v3166 = vpop.f32.mrb[0].mxu0
      %3167 = vmatprep.mubr.f32.mxu0 0.0
      %3168 = vmatmul.mubr.f32.gmra.mrb[0].mxu0 %v3011
      %v3169 = vpop.f32.mrb[0].mxu0
      %v3170 = vadd.f32 0.0, %v3169
      %v3171 = vpop.f32.mrb[0].mxu0
      %3172 = vmatprep.mubr.f32.mxu0 0.0
      %3173 = vmatmul.mubr.f32.gmra.mrb[0].mxu0 %v3014
      %v3174 = vpop.f32.mrb[0].mxu0
      %v3175 = vadd.f32 0.0, %v3174
      %v3176 = vpop.f32.mrb[0].mxu0
      %3177 = vmatprep.mubr.f32.mxu0 0.0
      %3178 = vmatmul.mubr.f32.gmra.mrb[0].mxu0 %v3017
      %v3179 = vpop.f32.mrb[0].mxu0
      %v3180 = vadd.f32 0.0, %v3179
      %v3181 = vpop.f32.mrb[0].mxu0
      %3182 = vmatprep.mubr.f32.mxu0 0.0
      %3183 = vmatmul.mubr.f32.gmra.mrb[0].mxu0 %v3020
      %v3184 = vpop.f32.mrb[0].mxu0
      %v3185 = vadd.f32 0.0, %v3184
      %v3186 = vpop.f32.mrb[0].mxu0
      %3187 = vmatprep.mubr.f32.mxu0 0.0
      %3188 = vmatmul.mubr.f32.gmra.mrb[0].mxu0 %v3023
      %v3189 = vpop.f32.mrb[0].mxu0
      %v3190 = vadd.f32 0.0, %v3189
      %v3191 = vpop.f32.mrb[0].mxu0
      %3192 = vmatprep.mubr.f32.mxu0 0.0
      %3193 = vmatmul.mubr.f32.gmra.mrb[0].mxu0 %v3026
      %v3194 = vpop.f32.mrb[0].mxu0
      %v3195 = vadd.f32 0.0, %v3194
      %v3196 = vpop.f32.mrb[0].mxu0
      %3197 = vmatprep.mubr.f32.mxu0 0.0
      %3198 = vmatmul.mubr.f32.gmra.mrb[0].mxu0 %v3029
      %v3199 = vpop.f32.mrb[0].mxu0
      %v3200 = vadd.f32 0.0, %v3199
      %v3201 = vpop.f32.mrb[0].mxu0
      %3202 = vmatprep.mubr.f32.mxu0 0.0
      %3203 = vmatmul.mubr.f32.gmra.mrb[0].mxu0 %v3032
      %v3204 = vpop.f32.mrb[0].mxu0
      %v3205 = vadd.f32 0.0, %v3204
      %v3206 = vpop.f32.mrb[0].mxu0
      %3207 = vmatprep.mubr.f32.mxu0 0.0
      %3208 = vmatmul.mubr.f32.gmra.mrb[0].mxu0 %v3035
      %v3209 = vpop.f32.mrb[0].mxu0
      %v3210 = vadd.f32 0.0, %v3209
      %v3211 = vpop.f32.mrb[0].mxu0
      %3212 = vmatprep.mubr.f32.mxu0 0.0
      %3213 = vmatmul.mubr.f32.gmra.mrb[0].mxu0 %v3038
      %v3214 = vpop.f32.mrb[0].mxu0
      %v3215 = vadd.f32 0.0, %v3214
      %v3216 = vpop.f32.mrb[0].mxu0
      %3217 = vmatprep.mubr.f32.mxu0 0.0
      %3218 = vmatmul.mubr.f32.gmra.mrb[0].mxu0 %v3041
      %v3219 = vpop.f32.mrb[0].mxu0
      %v3220 = vadd.f32 0.0, %v3219
      %v3221 = vpop.f32.mrb[0].mxu0
      %3222 = vmatprep.mubr.f32.mxu0 0.0
      %3223 = vmatmul.mubr.f32.gmra.mrb[0].mxu0 %v3044
      %v3224 = vpop.f32.mrb[0].mxu0
      %v3225 = vadd.f32 0.0, %v3224
      %v3226 = vpop.f32.mrb[0].mxu0
      %3227 = vmatprep.mubr.f32.mxu0 0.0
      %3228 = vmatmul.mubr.f32.gmra.mrb[0].mxu0 %v3047
      %v3229 = vpop.f32.mrb[0].mxu0
      %v3230 = vadd.f32 0.0, %v3229
      %v3231 = vpop.f32.mrb[0].mxu0
      %3232 = vmatprep.mubr.f32.mxu0 0.0
      %3233 = vmatmul.mubr.f32.gmra.mrb[0].mxu0 %v3050
      %v3234 = vpop.f32.mrb[0].mxu0
      %v3235 = vadd.f32 0.0, %v3234
      %v3236 = vpop.f32.mrb[0].mxu0
      %3237 = vmatprep.mubr.f32.mxu0 0.0
      %3238 = vmatmul.mubr.f32.gmra.mrb[0].mxu0 %v3053
      %v3239 = vpop.f32.mrb[0].mxu0
      %v3240 = vadd.f32 0.0, %v3239
      %v3241 = vpop.f32.mrb[0].mxu0
      %3242 = vmatprep.mubr.f32.mxu0 0.0
      %3243 = vmatmul.mubr.f32.gmra.mrb[0].mxu0 %v3056
      %v3244 = vpop.f32.mrb[0].mxu0
      %v3245 = vadd.f32 0.0, %v3244
      %v3246 = vpop.f32.mrb[0].mxu0
      %3247 = vmatprep.mubr.f32.mxu0 0.0
      %3248 = vmatmul.mubr.f32.gmra.mrb[0].mxu0 %v3059
      %v3249 = vpop.f32.mrb[0].mxu0
      %v3250 = vadd.f32 0.0, %v3249
      %v3251 = vpop.f32.mrb[0].mxu0
      %3252 = vmatprep.mubr.f32.mxu0 0.0
      %3253 = vmatmul.mubr.f32.gmra.mrb[0].mxu0 %v3062
      %v3254 = vpop.f32.mrb[0].mxu0
      %v3255 = vadd.f32 0.0, %v3254
      %v3256 = vpop.f32.mrb[0].mxu0
      %3257 = vmatprep.mubr.f32.mxu0 0.0
      %3258 = vmatmul.mubr.f32.gmra.mrb[0].mxu0 %v3065
      %v3259 = vpop.f32.mrb[0].mxu0
      %v3260 = vadd.f32 0.0, %v3259
      %v3261 = vpop.f32.mrb[0].mxu0
      %3262 = vmatprep.mubr.f32.mxu0 0.0
      %3263 = vmatmul.mubr.f32.gmra.mrb[0].mxu0 %v3068
      %v3264 = vpop.f32.mrb[0].mxu0
      %v3265 = vadd.f32 0.0, %v3264
      %v3266 = vpop.f32.mrb[0].mxu0
      %3267 = vmatprep.mubr.f32.mxu0 0.0
      %3268 = vmatmul.mubr.f32.gmra.mrb[0].mxu0 %v3071
      %v3269 = vpop.f32.mrb[0].mxu0
      %v3270 = vadd.f32 0.0, %v3269
      %v3271 = vpop.f32.mrb[0].mxu0
      %3272 = vmatprep.mubr.f32.mxu0 0.0
      %3273 = vmatmul.mubr.f32.gmra.mrb[0].mxu0 %v3074
      %v3274 = vpop.f32.mrb[0].mxu0
      %v3275 = vadd.f32 0.0, %v3274
      %v3276 = vpop.f32.mrb[0].mxu0
      %3277 = vmatprep.mubr.f32.mxu0 0.0
      %3278 = vmatmul.mubr.f32.gmra.mrb[0].mxu0 %v3077
      %v3279 = vpop.f32.mrb[0].mxu0
      %v3280 = vadd.f32 0.0, %v3279
      %v3281 = vpop.f32.mrb[0].mxu0
      %3282 = vmatprep.mubr.f32.mxu0 0.0
      %3283 = vmatmul.mubr.f32.gmra.mrb[0].mxu0 %v3080
      %v3284 = vpop.f32.mrb[0].mxu0
      %v3285 = vadd.f32 0.0, %v3284
      %v3286 = vpop.f32.mrb[0].mxu0
      %3287 = vmatprep.mubr.f32.mxu0 0.0
      %3288 = vmatmul.mubr.f32.gmra.mrb[0].mxu0 %v3083
      %v3289 = vpop.f32.mrb[0].mxu0
      %v3290 = vadd.f32 0.0, %v3289
      %v3291 = vpop.f32.mrb[0].mxu0
      %3292 = vdwg.mxu0
      %v3293 = vld [vmem:[#allocation2] sm:$0xff]
      %v3294 = vld [vmem:[#allocation2 + $0x8] sm:$0xff]
      %v3295 = vld [vmem:[#allocation2 + $0x10] sm:$0xff]
      %v3296 = vld [vmem:[#allocation2 + $0x18] sm:$0xff]
      %v3297 = vld [vmem:[#allocation2 + $0x20] sm:$0xff]
      %v3298 = vld [vmem:[#allocation2 + $0x28] sm:$0xff]
      %v3299 = vld [vmem:[#allocation2 + $0x30] sm:$0xff]
      %v3300 = vld [vmem:[#allocation2 + $0x38] sm:$0xff]
      %v3301 = vld [vmem:[#allocation2 + $0x40] sm:$0xff]
      %v3302 = vld [vmem:[#allocation2 + $0x48] sm:$0xff]
      %v3303 = vld [vmem:[#allocation2 + $0x50] sm:$0xff]
      %v3304 = vld [vmem:[#allocation2 + $0x58] sm:$0xff]
      %v3305 = vld [vmem:[#allocation2 + $0x60] sm:$0xff]
      %v3306 = vld [vmem:[#allocation2 + $0x68] sm:$0xff]
      %v3307 = vld [vmem:[#allocation2 + $0x70] sm:$0xff]
      %v3308 = vld [vmem:[#allocation2 + $0x78] sm:$0xff]
      %v3309 = vld [vmem:[#allocation2 + $0x80] sm:$0xff]
      %v3310 = vld [vmem:[#allocation2 + $0x88] sm:$0xff]
      %v3311 = vld [vmem:[#allocation2 + $0x90] sm:$0xff]
      %v3312 = vld [vmem:[#allocation2 + $0x98] sm:$0xff]
      %v3313 = vld [vmem:[#allocation2 + $0xa0] sm:$0xff]
      %v3314 = vld [vmem:[#allocation2 + $0xa8] sm:$0xff]
      %v3315 = vld [vmem:[#allocation2 + $0xb0] sm:$0xff]
      %v3316 = vld [vmem:[#allocation2 + $0xb8] sm:$0xff]
      %v3317 = vld [vmem:[#allocation2 + $0xc0] sm:$0xff]
      %v3318 = vld [vmem:[#allocation2 + $0xc8] sm:$0xff]
      %v3319 = vld [vmem:[#allocation2 + $0xd0] sm:$0xff]
      %v3320 = vld [vmem:[#allocation2 + $0xd8] sm:$0x3f]
      %v3321 = vadd.f32 %v3293, %v3155
      %v3322 = vadd.f32 %v3294, %v3160
      %v3323 = vadd.f32 %v3295, %v3165
      %v3324 = vadd.f32 %v3296, %v3170
      %v3325 = vadd.f32 %v3297, %v3175
      %v3326 = vadd.f32 %v3298, %v3180
      %v3327 = vadd.f32 %v3299, %v3185
      %v3328 = vadd.f32 %v3300, %v3190
      %v3329 = vadd.f32 %v3301, %v3195
      %v3330 = vadd.f32 %v3302, %v3200
      %v3331 = vadd.f32 %v3303, %v3205
      %v3332 = vadd.f32 %v3304, %v3210
      %v3333 = vadd.f32 %v3305, %v3215
      %v3334 = vadd.f32 %v3306, %v3220
      %v3335 = vadd.f32 %v3307, %v3225
      %v3336 = vadd.f32 %v3308, %v3230
      %v3337 = vadd.f32 %v3309, %v3235
      %v3338 = vadd.f32 %v3310, %v3240
      %v3339 = vadd.f32 %v3311, %v3245
      %v3340 = vadd.f32 %v3312, %v3250
      %v3341 = vadd.f32 %v3313, %v3255
      %v3342 = vadd.f32 %v3314, %v3260
      %v3343 = vadd.f32 %v3315, %v3265
      %v3344 = vadd.f32 %v3316, %v3270
      %v3345 = vadd.f32 %v3317, %v3275
      %v3346 = vadd.f32 %v3318, %v3280
      %v3347 = vadd.f32 %v3319, %v3285
      %v3348 = vadd.f32 %v3320, %v3290
      %3349 = vst.msk [vmem:[#allocation2] sm:$0xff] %vm519, %v3321
      %3350 = vst.msk [vmem:[#allocation2 + $0x8] sm:$0xff] %vm519, %v3322
      %3351 = vst.msk [vmem:[#allocation2 + $0x10] sm:$0xff] %vm519, %v3323
      %3352 = vst.msk [vmem:[#allocation2 + $0x18] sm:$0xff] %vm519, %v3324
      %3353 = vst.msk [vmem:[#allocation2 + $0x20] sm:$0xff] %vm519, %v3325
      %3354 = vst.msk [vmem:[#allocation2 + $0x28] sm:$0xff] %vm519, %v3326
      %3355 = vst.msk [vmem:[#allocation2 + $0x30] sm:$0xff] %vm519, %v3327
      %3356 = vst.msk [vmem:[#allocation2 + $0x38] sm:$0xff] %vm519, %v3328
      %3357 = vst.msk [vmem:[#allocation2 + $0x40] sm:$0xff] %vm519, %v3329
      %3358 = vst.msk [vmem:[#allocation2 + $0x48] sm:$0xff] %vm519, %v3330
      %3359 = vst.msk [vmem:[#allocation2 + $0x50] sm:$0xff] %vm519, %v3331
      %3360 = vst.msk [vmem:[#allocation2 + $0x58] sm:$0xff] %vm519, %v3332
      %3361 = vst.msk [vmem:[#allocation2 + $0x60] sm:$0xff] %vm519, %v3333
      %3362 = vst.msk [vmem:[#allocation2 + $0x68] sm:$0xff] %vm519, %v3334
      %3363 = vst.msk [vmem:[#allocation2 + $0x70] sm:$0xff] %vm519, %v3335
      %3364 = vst.msk [vmem:[#allocation2 + $0x78] sm:$0xff] %vm519, %v3336
      %3365 = vst.msk [vmem:[#allocation2 + $0x80] sm:$0xff] %vm519, %v3337
      %3366 = vst.msk [vmem:[#allocation2 + $0x88] sm:$0xff] %vm519, %v3338
      %3367 = vst.msk [vmem:[#allocation2 + $0x90] sm:$0xff] %vm519, %v3339
      %3368 = vst.msk [vmem:[#allocation2 + $0x98] sm:$0xff] %vm519, %v3340
      %3369 = vst.msk [vmem:[#allocation2 + $0xa0] sm:$0xff] %vm519, %v3341
      %3370 = vst.msk [vmem:[#allocation2 + $0xa8] sm:$0xff] %vm519, %v3342
      %3371 = vst.msk [vmem:[#allocation2 + $0xb0] sm:$0xff] %vm519, %v3343
      %3372 = vst.msk [vmem:[#allocation2 + $0xb8] sm:$0xff] %vm519, %v3344
      %3373 = vst.msk [vmem:[#allocation2 + $0xc0] sm:$0xff] %vm519, %v3345
      %3374 = vst.msk [vmem:[#allocation2 + $0xc8] sm:$0xff] %vm519, %v3346
      %3375 = vst.msk [vmem:[#allocation2 + $0xd0] sm:$0xff] %vm519, %v3347
      %3376 = vst.msk [vmem:[#allocation2 + $0xd8] sm:$0x3f] %vm547, %v3348
      %v3377 = vld [vmem:[%s166 + $0x22] sm:$0xff]
      %v3378 = vld [vmem:[%s166 + $0x2a] sm:$0xff]
      %v3379 = vld [vmem:[%s166 + $0x32] sm:$0xff]
      %v3380 = vld [vmem:[%s166 + $0x3a] sm:$0xff]
      %v3381 = vld [vmem:[%s166 + $0x42] sm:$0xff]
      %v3382 = vld [vmem:[%s166 + $0x4a] sm:$0xff]
      %v3383 = vld [vmem:[%s166 + $0x52] sm:$0xff]
      %v3384 = vld [vmem:[%s166 + $0x5a] sm:$0xff]
      %v3385 = vld [vmem:[%s166 + $0x62] sm:$0xff]
      %v3386 = vld [vmem:[%s166 + $0x6a] sm:$0xff]
      %v3387 = vld [vmem:[%s166 + $0x72] sm:$0xff]
      %v3388 = vld [vmem:[%s166 + $0x7a] sm:$0xff]
      %v3389 = vld [vmem:[%s166 + $0x82] sm:$0xff]
      %v3390 = vld [vmem:[%s166 + $0x8a] sm:$0xff]
      %v3391 = vld [vmem:[%s166 + $0x92] sm:$0xff]
      %v3392 = vld [vmem:[%s166 + $0x9a] sm:$0xff]
      %v3393 = vld [vmem:[%s166 + $0xa2] sm:$0xff]
      %v3394 = vld [vmem:[%s166 + $0xaa] sm:$0xff]
      %v3395 = vld [vmem:[%s166 + $0xb2] sm:$0xff]
      %v3396 = vld [vmem:[%s166 + $0xba] sm:$0xff]
      %v3397 = vld [vmem:[%s166 + $0xc2] sm:$0xff]
      %v3398 = vld [vmem:[%s166 + $0xca] sm:$0xff]
      %v3399 = vld [vmem:[%s166 + $0xd2] sm:$0xff]
      %v3400 = vld [vmem:[%s166 + $0xda] sm:$0xff]
      %v3401 = vld [vmem:[%s166 + $0xe2] sm:$0xff]
      %v3402 = vld [vmem:[%s166 + $0xea] sm:$0xff]
      %v3403 = vld [vmem:[%s166 + $0xf2] sm:$0xff]
      %v3404 = vld [vmem:[%s166 + $0xfa] sm:$0x3f]
      %v3406 = vsel %vm225, %v3377, 0
      %v3409 = vsel %vm225, %v3378, 0
      %v3412 = vsel %vm225, %v3379, 0
      %v3415 = vsel %vm225, %v3380, 0
      %v3418 = vsel %vm225, %v3381, 0
      %v3421 = vsel %vm225, %v3382, 0
      %v3424 = vsel %vm225, %v3383, 0
      %v3427 = vsel %vm225, %v3384, 0
      %v3430 = vsel %vm225, %v3385, 0
      %v3433 = vsel %vm225, %v3386, 0
      %v3436 = vsel %vm225, %v3387, 0
      %v3439 = vsel %vm225, %v3388, 0
      %v3442 = vsel %vm225, %v3389, 0
      %v3445 = vsel %vm225, %v3390, 0
      %v3448 = vsel %vm225, %v3391, 0
      %v3451 = vsel %vm225, %v3392, 0
      %v3454 = vsel %vm225, %v3393, 0
      %v3457 = vsel %vm225, %v3394, 0
      %v3460 = vsel %vm225, %v3395, 0
      %v3463 = vsel %vm225, %v3396, 0
      %v3466 = vsel %vm225, %v3397, 0
      %v3469 = vsel %vm225, %v3398, 0
      %v3472 = vsel %vm225, %v3399, 0
      %v3475 = vsel %vm225, %v3400, 0
      %v3478 = vsel %vm225, %v3401, 0
      %v3481 = vsel %vm225, %v3402, 0
      %v3484 = vsel %vm225, %v3403, 0
      %v3487 = vsel %vm225, %v3404, 0
      %v3490 = vsel %vm310, %v189, 0
      %3492 = vmatprep.subr.mxu0 0.0
      %3493 = vmatpush1.msra.mxu0 %v3490
      %3494 = vmatprep.subr.mxu0 0.0
      %3495 = vmatpush1.msra.mxu0 0.0
      %3496 = vmatprep.subr.mxu0 0.0
      %3497 = vmatpush1.msra.mxu0 0.0
      %3498 = vmatprep.subr.mxu0 0.0
      %3499 = vmatpush1.msra.mxu0 0.0
      %3500 = vmatprep.subr.mxu0 0.0
      %3501 = vmatpush1.msra.mxu0 0.0
      %3502 = vmatprep.subr.mxu0 0.0
      %3503 = vmatpush1.msra.mxu0 0.0
      %3504 = vmatprep.subr.mxu0 0.0
      %3505 = vmatpush1.msra.mxu0 0.0
      %3506 = vmatprep.subr.mxu0 0.0
      %3507 = vmatpush1.msra.mxu0 0.0
      %3508 = vmatprep.subr.mxu0 0.0
      %3509 = vmatpush1.msra.mxu0 0.0
      %3510 = vmatprep.subr.mxu0 0.0
      %3511 = vmatpush1.msra.mxu0 0.0
      %3512 = vmatprep.subr.mxu0 0.0
      %3513 = vmatpush1.msra.mxu0 0.0
      %3514 = vmatprep.subr.mxu0 0.0
      %3515 = vmatpush1.msra.mxu0 0.0
      %3516 = vmatprep.subr.mxu0 0.0
      %3517 = vmatpush1.msra.mxu0 0.0
      %3518 = vmatprep.subr.mxu0 0.0
      %3519 = vmatpush1.msra.mxu0 0.0
      %3520 = vmatprep.subr.mxu0 0.0
      %3521 = vmatpush1.msra.mxu0 0.0
      %3522 = vmatprep.subr.mxu0 0.0
      %3523 = vmatpush1.msra.mxu0 0.0
      %3524 = vmatprep.subr.mxu0 0.0
      %3525 = vmatpush1.msra.mxu0 0.0
      %3526 = vmatprep.subr.mxu0 0.0
      %3527 = vmatpush1.msra.mxu0 0.0
      %3528 = vmatprep.subr.mxu0 0.0
      %3529 = vmatpush1.msra.mxu0 0.0
      %3530 = vmatprep.subr.mxu0 0.0
      %3531 = vmatpush1.msra.mxu0 0.0
      %3532 = vmatprep.subr.mxu0 0.0
      %3533 = vmatpush1.msra.mxu0 0.0
      %3534 = vmatprep.subr.mxu0 0.0
      %3535 = vmatpush1.msra.mxu0 0.0
      %3536 = vmatprep.subr.mxu0 0.0
      %3537 = vmatpush1.msra.mxu0 0.0
      %3538 = vmatprep.subr.mxu0 0.0
      %3539 = vmatpush1.msra.mxu0 0.0
      %3540 = vmatprep.subr.mxu0 0.0
      %3541 = vmatpush1.msra.mxu0 0.0
      %3542 = vmatprep.subr.mxu0 0.0
      %3543 = vmatpush1.msra.mxu0 0.0
      %3544 = vmatprep.subr.mxu0 0.0
      %3545 = vmatpush1.msra.mxu0 0.0
      %3546 = vmatprep.subr.mxu0 0.0
      %3547 = vmatpush1.msra.mxu0 0.0
      %3548 = vmatprep.subr.mxu0 0.0
      %3549 = vmatpush1.msra.mxu0 0.0
      %3550 = vmatprep.subr.mxu0 0.0
      %3551 = vmatpush1.msra.mxu0 0.0
      %3552 = vmatprep.subr.mxu0 0.0
      %3553 = vmatpush1.msra.mxu0 0.0
      %3554 = vmatprep.subr.mxu0 0.0
      %3555 = vmatpush1.msra.mxu0 0.0
      %3556 = vmatprep.mubr.f32.mxu0 0.0
      %3557 = vmatmul.mubr.f32.gmra.mrb[0].mxu0 %v3406
      %v3558 = vpop.f32.mrb[0].mxu0
      %v3559 = vadd.f32 0.0, %v3558
      %v3560 = vpop.f32.mrb[0].mxu0
      %3561 = vmatprep.mubr.f32.mxu0 0.0
      %3562 = vmatmul.mubr.f32.gmra.mrb[0].mxu0 %v3409
      %v3563 = vpop.f32.mrb[0].mxu0
      %v3564 = vadd.f32 0.0, %v3563
      %v3565 = vpop.f32.mrb[0].mxu0
      %3566 = vmatprep.mubr.f32.mxu0 0.0
      %3567 = vmatmul.mubr.f32.gmra.mrb[0].mxu0 %v3412
      %v3568 = vpop.f32.mrb[0].mxu0
      %v3569 = vadd.f32 0.0, %v3568
      %v3570 = vpop.f32.mrb[0].mxu0
      %3571 = vmatprep.mubr.f32.mxu0 0.0
      %3572 = vmatmul.mubr.f32.gmra.mrb[0].mxu0 %v3415
      %v3573 = vpop.f32.mrb[0].mxu0
      %v3574 = vadd.f32 0.0, %v3573
      %v3575 = vpop.f32.mrb[0].mxu0
      %3576 = vmatprep.mubr.f32.mxu0 0.0
      %3577 = vmatmul.mubr.f32.gmra.mrb[0].mxu0 %v3418
      %v3578 = vpop.f32.mrb[0].mxu0
      %v3579 = vadd.f32 0.0, %v3578
      %v3580 = vpop.f32.mrb[0].mxu0
      %3581 = vmatprep.mubr.f32.mxu0 0.0
      %3582 = vmatmul.mubr.f32.gmra.mrb[0].mxu0 %v3421
      %v3583 = vpop.f32.mrb[0].mxu0
      %v3584 = vadd.f32 0.0, %v3583
      %v3585 = vpop.f32.mrb[0].mxu0
      %3586 = vmatprep.mubr.f32.mxu0 0.0
      %3587 = vmatmul.mubr.f32.gmra.mrb[0].mxu0 %v3424
      %v3588 = vpop.f32.mrb[0].mxu0
      %v3589 = vadd.f32 0.0, %v3588
      %v3590 = vpop.f32.mrb[0].mxu0
      %3591 = vmatprep.mubr.f32.mxu0 0.0
      %3592 = vmatmul.mubr.f32.gmra.mrb[0].mxu0 %v3427
      %v3593 = vpop.f32.mrb[0].mxu0
      %v3594 = vadd.f32 0.0, %v3593
      %v3595 = vpop.f32.mrb[0].mxu0
      %3596 = vmatprep.mubr.f32.mxu0 0.0
      %3597 = vmatmul.mubr.f32.gmra.mrb[0].mxu0 %v3430
      %v3598 = vpop.f32.mrb[0].mxu0
      %v3599 = vadd.f32 0.0, %v3598
      %v3600 = vpop.f32.mrb[0].mxu0
      %3601 = vmatprep.mubr.f32.mxu0 0.0
      %3602 = vmatmul.mubr.f32.gmra.mrb[0].mxu0 %v3433
      %v3603 = vpop.f32.mrb[0].mxu0
      %v3604 = vadd.f32 0.0, %v3603
      %v3605 = vpop.f32.mrb[0].mxu0
      %3606 = vmatprep.mubr.f32.mxu0 0.0
      %3607 = vmatmul.mubr.f32.gmra.mrb[0].mxu0 %v3436
      %v3608 = vpop.f32.mrb[0].mxu0
      %v3609 = vadd.f32 0.0, %v3608
      %v3610 = vpop.f32.mrb[0].mxu0
      %3611 = vmatprep.mubr.f32.mxu0 0.0
      %3612 = vmatmul.mubr.f32.gmra.mrb[0].mxu0 %v3439
      %v3613 = vpop.f32.mrb[0].mxu0
      %v3614 = vadd.f32 0.0, %v3613
      %v3615 = vpop.f32.mrb[0].mxu0
      %3616 = vmatprep.mubr.f32.mxu0 0.0
      %3617 = vmatmul.mubr.f32.gmra.mrb[0].mxu0 %v3442
      %v3618 = vpop.f32.mrb[0].mxu0
      %v3619 = vadd.f32 0.0, %v3618
      %v3620 = vpop.f32.mrb[0].mxu0
      %3621 = vmatprep.mubr.f32.mxu0 0.0
      %3622 = vmatmul.mubr.f32.gmra.mrb[0].mxu0 %v3445
      %v3623 = vpop.f32.mrb[0].mxu0
      %v3624 = vadd.f32 0.0, %v3623
      %v3625 = vpop.f32.mrb[0].mxu0
      %3626 = vmatprep.mubr.f32.mxu0 0.0
      %3627 = vmatmul.mubr.f32.gmra.mrb[0].mxu0 %v3448
      %v3628 = vpop.f32.mrb[0].mxu0
      %v3629 = vadd.f32 0.0, %v3628
      %v3630 = vpop.f32.mrb[0].mxu0
      %3631 = vmatprep.mubr.f32.mxu0 0.0
      %3632 = vmatmul.mubr.f32.gmra.mrb[0].mxu0 %v3451
      %v3633 = vpop.f32.mrb[0].mxu0
      %v3634 = vadd.f32 0.0, %v3633
      %v3635 = vpop.f32.mrb[0].mxu0
      %3636 = vmatprep.mubr.f32.mxu0 0.0
      %3637 = vmatmul.mubr.f32.gmra.mrb[0].mxu0 %v3454
      %v3638 = vpop.f32.mrb[0].mxu0
      %v3639 = vadd.f32 0.0, %v3638
      %v3640 = vpop.f32.mrb[0].mxu0
      %3641 = vmatprep.mubr.f32.mxu0 0.0
      %3642 = vmatmul.mubr.f32.gmra.mrb[0].mxu0 %v3457
      %v3643 = vpop.f32.mrb[0].mxu0
      %v3644 = vadd.f32 0.0, %v3643
      %v3645 = vpop.f32.mrb[0].mxu0
      %3646 = vmatprep.mubr.f32.mxu0 0.0
      %3647 = vmatmul.mubr.f32.gmra.mrb[0].mxu0 %v3460
      %v3648 = vpop.f32.mrb[0].mxu0
      %v3649 = vadd.f32 0.0, %v3648
      %v3650 = vpop.f32.mrb[0].mxu0
      %3651 = vmatprep.mubr.f32.mxu0 0.0
      %3652 = vmatmul.mubr.f32.gmra.mrb[0].mxu0 %v3463
      %v3653 = vpop.f32.mrb[0].mxu0
      %v3654 = vadd.f32 0.0, %v3653
      %v3655 = vpop.f32.mrb[0].mxu0
      %3656 = vmatprep.mubr.f32.mxu0 0.0
      %3657 = vmatmul.mubr.f32.gmra.mrb[0].mxu0 %v3466
      %v3658 = vpop.f32.mrb[0].mxu0
      %v3659 = vadd.f32 0.0, %v3658
      %v3660 = vpop.f32.mrb[0].mxu0
      %3661 = vmatprep.mubr.f32.mxu0 0.0
      %3662 = vmatmul.mubr.f32.gmra.mrb[0].mxu0 %v3469
      %v3663 = vpop.f32.mrb[0].mxu0
      %v3664 = vadd.f32 0.0, %v3663
      %v3665 = vpop.f32.mrb[0].mxu0
      %3666 = vmatprep.mubr.f32.mxu0 0.0
      %3667 = vmatmul.mubr.f32.gmra.mrb[0].mxu0 %v3472
      %v3668 = vpop.f32.mrb[0].mxu0
      %v3669 = vadd.f32 0.0, %v3668
      %v3670 = vpop.f32.mrb[0].mxu0
      %3671 = vmatprep.mubr.f32.mxu0 0.0
      %3672 = vmatmul.mubr.f32.gmra.mrb[0].mxu0 %v3475
      %v3673 = vpop.f32.mrb[0].mxu0
      %v3674 = vadd.f32 0.0, %v3673
      %v3675 = vpop.f32.mrb[0].mxu0
      %3676 = vmatprep.mubr.f32.mxu0 0.0
      %3677 = vmatmul.mubr.f32.gmra.mrb[0].mxu0 %v3478
      %v3678 = vpop.f32.mrb[0].mxu0
      %v3679 = vadd.f32 0.0, %v3678
      %v3680 = vpop.f32.mrb[0].mxu0
      %3681 = vmatprep.mubr.f32.mxu0 0.0
      %3682 = vmatmul.mubr.f32.gmra.mrb[0].mxu0 %v3481
      %v3683 = vpop.f32.mrb[0].mxu0
      %v3684 = vadd.f32 0.0, %v3683
      %v3685 = vpop.f32.mrb[0].mxu0
      %3686 = vmatprep.mubr.f32.mxu0 0.0
      %3687 = vmatmul.mubr.f32.gmra.mrb[0].mxu0 %v3484
      %v3688 = vpop.f32.mrb[0].mxu0
      %v3689 = vadd.f32 0.0, %v3688
      %v3690 = vpop.f32.mrb[0].mxu0
      %3691 = vmatprep.mubr.f32.mxu0 0.0
      %3692 = vmatmul.mubr.f32.gmra.mrb[0].mxu0 %v3487
      %v3693 = vpop.f32.mrb[0].mxu0
      %v3694 = vadd.f32 0.0, %v3693
      %v3695 = vpop.f32.mrb[0].mxu0
      %3696 = vdwg.mxu0
      %v3697 = vld [vmem:[#allocation2] sm:$0xff]
      %v3698 = vld [vmem:[#allocation2 + $0x8] sm:$0xff]
      %v3699 = vld [vmem:[#allocation2 + $0x10] sm:$0xff]
      %v3700 = vld [vmem:[#allocation2 + $0x18] sm:$0xff]
      %v3701 = vld [vmem:[#allocation2 + $0x20] sm:$0xff]
      %v3702 = vld [vmem:[#allocation2 + $0x28] sm:$0xff]
      %v3703 = vld [vmem:[#allocation2 + $0x30] sm:$0xff]
      %v3704 = vld [vmem:[#allocation2 + $0x38] sm:$0xff]
      %v3705 = vld [vmem:[#allocation2 + $0x40] sm:$0xff]
      %v3706 = vld [vmem:[#allocation2 + $0x48] sm:$0xff]
      %v3707 = vld [vmem:[#allocation2 + $0x50] sm:$0xff]
      %v3708 = vld [vmem:[#allocation2 + $0x58] sm:$0xff]
      %v3709 = vld [vmem:[#allocation2 + $0x60] sm:$0xff]
      %v3710 = vld [vmem:[#allocation2 + $0x68] sm:$0xff]
      %v3711 = vld [vmem:[#allocation2 + $0x70] sm:$0xff]
      %v3712 = vld [vmem:[#allocation2 + $0x78] sm:$0xff]
      %v3713 = vld [vmem:[#allocation2 + $0x80] sm:$0xff]
      %v3714 = vld [vmem:[#allocation2 + $0x88] sm:$0xff]
      %v3715 = vld [vmem:[#allocation2 + $0x90] sm:$0xff]
      %v3716 = vld [vmem:[#allocation2 + $0x98] sm:$0xff]
      %v3717 = vld [vmem:[#allocation2 + $0xa0] sm:$0xff]
      %v3718 = vld [vmem:[#allocation2 + $0xa8] sm:$0xff]
      %v3719 = vld [vmem:[#allocation2 + $0xb0] sm:$0xff]
      %v3720 = vld [vmem:[#allocation2 + $0xb8] sm:$0xff]
      %v3721 = vld [vmem:[#allocation2 + $0xc0] sm:$0xff]
      %v3722 = vld [vmem:[#allocation2 + $0xc8] sm:$0xff]
      %v3723 = vld [vmem:[#allocation2 + $0xd0] sm:$0xff]
      %v3724 = vld [vmem:[#allocation2 + $0xd8] sm:$0x3f]
      %v3725 = vadd.f32 %v3697, %v3559
      %v3726 = vadd.f32 %v3698, %v3564
      %v3727 = vadd.f32 %v3699, %v3569
      %v3728 = vadd.f32 %v3700, %v3574
      %v3729 = vadd.f32 %v3701, %v3579
      %v3730 = vadd.f32 %v3702, %v3584
      %v3731 = vadd.f32 %v3703, %v3589
      %v3732 = vadd.f32 %v3704, %v3594
      %v3733 = vadd.f32 %v3705, %v3599
      %v3734 = vadd.f32 %v3706, %v3604
      %v3735 = vadd.f32 %v3707, %v3609
      %v3736 = vadd.f32 %v3708, %v3614
      %v3737 = vadd.f32 %v3709, %v3619
      %v3738 = vadd.f32 %v3710, %v3624
      %v3739 = vadd.f32 %v3711, %v3629
      %v3740 = vadd.f32 %v3712, %v3634
      %v3741 = vadd.f32 %v3713, %v3639
      %v3742 = vadd.f32 %v3714, %v3644
      %v3743 = vadd.f32 %v3715, %v3649
      %v3744 = vadd.f32 %v3716, %v3654
      %v3745 = vadd.f32 %v3717, %v3659
      %v3746 = vadd.f32 %v3718, %v3664
      %v3747 = vadd.f32 %v3719, %v3669
      %v3748 = vadd.f32 %v3720, %v3674
      %v3749 = vadd.f32 %v3721, %v3679
      %v3750 = vadd.f32 %v3722, %v3684
      %v3751 = vadd.f32 %v3723, %v3689
      %v3752 = vadd.f32 %v3724, %v3694
      %3753 = vst.msk [vmem:[#allocation2] sm:$0xff] %vm519, %v3725
      %3754 = vst.msk [vmem:[#allocation2 + $0x8] sm:$0xff] %vm519, %v3726
      %3755 = vst.msk [vmem:[#allocation2 + $0x10] sm:$0xff] %vm519, %v3727
      %3756 = vst.msk [vmem:[#allocation2 + $0x18] sm:$0xff] %vm519, %v3728
      %3757 = vst.msk [vmem:[#allocation2 + $0x20] sm:$0xff] %vm519, %v3729
      %3758 = vst.msk [vmem:[#allocation2 + $0x28] sm:$0xff] %vm519, %v3730
      %3759 = vst.msk [vmem:[#allocation2 + $0x30] sm:$0xff] %vm519, %v3731
      %3760 = vst.msk [vmem:[#allocation2 + $0x38] sm:$0xff] %vm519, %v3732
      %3761 = vst.msk [vmem:[#allocation2 + $0x40] sm:$0xff] %vm519, %v3733
      %3762 = vst.msk [vmem:[#allocation2 + $0x48] sm:$0xff] %vm519, %v3734
      %3763 = vst.msk [vmem:[#allocation2 + $0x50] sm:$0xff] %vm519, %v3735
      %3764 = vst.msk [vmem:[#allocation2 + $0x58] sm:$0xff] %vm519, %v3736
      %3765 = vst.msk [vmem:[#allocation2 + $0x60] sm:$0xff] %vm519, %v3737
      %3766 = vst.msk [vmem:[#allocation2 + $0x68] sm:$0xff] %vm519, %v3738
      %3767 = vst.msk [vmem:[#allocation2 + $0x70] sm:$0xff] %vm519, %v3739
      %3768 = vst.msk [vmem:[#allocation2 + $0x78] sm:$0xff] %vm519, %v3740
      %3769 = vst.msk [vmem:[#allocation2 + $0x80] sm:$0xff] %vm519, %v3741
      %3770 = vst.msk [vmem:[#allocation2 + $0x88] sm:$0xff] %vm519, %v3742
      %3771 = vst.msk [vmem:[#allocation2 + $0x90] sm:$0xff] %vm519, %v3743
      %3772 = vst.msk [vmem:[#allocation2 + $0x98] sm:$0xff] %vm519, %v3744
      %3773 = vst.msk [vmem:[#allocation2 + $0xa0] sm:$0xff] %vm519, %v3745
      %3774 = vst.msk [vmem:[#allocation2 + $0xa8] sm:$0xff] %vm519, %v3746
      %3775 = vst.msk [vmem:[#allocation2 + $0xb0] sm:$0xff] %vm519, %v3747
      %3776 = vst.msk [vmem:[#allocation2 + $0xb8] sm:$0xff] %vm519, %v3748
      %3777 = vst.msk [vmem:[#allocation2 + $0xc0] sm:$0xff] %vm519, %v3749
      %3778 = vst.msk [vmem:[#allocation2 + $0xc8] sm:$0xff] %vm519, %v3750
      %3779 = vst.msk [vmem:[#allocation2 + $0xd0] sm:$0xff] %vm519, %v3751
      %3780 = vst.msk [vmem:[#allocation2 + $0xd8] sm:$0x3f] %vm547, %v3752
      %v3781 = vld [vmem:[#allocation2] sm:$0xff]
      %v3782 = vld [vmem:[#allocation2 + $0x8] sm:$0x3f]
      %v3783 = vld [vmem:[#allocation2 + $0x10] sm:$0xff]
      %v3784 = vld [vmem:[#allocation2 + $0x18] sm:$0x3f]
      %v3785 = vmax.f32 %v3781, %v3783
      %v3786 = vmax.f32 %v3782, %v3784
      %v3787 = vld [vmem:[#allocation2 + $0x20] sm:$0xff]
      %v3788 = vld [vmem:[#allocation2 + $0x28] sm:$0x3f]
      %v3789 = vmax.f32 %v3785, %v3787
      %v3790 = vmax.f32 %v3786, %v3788
      %vm3793 = vcmask 1046528
      %v3794 = vrot.slane %v3789, 1
      %v3795 = vrot.slane %v3790, 1
      %v3796 = vsel %vm3793, %v3794, %v3795
      %v3799 = vmax.f32 %v3789, %v3796
      %v3800 = vmax.f32 %v3790, %v3795
      %vm3801 = vcmask 1045504
      %v3802 = vrot.slane %v3789, 2
      %v3803 = vrot.slane %v3790, 2
      %v3804 = vsel %vm3801, %v3802, %v3803
      %v3807 = vmax.f32 %v3799, %v3804
      %v3808 = vmax.f32 %v3800, %v3803
      %v3810 = vrot.slane %v3807, 1
      %v3812 = vrot.slane %v3807, 2
      %v3814 = vrot.slane %v3807, 3
      %v3817 = vrot.slane %v3808, 4
      %v3819 = vrot.slane %v3808, 5
      %vm3821 = vcmask 1040384
      %v3822 = vsel %vm3821, %v3807, %v3810
      %vm3823 = vcmask 1041408
      %v3824 = vsel %vm3823, %v3822, %v3812
      %vm3825 = vcmask 1042432
      %v3826 = vsel %vm3825, %v3824, %v3814
      %v3827 = vsel %vm310, %v3826, %v3817
      %vm3828 = vcmask 1044480
      %v3829 = vsel %vm3828, %v3827, %v3819
      %v3830 = vadd.f32 %v3829, %v195
      %v3831 = vmax.f32 %v3830, 0.0
      %3832 = vst.msk [vmem:[%s172] sm:$0x3f] %vm547, %v3831
      %v3833 = vld [vmem:[#allocation2 + $0x20] sm:$0xff]
      %v3834 = vld [vmem:[#allocation2 + $0x28] sm:$0x3f]
      %v3835 = vld [vmem:[#allocation2 + $0x30] sm:$0xff]
      %v3836 = vld [vmem:[#allocation2 + $0x38] sm:$0x3f]
      %v3837 = vmax.f32 %v3833, %v3835
      %v3838 = vmax.f32 %v3834, %v3836
      %v3839 = vld [vmem:[#allocation2 + $0x40] sm:$0xff]
      %v3840 = vld [vmem:[#allocation2 + $0x48] sm:$0x3f]
      %v3841 = vmax.f32 %v3837, %v3839
      %v3842 = vmax.f32 %v3838, %v3840
      %v3845 = vrot.slane %v3841, 1
      %v3846 = vrot.slane %v3842, 1
      %v3847 = vsel %vm3793, %v3845, %v3846
      %v3850 = vmax.f32 %v3841, %v3847
      %v3851 = vmax.f32 %v3842, %v3846
      %v3852 = vrot.slane %v3841, 2
      %v3853 = vrot.slane %v3842, 2
      %v3854 = vsel %vm3801, %v3852, %v3853
      %v3857 = vmax.f32 %v3850, %v3854
      %v3858 = vmax.f32 %v3851, %v3853
      %v3860 = vrot.slane %v3857, 1
      %v3862 = vrot.slane %v3857, 2
      %v3864 = vrot.slane %v3857, 3
      %v3867 = vrot.slane %v3858, 4
      %v3869 = vrot.slane %v3858, 5
      %v3871 = vsel %vm3821, %v3857, %v3860
      %v3872 = vsel %vm3823, %v3871, %v3862
      %v3873 = vsel %vm3825, %v3872, %v3864
      %v3874 = vsel %vm310, %v3873, %v3867
      %v3875 = vsel %vm3828, %v3874, %v3869
      %v3876 = vadd.f32 %v3875, %v195
      %v3877 = vmax.f32 %v3876, 0.0
      %s3878 = scalar_lea.vmem %s172, 8
      %3879 = vst.msk [vmem:[%s3878] sm:$0x3f] %vm547, %v3877
      %v3880 = vld [vmem:[#allocation2 + $0x40] sm:$0xff]
      %v3881 = vld [vmem:[#allocation2 + $0x48] sm:$0x3f]
      %v3882 = vld [vmem:[#allocation2 + $0x50] sm:$0xff]
      %v3883 = vld [vmem:[#allocation2 + $0x58] sm:$0x3f]
      %v3884 = vmax.f32 %v3880, %v3882
      %v3885 = vmax.f32 %v3881, %v3883
      %v3886 = vld [vmem:[#allocation2 + $0x60] sm:$0xff]
      %v3887 = vld [vmem:[#allocation2 + $0x68] sm:$0x3f]
      %v3888 = vmax.f32 %v3884, %v3886
      %v3889 = vmax.f32 %v3885, %v3887
      %v3892 = vrot.slane %v3888, 1
      %v3893 = vrot.slane %v3889, 1
      %v3894 = vsel %vm3793, %v3892, %v3893
      %v3897 = vmax.f32 %v3888, %v3894
      %v3898 = vmax.f32 %v3889, %v3893
      %v3899 = vrot.slane %v3888, 2
      %v3900 = vrot.slane %v3889, 2
      %v3901 = vsel %vm3801, %v3899, %v3900
      %v3904 = vmax.f32 %v3897, %v3901
      %v3905 = vmax.f32 %v3898, %v3900
      %v3907 = vrot.slane %v3904, 1
      %v3909 = vrot.slane %v3904, 2
      %v3911 = vrot.slane %v3904, 3
      %v3914 = vrot.slane %v3905, 4
      %v3916 = vrot.slane %v3905, 5
      %v3918 = vsel %vm3821, %v3904, %v3907
      %v3919 = vsel %vm3823, %v3918, %v3909
      %v3920 = vsel %vm3825, %v3919, %v3911
      %v3921 = vsel %vm310, %v3920, %v3914
      %v3922 = vsel %vm3828, %v3921, %v3916
      %v3923 = vadd.f32 %v3922, %v195
      %v3924 = vmax.f32 %v3923, 0.0
      %s3925 = scalar_lea.vmem %s172, 16
      %3926 = vst.msk [vmem:[%s3925] sm:$0x3f] %vm547, %v3924
      %v3927 = vld [vmem:[#allocation2 + $0x60] sm:$0xff]
      %v3928 = vld [vmem:[#allocation2 + $0x68] sm:$0x3f]
      %v3929 = vld [vmem:[#allocation2 + $0x70] sm:$0xff]
      %v3930 = vld [vmem:[#allocation2 + $0x78] sm:$0x3f]
      %v3931 = vmax.f32 %v3927, %v3929
      %v3932 = vmax.f32 %v3928, %v3930
      %v3933 = vld [vmem:[#allocation2 + $0x80] sm:$0xff]
      %v3934 = vld [vmem:[#allocation2 + $0x88] sm:$0x3f]
      %v3935 = vmax.f32 %v3931, %v3933
      %v3936 = vmax.f32 %v3932, %v3934
      %v3939 = vrot.slane %v3935, 1
      %v3940 = vrot.slane %v3936, 1
      %v3941 = vsel %vm3793, %v3939, %v3940
      %v3944 = vmax.f32 %v3935, %v3941
      %v3945 = vmax.f32 %v3936, %v3940
      %v3946 = vrot.slane %v3935, 2
      %v3947 = vrot.slane %v3936, 2
      %v3948 = vsel %vm3801, %v3946, %v3947
      %v3951 = vmax.f32 %v3944, %v3948
      %v3952 = vmax.f32 %v3945, %v3947
      %v3954 = vrot.slane %v3951, 1
      %v3956 = vrot.slane %v3951, 2
      %v3958 = vrot.slane %v3951, 3
      %v3961 = vrot.slane %v3952, 4
      %v3963 = vrot.slane %v3952, 5
      %v3965 = vsel %vm3821, %v3951, %v3954
      %v3966 = vsel %vm3823, %v3965, %v3956
      %v3967 = vsel %vm3825, %v3966, %v3958
      %v3968 = vsel %vm310, %v3967, %v3961
      %v3969 = vsel %vm3828, %v3968, %v3963
      %v3970 = vadd.f32 %v3969, %v195
      %v3971 = vmax.f32 %v3970, 0.0
      %s3972 = scalar_lea.vmem %s172, 24
      %3973 = vst.msk [vmem:[%s3972] sm:$0x3f] %vm547, %v3971
      %v3974 = vld [vmem:[#allocation2 + $0x80] sm:$0xff]
      %v3975 = vld [vmem:[#allocation2 + $0x88] sm:$0x3f]
      %v3976 = vld [vmem:[#allocation2 + $0x90] sm:$0xff]
      %v3977 = vld [vmem:[#allocation2 + $0x98] sm:$0x3f]
      %v3978 = vmax.f32 %v3974, %v3976
      %v3979 = vmax.f32 %v3975, %v3977
      %v3980 = vld [vmem:[#allocation2 + $0xa0] sm:$0xff]
      %v3981 = vld [vmem:[#allocation2 + $0xa8] sm:$0x3f]
      %v3982 = vmax.f32 %v3978, %v3980
      %v3983 = vmax.f32 %v3979, %v3981
      %v3986 = vrot.slane %v3982, 1
      %v3987 = vrot.slane %v3983, 1
      %v3988 = vsel %vm3793, %v3986, %v3987
      %v3991 = vmax.f32 %v3982, %v3988
      %v3992 = vmax.f32 %v3983, %v3987
      %v3993 = vrot.slane %v3982, 2
      %v3994 = vrot.slane %v3983, 2
      %v3995 = vsel %vm3801, %v3993, %v3994
      %v3998 = vmax.f32 %v3991, %v3995
      %v3999 = vmax.f32 %v3992, %v3994
      %v4001 = vrot.slane %v3998, 1
      %v4003 = vrot.slane %v3998, 2
      %v4005 = vrot.slane %v3998, 3
      %v4008 = vrot.slane %v3999, 4
      %v4010 = vrot.slane %v3999, 5
      %v4012 = vsel %vm3821, %v3998, %v4001
      %v4013 = vsel %vm3823, %v4012, %v4003
      %v4014 = vsel %vm3825, %v4013, %v4005
      %v4015 = vsel %vm310, %v4014, %v4008
      %v4016 = vsel %vm3828, %v4015, %v4010
      %v4017 = vadd.f32 %v4016, %v195
      %v4018 = vmax.f32 %v4017, 0.0
      %s4019 = scalar_lea.vmem %s172, 32
      %4020 = vst.msk [vmem:[%s4019] sm:$0x3f] %vm547, %v4018
      %v4021 = vld [vmem:[#allocation2 + $0xa0] sm:$0xff]
      %v4022 = vld [vmem:[#allocation2 + $0xa8] sm:$0x3f]
      %v4023 = vld [vmem:[#allocation2 + $0xb0] sm:$0xff]
      %v4024 = vld [vmem:[#allocation2 + $0xb8] sm:$0x3f]
      %v4025 = vmax.f32 %v4021, %v4023
      %v4026 = vmax.f32 %v4022, %v4024
      %v4027 = vld [vmem:[#allocation2 + $0xc0] sm:$0xff]
      %v4028 = vld [vmem:[#allocation2 + $0xc8] sm:$0x3f]
      %v4029 = vmax.f32 %v4025, %v4027
      %v4030 = vmax.f32 %v4026, %v4028
      %v4033 = vrot.slane %v4029, 1
      %v4034 = vrot.slane %v4030, 1
      %v4035 = vsel %vm3793, %v4033, %v4034
      %v4038 = vmax.f32 %v4029, %v4035
      %v4039 = vmax.f32 %v4030, %v4034
      %v4040 = vrot.slane %v4029, 2
      %v4041 = vrot.slane %v4030, 2
      %v4042 = vsel %vm3801, %v4040, %v4041
      %v4045 = vmax.f32 %v4038, %v4042
      %v4046 = vmax.f32 %v4039, %v4041
      %v4048 = vrot.slane %v4045, 1
      %v4050 = vrot.slane %v4045, 2
      %v4052 = vrot.slane %v4045, 3
      %v4055 = vrot.slane %v4046, 4
      %v4057 = vrot.slane %v4046, 5
      %v4059 = vsel %vm3821, %v4045, %v4048
      %v4060 = vsel %vm3823, %v4059, %v4050
      %v4061 = vsel %vm3825, %v4060, %v4052
      %v4062 = vsel %vm310, %v4061, %v4055
      %v4063 = vsel %vm3828, %v4062, %v4057
      %v4064 = vadd.f32 %v4063, %v195
      %v4065 = vmax.f32 %v4064, 0.0
      %s4066 = scalar_lea.vmem %s172, 40
      %4067 = vst.msk [vmem:[%s4066] sm:$0x3f] %vm547, %v4065
      %p4068 = scmp.lt.s32.totalorder %s14, 1
      %s4069 = scalar_select %p4068, %s14, 1
      %s4070 = smul.addr %s4069, 6
      %s4071 = smul.addr %s4070, 8
      %s4072 = scalar_lea.vmem %s3, %s4071
      // Predicated region
      $region33: #{tpu_custom_call.1} parent=31 // pred_check
        %p4073 = pneg %p100
      $region34: #{tpu_custom_call.1} parent=31 // pred_check_branch
        %4075 = sbr.rel (%p4073) target = $region36
      $region35: #{tpu_custom_call.1} parent=31 // pred_region
        _
      $region36: #{tpu_custom_call.1} parent=31 // pred_fallthru
        _
    $region32: #{tpu_custom_call.1} parent=5 // pred_fallthru
      _
    %p4076 = scmp.le.s32.totalorder 2, %s9
    // Predicated region
    $region37: #{tpu_custom_call.1} parent=5 // pred_check
      %p4077 = pneg %p4076
    $region38: #{tpu_custom_call.1} parent=5 // pred_check_branch
      %4079 = sbr.rel (%p4077) target = $region40
    $region39: #{tpu_custom_call.1} parent=5 // pred_region
      %s4080 = ssub.s32 %s9, 2
      // Predicated region
      $region41: #{tpu_custom_call.1} parent=39 // pred_check
        %p4081 = pneg %p106
      $region42: #{tpu_custom_call.1} parent=39 // pred_check_branch
        %4083 = sbr.rel (%p4081) target = $region44
      $region43: #{tpu_custom_call.1} parent=39 // pred_region
        %p4084 = scmp.lt.s32.totalorder %s15, 1
        %s4085 = scalar_select %p4084, %s15, 1
        %s4086 = smul.addr %s4085, 6
        %s4087 = smul.addr %s4086, 8
        %s4088 = scalar_lea.vmem %s3, %s4087
      $region44: #{tpu_custom_call.1} parent=39 // pred_fallthru
        _
    $region40: #{tpu_custom_call.1} parent=5 // pred_fallthru
      _
  $region6: #{tpu_custom_call.1} parent=0 // loop_footer
    %s13 = sadd.s32 1, %s9
  $region7: #{tpu_custom_call.1} parent=0 // loop_footer_branch
    %8 = sbr.rel target = $region3
  $region8: #{tpu_custom_call.1} parent=0 // loop_exit
    _

</llo_original>
